<compile_context>
chip_gen: v5e
topology: v5e:2x2
jax: 0.10.0
libtpu: 0.0.40
codegen_flags: <defaults>
</compile_context>

<pallas_src>
import functools

import jax
import jax.numpy as jnp
from jax.experimental import pallas as pl
from jax.experimental.pallas import tpu as pltpu


# Branch output channels of PreparationNetwork: 50 + 10 + 5 = 65.
_BRANCH_COUT = (50, 10, 5)
_C1 = sum(_BRANCH_COUT)  # 65
_CIN = 3                 # RGB input


def _prep_net_kernel(x_ref, w1_ref, b1_ref, w2_ref, b2_ref, o_ref, act_ref,
                     *, H, W):
    """Fused 2-layer, 3-branch 3x3 conv + ReLU network for one image.

    x_ref:   (1, (H+3)*Wp, Cin)  zero-padded input (1 top / 2 bottom / 1 L-R)
    w1_ref:  (9*Cin, 65)         layer-1 weights, branches concat along Cout
    b1_ref:  (1, 65)
    w2_ref:  (9*65, 65)          layer-2 weights, block-diagonal over branches
    b2_ref:  (1, 65)
    o_ref:   (1, H*Wp, 65)       output slab (2 junk cols per row, sliced off
                                 by the wrapper)
    act_ref: ((H+3)*Wp, 65) VMEM zero-padded layer-1 activations (never HBM)
    """
    Wp = W + 2
    M = H * Wp                                     # rows computed per layer
    shifts = [ky * Wp + kx for ky in range(3) for kx in range(3)]

    # Columns x >= W of each row-block are "wrap" junk; they sit exactly on
    # the padding columns of the next layer, so zero them after layer 1.
    col = jax.lax.broadcasted_iota(jnp.int32, (M, 1), 0) % Wp
    valid = col < W

    # ---- layer 1: one (M, 27) @ (27, 65) matmul for all three branches ----
    x = x_ref[0]                                                  # (R_in, Cin)
    slab1 = jnp.concatenate([x[s:s + M, :] for s in shifts], axis=-1)
    y1 = jnp.dot(slab1, w1_ref[...], preferred_element_type=jnp.float32)
    y1 = jnp.maximum(y1 + b1_ref[...], 0.0)
    y1 = jnp.where(valid, y1, 0.0)

    # Stash layer-1 activations into the zero-padded VMEM scratch.
    act_ref[...] = jnp.zeros_like(act_ref)
    act_ref[Wp + 1:Wp + 1 + M, :] = y1.astype(act_ref.dtype)

    # ---- layer 2: one block-diagonal (M, 585) @ (585, 65) matmul ----
    a = act_ref[...]
    slab2 = jnp.concatenate([a[s:s + M, :] for s in shifts], axis=-1)
    y2 = jnp.dot(slab2, w2_ref[...], preferred_element_type=jnp.float32)
    y2 = jnp.maximum(y2 + b2_ref[...], 0.0)
    o_ref[0] = y2.astype(o_ref.dtype)


def _pack_params(params, compute_dtype):
    """Pack the six convs into (w1, b1, w2, b2) for the fused kernel."""
    w1 = jnp.concatenate([params["branch1_conv1"]["w"],
                          params["branch2_conv1"]["w"],
                          params["branch3_conv1"]["w"]], axis=-1)   # (3,3,3,65)
    b1 = jnp.concatenate([params["branch1_conv1"]["b"],
                          params["branch2_conv1"]["b"],
                          params["branch3_conv1"]["b"]])            # (65,)

    w2 = jnp.zeros((3, 3, _C1, _C1), jnp.float32)                   # block-diag
    off = 0
    for name, c in zip(("branch1_conv2", "branch2_conv2", "branch3_conv2"),
                       _BRANCH_COUT):
        w2 = w2.at[:, :, off:off + c, off:off + c].set(params[name]["w"])
        off += c
    b2 = jnp.concatenate([params["branch1_conv2"]["b"],
                          params["branch2_conv2"]["b"],
                          params["branch3_conv2"]["b"]])

    return (w1.reshape(9 * _CIN, _C1).astype(compute_dtype),
            b1.reshape(1, _C1).astype(jnp.float32),
            w2.reshape(9 * _C1, _C1).astype(compute_dtype),
            b2.reshape(1, _C1).astype(jnp.float32))


@functools.partial(jax.jit, static_argnames=("compute_dtype",))
def preparation_network(x_nchw, params, *, compute_dtype=jnp.float32):
    """Forward pass equivalent to PreparationNetwork.forward (NCHW in/out)."""
    N, Cin, H, W = x_nchw.shape
    assert Cin == _CIN, Cin
    Wp = W + 2
    M = H * Wp                       # rows computed per layer (2 junk cols/row)
    R_in = (H + 3) * Wp              # extra bottom pad row keeps all tap slices
                                     # (max offset 2*Wp+2) in bounds

    # NCHW -> NHWC, zero pad, flatten spatial to (rows, channels).
    x = jnp.transpose(x_nchw, (0, 2, 3, 1))
    x = jnp.pad(x, ((0, 0), (1, 2), (1, 1), (0, 0)))
    x = x.reshape(N, R_in, Cin).astype(compute_dtype)

    w1, b1, w2, b2 = _pack_params(params, compute_dtype)

    flops = 2 * N * M * (9 * Cin + 9 * _C1) * _C1
    bytes_accessed = (x.size * x.dtype.itemsize
                      + w1.size * w1.dtype.itemsize
                      + w2.size * w2.dtype.itemsize
                      + (b1.size + b2.size) * 4
                      + N * M * _C1 * 4)

    kernel = functools.partial(_prep_net_kernel, H=H, W=W)
    out = pl.pallas_call(
        kernel,
        out_shape=jax.ShapeDtypeStruct((N, M, _C1), jnp.float32),
        grid=(N,),
        in_specs=[
            pl.BlockSpec((1, R_in, Cin), lambda n: (n, 0, 0)),
            pl.BlockSpec((9 * _CIN, _C1), lambda n: (0, 0)),
            pl.BlockSpec((1, _C1), lambda n: (0, 0)),
            pl.BlockSpec((9 * _C1, _C1), lambda n: (0, 0)),
            pl.BlockSpec((1, _C1), lambda n: (0, 0)),
        ],
        out_specs=pl.BlockSpec((1, M, _C1), lambda n: (n, 0, 0)),
        scratch_shapes=[pltpu.VMEM((R_in, _C1), compute_dtype)],
        compiler_params=pltpu.CompilerParams(
            dimension_semantics=("parallel",)),      # batch across TCs on v7x
        cost_estimate=pl.CostEstimate(
            flops=flops, transcendentals=0, bytes_accessed=bytes_accessed),
    )(x, w1, b1, w2, b2)

    # (N, H*Wp, 65) -> drop the 2 junk columns per row -> NCHW.
    out = out.reshape(N, H, Wp, _C1)[:, :, :W, :]
    return jnp.transpose(out, (0, 3, 1, 2))


def init_params(key):
    """Deterministic synthetic parameters matching PreparationNetwork shapes.

    Weights kept in HWIO layout (kh, kw, Cin, Cout); equivalent to torch's
    (Cout, Cin, kh, kw) transposed to (2, 3, 1, 0)."""
    shapes = {
        "branch1_conv1": (3, 3, 3, 50),
        "branch1_conv2": (3, 3, 50, 50),
        "branch2_conv1": (3, 3, 3, 10),
        "branch2_conv2": (3, 3, 10, 10),
        "branch3_conv1": (3, 3, 3, 5),
        "branch3_conv2": (3, 3, 5, 5),
    }
    params = {}
    for name, shp in sorted(shapes.items()):
        key, kw_, kb_ = jax.random.split(key, 3)
        params[name] = {
            "w": jax.random.normal(kw_, shp, jnp.float32) * 0.1,
            "b": jax.random.normal(kb_, (shp[-1],), jnp.float32) * 0.1,
        }
    return params


def _reference_forward(x_nchw, params):
    """Pure-JAX reference (lax conv) for a correctness check."""
    x = jnp.transpose(x_nchw, (0, 2, 3, 1))

    def conv(h, w, b):
        y = jax.lax.conv_general_dilated(
            h, w, window_strides=(1, 1), padding="SAME",
            dimension_numbers=("NHWC", "HWIO", "NHWC"))
        return jnp.maximum(y + b, 0.0)

    b1 = conv(x, params["branch1_conv1"]["w"], params["branch1_conv1"]["b"])
    b1 = conv(b1, params["branch1_conv2"]["w"], params["branch1_conv2"]["b"])
    b2 = conv(x, params["branch2_conv1"]["w"], params["branch2_conv1"]["b"])
    b2 = conv(b2, params["branch2_conv2"]["w"], params["branch2_conv2"]["b"])
    b3 = conv(x, params["branch3_conv1"]["w"], params["branch3_conv1"]["b"])
    b3 = conv(b3, params["branch3_conv2"]["w"], params["branch3_conv2"]["b"])
    out = jnp.concatenate((b1, b2, b3), axis=-1)
    return jnp.transpose(out, (0, 3, 1, 2))


if __name__ == "__main__":
    key = jax.random.PRNGKey(0)
    key, kx = jax.random.split(key)

    # Small NCHW input consistent with the module: 3 input channels.
    x = jax.random.normal(kx, (2, 3, 16, 16), jnp.float32)
    params = init_params(key)

    out = jax.block_until_ready(preparation_network(x, params))
    assert out.shape == (2, 65, 16, 16), out.shape  # 50 + 10 + 5 channels

    ref = jax.block_until_ready(_reference_forward(x, params))
    err = float(jnp.max(jnp.abs(out - ref)))
    assert jnp.allclose(out, ref, atol=2e-4, rtol=2e-4), err

    print("KERNEL_OK")
</pallas_src>

<mosaic_0001>
module attributes {stable_mosaic.version = 11 : i64} {
  func.func @_prep_net_kernel(%arg0: i32, %arg1: memref<1x342x3xf32, #tpu.memory_space<vmem>>, %arg2: memref<27x65xf32, #tpu.memory_space<vmem>>, %arg3: memref<1x65xf32, #tpu.memory_space<vmem>>, %arg4: memref<585x65xf32, #tpu.memory_space<vmem>>, %arg5: memref<1x65xf32, #tpu.memory_space<vmem>>, %arg6: memref<1x288x65xf32, #tpu.memory_space<vmem>>, %arg7: memref<342x65xf32, #tpu.memory_space<vmem>>) attributes {dimension_semantics = [#tpu.dimension_semantics<parallel>], iteration_bounds = array<i64: 2>, scalar_prefetch = 0 : i64, scratch_operands = 1 : i64, tpu.core_type = #tpu.core_type<tc>, window_params = [{transform_indices = @transform_0, window_bounds = array<i64: 1, 342, 3>}, {pipeline_mode = #tpu.pipeline_mode<synchronous>, transform_indices = @transform_1, window_bounds = array<i64: 27, 65>}, {pipeline_mode = #tpu.pipeline_mode<synchronous>, transform_indices = @transform_2, window_bounds = array<i64: 1, 65>}, {pipeline_mode = #tpu.pipeline_mode<synchronous>, transform_indices = @transform_3, window_bounds = array<i64: 585, 65>}, {pipeline_mode = #tpu.pipeline_mode<synchronous>, transform_indices = @transform_4, window_bounds = array<i64: 1, 65>}, {transform_indices = @transform_5, window_bounds = array<i64: 1, 288, 65>}]} {
    %0 = tpu.iota {dimensions = array<i32: 0>} : vector<288x1xi32>
    %c18_i32 = arith.constant 18 : i32
    %c0_i32 = arith.constant 0 : i32
    %1 = arith.cmpi eq, %c18_i32, %c0_i32 : i32
    %c1_i32 = arith.constant 1 : i32
    %2 = arith.select %1, %c1_i32, %c18_i32 : i32
    %3 = vector.broadcast %2 : i32 to vector<288x1xi32>
    %4 = arith.remsi %0, %3 : vector<288x1xi32>
    %c0_i32_0 = arith.constant 0 : i32
    %5 = vector.broadcast %c0_i32_0 : i32 to vector<288x1xi32>
    %6 = arith.cmpi ne, %4, %5 : vector<288x1xi32>
    %c0_i32_1 = arith.constant 0 : i32
    %7 = vector.broadcast %c0_i32_1 : i32 to vector<288x1xi32>
    %8 = arith.cmpi slt, %4, %7 : vector<288x1xi32>
    %c0_i32_2 = arith.constant 0 : i32
    %9 = arith.cmpi slt, %2, %c0_i32_2 : i32
    %10 = vector.broadcast %9 : i1 to vector<288x1xi1>
    %11 = vector.broadcast %10 : vector<288x1xi1> to vector<288x1xi1>
    %12 = arith.xori %8, %11 : vector<288x1xi1>
    %13 = arith.andi %12, %6 : vector<288x1xi1>
    %14 = vector.broadcast %2 : i32 to vector<288x1xi32>
    %15 = arith.addi %4, %14 : vector<288x1xi32>
    %16 = arith.select %13, %15, %4 : vector<288x1xi1>, vector<288x1xi32>
    %c16_i32 = arith.constant 16 : i32
    %17 = vector.broadcast %c16_i32 : i32 to vector<288x1xi32>
    %18 = arith.cmpi slt, %16, %17 : vector<288x1xi32>
    %c0 = arith.constant 0 : index
    %c0_3 = arith.constant 0 : index
    %c0_4 = arith.constant 0 : index
    %19 = vector.load %arg1[%c0, %c0_3, %c0_4] : memref<1x342x3xf32, #tpu.memory_space<vmem>>, vector<1x342x3xf32>
    %20 = vector.shape_cast %19 : vector<1x342x3xf32> to vector<342x3xf32>
    %21 = vector.extract_strided_slice %20 {offsets = [0, 0], sizes = [288, 3], strides = [1, 1]} : vector<342x3xf32> to vector<288x3xf32>
    %22 = vector.extract_strided_slice %20 {offsets = [1, 0], sizes = [288, 3], strides = [1, 1]} : vector<342x3xf32> to vector<288x3xf32>
    %23 = vector.extract_strided_slice %20 {offsets = [2, 0], sizes = [288, 3], strides = [1, 1]} : vector<342x3xf32> to vector<288x3xf32>
    %24 = vector.extract_strided_slice %20 {offsets = [18, 0], sizes = [288, 3], strides = [1, 1]} : vector<342x3xf32> to vector<288x3xf32>
    %25 = vector.extract_strided_slice %20 {offsets = [19, 0], sizes = [288, 3], strides = [1, 1]} : vector<342x3xf32> to vector<288x3xf32>
    %26 = vector.extract_strided_slice %20 {offsets = [20, 0], sizes = [288, 3], strides = [1, 1]} : vector<342x3xf32> to vector<288x3xf32>
    %27 = vector.extract_strided_slice %20 {offsets = [36, 0], sizes = [288, 3], strides = [1, 1]} : vector<342x3xf32> to vector<288x3xf32>
    %28 = vector.extract_strided_slice %20 {offsets = [37, 0], sizes = [288, 3], strides = [1, 1]} : vector<342x3xf32> to vector<288x3xf32>
    %29 = vector.extract_strided_slice %20 {offsets = [38, 0], sizes = [288, 3], strides = [1, 1]} : vector<342x3xf32> to vector<288x3xf32>
    %30 = tpu.concatenate %21, %22, %23, %24, %25, %26, %27, %28, %29 in 1 : vector<288x3xf32>, vector<288x3xf32>, vector<288x3xf32>, vector<288x3xf32>, vector<288x3xf32>, vector<288x3xf32>, vector<288x3xf32>, vector<288x3xf32>, vector<288x3xf32> -> vector<288x27xf32>
    %c0_5 = arith.constant 0 : index
    %c0_6 = arith.constant 0 : index
    %31 = vector.load %arg2[%c0_5, %c0_6] : memref<27x65xf32, #tpu.memory_space<vmem>>, vector<27x65xf32>
    %cst = arith.constant dense<0.000000e+00> : vector<288x65xf32>
    %32 = tpu.matmul %30, %31, %cst {dimension_numbers = #tpu.dot_dimension_numbers<[1], [0], [0], [1], [0, 0, 1, 1], [], []>} : vector<288x27xf32>, vector<27x65xf32>, vector<288x65xf32> -> vector<288x65xf32>
    %c0_7 = arith.constant 0 : index
    %c0_8 = arith.constant 0 : index
    %33 = vector.load %arg3[%c0_7, %c0_8] : memref<1x65xf32, #tpu.memory_space<vmem>>, vector<1x65xf32>
    %34 = vector.broadcast %33 : vector<1x65xf32> to vector<288x65xf32>
    %35 = arith.addf %32, %34 : vector<288x65xf32>
    %cst_9 = arith.constant 0.000000e+00 : f32
    %36 = vector.broadcast %cst_9 : f32 to vector<288x65xf32>
    %37 = arith.maximumf %35, %36 : vector<288x65xf32>
    %cst_10 = arith.constant 0.000000e+00 : f32
    %38 = vector.shape_cast %18 : vector<288x1xi1> to vector<288x1xi1>
    %39 = vector.broadcast %38 : vector<288x1xi1> to vector<288x65xi1>
    %40 = vector.broadcast %cst_10 : f32 to vector<288x65xf32>
    %41 = arith.select %39, %37, %40 : vector<288x65xi1>, vector<288x65xf32>
    %cst_11 = arith.constant 0.000000e+00 : f32
    %42 = vector.broadcast %cst_11 : f32 to vector<342x65xf32>
    %c0_12 = arith.constant 0 : index
    %c0_13 = arith.constant 0 : index
    %43 = vector.load %arg7[%c0_12, %c0_13] : memref<342x65xf32, #tpu.memory_space<vmem>>, vector<342x65xf32>
    tpu.vector_store %arg7[%c0_12, %c0_13], %42 {strides = array<i32>} : memref<342x65xf32, #tpu.memory_space<vmem>>, vector<342x65xf32>,
    %c19 = arith.constant 19 : index
    %c0_14 = arith.constant 0 : index
    %44 = vector.load %arg7[%c19, %c0_14] : memref<342x65xf32, #tpu.memory_space<vmem>>, vector<288x65xf32>
    tpu.vector_store %arg7[%c19, %c0_14], %41 {strides = array<i32>} : memref<342x65xf32, #tpu.memory_space<vmem>>, vector<288x65xf32>,
    %c0_15 = arith.constant 0 : index
    %c0_16 = arith.constant 0 : index
    %45 = vector.load %arg7[%c0_15, %c0_16] : memref<342x65xf32, #tpu.memory_space<vmem>>, vector<342x65xf32>
    %46 = vector.extract_strided_slice %45 {offsets = [0, 0], sizes = [288, 65], strides = [1, 1]} : vector<342x65xf32> to vector<288x65xf32>
    %47 = vector.extract_strided_slice %45 {offsets = [1, 0], sizes = [288, 65], strides = [1, 1]} : vector<342x65xf32> to vector<288x65xf32>
    %48 = vector.extract_strided_slice %45 {offsets = [2, 0], sizes = [288, 65], strides = [1, 1]} : vector<342x65xf32> to vector<288x65xf32>
    %49 = vector.extract_strided_slice %45 {offsets = [18, 0], sizes = [288, 65], strides = [1, 1]} : vector<342x65xf32> to vector<288x65xf32>
    %50 = vector.extract_strided_slice %45 {offsets = [19, 0], sizes = [288, 65], strides = [1, 1]} : vector<342x65xf32> to vector<288x65xf32>
    %51 = vector.extract_strided_slice %45 {offsets = [20, 0], sizes = [288, 65], strides = [1, 1]} : vector<342x65xf32> to vector<288x65xf32>
    %52 = vector.extract_strided_slice %45 {offsets = [36, 0], sizes = [288, 65], strides = [1, 1]} : vector<342x65xf32> to vector<288x65xf32>
    %53 = vector.extract_strided_slice %45 {offsets = [37, 0], sizes = [288, 65], strides = [1, 1]} : vector<342x65xf32> to vector<288x65xf32>
    %54 = vector.extract_strided_slice %45 {offsets = [38, 0], sizes = [288, 65], strides = [1, 1]} : vector<342x65xf32> to vector<288x65xf32>
    %55 = tpu.concatenate %46, %47, %48, %49, %50, %51, %52, %53, %54 in 1 : vector<288x65xf32>, vector<288x65xf32>, vector<288x65xf32>, vector<288x65xf32>, vector<288x65xf32>, vector<288x65xf32>, vector<288x65xf32>, vector<288x65xf32>, vector<288x65xf32> -> vector<288x585xf32>
    %c0_17 = arith.constant 0 : index
    %c0_18 = arith.constant 0 : index
    %56 = vector.load %arg4[%c0_17, %c0_18] : memref<585x65xf32, #tpu.memory_space<vmem>>, vector<585x65xf32>
    %cst_19 = arith.constant dense<0.000000e+00> : vector<288x65xf32>
    %57 = tpu.matmul %55, %56, %cst_19 {dimension_numbers = #tpu.dot_dimension_numbers<[1], [0], [0], [1], [0, 0, 1, 1], [], []>} : vector<288x585xf32>, vector<585x65xf32>, vector<288x65xf32> -> vector<288x65xf32>
    %c0_20 = arith.constant 0 : index
    %c0_21 = arith.constant 0 : index
    %58 = vector.load %arg5[%c0_20, %c0_21] : memref<1x65xf32, #tpu.memory_space<vmem>>, vector<1x65xf32>
    %59 = vector.broadcast %58 : vector<1x65xf32> to vector<288x65xf32>
    %60 = arith.addf %57, %59 : vector<288x65xf32>
    %cst_22 = arith.constant 0.000000e+00 : f32
    %61 = vector.broadcast %cst_22 : f32 to vector<288x65xf32>
    %62 = arith.maximumf %60, %61 : vector<288x65xf32>
    %c0_23 = arith.constant 0 : index
    %c0_24 = arith.constant 0 : index
    %c0_25 = arith.constant 0 : index
    %63 = vector.load %arg6[%c0_23, %c0_24, %c0_25] : memref<1x288x65xf32, #tpu.memory_space<vmem>>, vector<1x288x65xf32>
    %64 = vector.shape_cast %63 : vector<1x288x65xf32> to vector<288x65xf32>
    %65 = vector.shape_cast %62 : vector<288x65xf32> to vector<1x288x65xf32>
    tpu.vector_store %arg6[%c0_23, %c0_24, %c0_25], %65 {strides = array<i32>} : memref<1x288x65xf32, #tpu.memory_space<vmem>>, vector<1x288x65xf32>,
    return
  }
  func.func @transform_0(%arg0: i32) -> (i32, i32, i32) {
    %c0_i32 = arith.constant 0 : i32
    %c0_i32_0 = arith.constant 0 : i32
    %c0_i32_1 = arith.constant 0 : i32
    return %arg0, %c0_i32, %c0_i32_0 : i32, i32, i32
  }
  func.func @transform_1(%arg0: i32) -> (i32, i32) {
    %c0_i32 = arith.constant 0 : i32
    %c0_i32_0 = arith.constant 0 : i32
    %c0_i32_1 = arith.constant 0 : i32
    return %c0_i32, %c0_i32_0 : i32, i32
  }
  func.func @transform_2(%arg0: i32) -> (i32, i32) {
    %c0_i32 = arith.constant 0 : i32
    %c0_i32_0 = arith.constant 0 : i32
    %c0_i32_1 = arith.constant 0 : i32
    return %c0_i32, %c0_i32_0 : i32, i32
  }
  func.func @transform_3(%arg0: i32) -> (i32, i32) {
    %c0_i32 = arith.constant 0 : i32
    %c0_i32_0 = arith.constant 0 : i32
    %c0_i32_1 = arith.constant 0 : i32
    return %c0_i32, %c0_i32_0 : i32, i32
  }
  func.func @transform_4(%arg0: i32) -> (i32, i32) {
    %c0_i32 = arith.constant 0 : i32
    %c0_i32_0 = arith.constant 0 : i32
    %c0_i32_1 = arith.constant 0 : i32
    return %c0_i32, %c0_i32_0 : i32, i32
  }
  func.func @transform_5(%arg0: i32) -> (i32, i32, i32) {
    %c0_i32 = arith.constant 0 : i32
    %c0_i32_0 = arith.constant 0 : i32
    %c0_i32_1 = arith.constant 0 : i32
    return %arg0, %c0_i32, %c0_i32_0 : i32, i32, i32
  }
}

</mosaic_0001>

<llo_original>
// kernel: preparation_network.1
$region0: #{preparation_network.1}
  #allocation0 [shape = 'u32[]', space=smem, size = 0x4, offset = 0x4, fixed_abs, tag = 'smem constant byte address 0x4 - core index']
  #allocation1 [shape = 'u32[72,128]{1,0:T(1,128)}', space=vmem, size = 0x9000, scoped, tag = 'internal scratch']
  #allocation2 [shape = 'f32[342,65]{1,0:T(8,128)}', space=vmem, size = 0x2b000, scoped, tag = 'scratch operand']
  %s0 = inlined_call_operand.vmem [shape: f32[2,342,3], index: 0, kind: input, shape index: {}]
  %s1 = inlined_call_operand.vmem [shape: f32[27,65], index: 1, kind: input, shape index: {}]
  %s2 = inlined_call_operand.vmem [shape: f32[1,65], index: 2, kind: input, shape index: {}]
  %s3 = inlined_call_operand.vmem [shape: f32[585,65], index: 3, kind: input, shape index: {}]
  %s4 = inlined_call_operand.vmem [shape: f32[1,65], index: 4, kind: input, shape index: {}]
  %s5 = inlined_call_operand.vmem [shape: f32[2,288,65], index: 5, kind: output, shape index: {}]
  %s6 = sld [smem:[#allocation0]]
  $region53: #{preparation_network.1} parent=0
    _
  %s8 = ssub.s32 1, %s6
  %s9 = scalar_select 0, %s8, %s6
  loop: start=0, step=1, limit=4
  $region2: #{preparation_network.1} parent=0 // loop_pre_header
    _
  $region3: #{preparation_network.1} parent=0 // loop_header
    %s11 = sphi 0, %s15
    %p12 = scmp.ge.s32.totalorder %s11, 4
    %s21 = sphi 0, %s23
    %s24 = sphi 0, %s21
    %s25 = sphi 0, %s24
    %s41 = sphi 0, %s25
    %s45 = sphi 0, %s45
    %s47 = sphi 0, %s45
    %s48 = sphi 0, %s47
    %s62 = sphi 0, %s48
    %s66 = sphi 0, %s66
    %s68 = sphi 0, %s66
    %s69 = sphi 0, %s68
    %s83 = sphi 0, %s69
    %s87 = sphi 0, %s87
    %s89 = sphi 0, %s87
    %s90 = sphi 0, %s89
    %s104 = sphi 0, %s90
    %s108 = sphi 0, %s108
    %s110 = sphi 0, %s108
    %s111 = sphi 0, %s110
    %s125 = sphi 0, %s111
    %s131 = sphi 0, %s133
    %s134 = sphi 0, %s131
    %s135 = sphi 0, %s134
    %s151 = sphi 0, %s135
  $region4: #{preparation_network.1} parent=0 // loop_header_branch
    %14 = sbr.rel (%p12) target = $region8
  $region5: #{preparation_network.1} parent=0 // loop_body
    %s16 = ssub.s32 %s11, 1
    %s17 = ssub.s32 %s11, 2
    %s18 = sadd.s32 %s11, 1
    %s19 = ssub.s32 %s11, %s18
    %p20 = scmp.eq.s32.totalorder %s19, 0
    %s22 = sadd.s32 %s21, 1
    %s23 = scalar_select %p20, %s21, %s22
    %p26 = pneg %p20
    %p27 = scmp.eq.s32.totalorder %s11, 1
    %p28 = por %p26, %p27
    %p29 = scmp.ne.s32.totalorder %s21, %s24
    %p30 = scmp.eq.s32.totalorder %s11, 0
    %p31 = por %p29, %p30
    %p32 = scmp.ne.s32.totalorder %s21, %s24
    %p33 = scmp.eq.s32.totalorder %s16, 1
    %p34 = por %p32, %p33
    %p35 = scmp.ne.s32.totalorder %s24, %s25
    %p36 = scmp.eq.s32.totalorder %s16, 0
    %p37 = por %p35, %p36
    %p38 = scmp.ne.s32.totalorder %s24, %s25
    %p39 = scmp.eq.s32.totalorder %s17, 1
    %p40 = por %p38, %p39
    %p42 = scmp.ne.s32.totalorder %s25, %s41
    %p43 = scmp.eq.s32.totalorder %s17, 0
    %p44 = por %p42, %p43
    %s46 = sadd.s32 %s45, 1
    %p49 = scmp.eq.s32.totalorder %s11, 1
    %p50 = scmp.ne.s32.totalorder %s45, %s47
    %p51 = scmp.eq.s32.totalorder %s11, 0
    %p52 = por %p50, %p51
    %p53 = scmp.ne.s32.totalorder %s45, %s47
    %p54 = scmp.eq.s32.totalorder %s16, 1
    %p55 = por %p53, %p54
    %p56 = scmp.ne.s32.totalorder %s47, %s48
    %p57 = scmp.eq.s32.totalorder %s16, 0
    %p58 = por %p56, %p57
    %p59 = scmp.ne.s32.totalorder %s47, %s48
    %p60 = scmp.eq.s32.totalorder %s17, 1
    %p61 = por %p59, %p60
    %p63 = scmp.ne.s32.totalorder %s48, %s62
    %p64 = scmp.eq.s32.totalorder %s17, 0
    %p65 = por %p63, %p64
    %s67 = sadd.s32 %s66, 1
    %p70 = scmp.eq.s32.totalorder %s11, 1
    %p71 = scmp.ne.s32.totalorder %s66, %s68
    %p72 = scmp.eq.s32.totalorder %s11, 0
    %p73 = por %p71, %p72
    %p74 = scmp.ne.s32.totalorder %s66, %s68
    %p75 = scmp.eq.s32.totalorder %s16, 1
    %p76 = por %p74, %p75
    %p77 = scmp.ne.s32.totalorder %s68, %s69
    %p78 = scmp.eq.s32.totalorder %s16, 0
    %p79 = por %p77, %p78
    %p80 = scmp.ne.s32.totalorder %s68, %s69
    %p81 = scmp.eq.s32.totalorder %s17, 1
    %p82 = por %p80, %p81
    %p84 = scmp.ne.s32.totalorder %s69, %s83
    %p85 = scmp.eq.s32.totalorder %s17, 0
    %p86 = por %p84, %p85
    %s88 = sadd.s32 %s87, 1
    %p91 = scmp.eq.s32.totalorder %s11, 1
    %p92 = scmp.ne.s32.totalorder %s87, %s89
    %p93 = scmp.eq.s32.totalorder %s11, 0
    %p94 = por %p92, %p93
    %p95 = scmp.ne.s32.totalorder %s87, %s89
    %p96 = scmp.eq.s32.totalorder %s16, 1
    %p97 = por %p95, %p96
    %p98 = scmp.ne.s32.totalorder %s89, %s90
    %p99 = scmp.eq.s32.totalorder %s16, 0
    %p100 = por %p98, %p99
    %p101 = scmp.ne.s32.totalorder %s89, %s90
    %p102 = scmp.eq.s32.totalorder %s17, 1
    %p103 = por %p101, %p102
    %p105 = scmp.ne.s32.totalorder %s90, %s104
    %p106 = scmp.eq.s32.totalorder %s17, 0
    %p107 = por %p105, %p106
    %s109 = sadd.s32 %s108, 1
    %p112 = scmp.eq.s32.totalorder %s11, 1
    %p113 = scmp.ne.s32.totalorder %s108, %s110
    %p114 = scmp.eq.s32.totalorder %s11, 0
    %p115 = por %p113, %p114
    %p116 = scmp.ne.s32.totalorder %s108, %s110
    %p117 = scmp.eq.s32.totalorder %s16, 1
    %p118 = por %p116, %p117
    %p119 = scmp.ne.s32.totalorder %s110, %s111
    %p120 = scmp.eq.s32.totalorder %s16, 0
    %p121 = por %p119, %p120
    %p122 = scmp.ne.s32.totalorder %s110, %s111
    %p123 = scmp.eq.s32.totalorder %s17, 1
    %p124 = por %p122, %p123
    %p126 = scmp.ne.s32.totalorder %s111, %s125
    %p127 = scmp.eq.s32.totalorder %s17, 0
    %p128 = por %p126, %p127
    %s129 = ssub.s32 %s11, %s18
    %p130 = scmp.eq.s32.totalorder %s129, 0
    %s132 = sadd.s32 %s131, 1
    %s133 = scalar_select %p130, %s131, %s132
    %p136 = pneg %p130
    %p137 = scmp.eq.s32.totalorder %s11, 1
    %p138 = por %p136, %p137
    %p139 = scmp.ne.s32.totalorder %s131, %s134
    %p140 = scmp.eq.s32.totalorder %s11, 0
    %p141 = por %p139, %p140
    %p142 = scmp.ne.s32.totalorder %s131, %s134
    %p143 = scmp.eq.s32.totalorder %s16, 1
    %p144 = por %p142, %p143
    %p145 = scmp.ne.s32.totalorder %s134, %s135
    %p146 = scmp.eq.s32.totalorder %s16, 0
    %p147 = por %p145, %p146
    %p148 = scmp.ne.s32.totalorder %s134, %s135
    %p149 = scmp.eq.s32.totalorder %s17, 1
    %p150 = por %p148, %p149
    %p152 = scmp.ne.s32.totalorder %s135, %s151
    %p153 = scmp.eq.s32.totalorder %s17, 0
    %p154 = por %p152, %p153
    %p155 = scmp.le.s32.totalorder 1, %s11
    %p156 = scmp.lt.s32.totalorder %s11, 3
    %p157 = pnand %p155, %p156
    %p158 = pneg %p157
    // Predicated region
    $region9: #{preparation_network.1} parent=5 // pred_check
      _
    $region10: #{preparation_network.1} parent=5 // pred_check_branch
      %160 = sbr.rel (%p157) target = $region12
    $region11: #{preparation_network.1} parent=5 // pred_region
      %s161 = ssub.s32 %s11, 1
      // Predicated region
      $region13: #{preparation_network.1} parent=11 // pred_check
        %p162 = pneg %p58
      $region14: #{preparation_network.1} parent=11 // pred_check_branch
        %164 = sbr.rel (%p162) target = $region16
      $region15: #{preparation_network.1} parent=11 // pred_region
        _
      $region16: #{preparation_network.1} parent=11 // pred_fallthru
        _
      // Predicated region
      $region17: #{preparation_network.1} parent=11 // pred_check
        %p165 = pneg %p79
      $region18: #{preparation_network.1} parent=11 // pred_check_branch
        %167 = sbr.rel (%p165) target = $region20
      $region19: #{preparation_network.1} parent=11 // pred_region
        _
      $region20: #{preparation_network.1} parent=11 // pred_fallthru
        _
      // Predicated region
      $region21: #{preparation_network.1} parent=11 // pred_check
        %p168 = pneg %p100
      $region22: #{preparation_network.1} parent=11 // pred_check_branch
        %170 = sbr.rel (%p168) target = $region24
      $region23: #{preparation_network.1} parent=11 // pred_region
        _
      $region24: #{preparation_network.1} parent=11 // pred_fallthru
        _
      // Predicated region
      $region25: #{preparation_network.1} parent=11 // pred_check
        %p171 = pneg %p121
      $region26: #{preparation_network.1} parent=11 // pred_check_branch
        %173 = sbr.rel (%p171) target = $region28
      $region27: #{preparation_network.1} parent=11 // pred_region
        _
      $region28: #{preparation_network.1} parent=11 // pred_fallthru
        _
    $region12: #{preparation_network.1} parent=5 // pred_fallthru
      _
    %p174 = scmp.lt.s32.totalorder %s11, 2
    // Predicated region
    $region29: #{preparation_network.1} parent=5 // pred_check
      %p175 = pneg %p174
    $region30: #{preparation_network.1} parent=5 // pred_check_branch
      %177 = sbr.rel (%p175) target = $region32
    $region31: #{preparation_network.1} parent=5 // pred_region
      // Predicated region
      $region33: #{preparation_network.1} parent=31 // pred_check
        %p178 = pneg %p31
      $region34: #{preparation_network.1} parent=31 // pred_check_branch
        %180 = sbr.rel (%p178) target = $region36
      $region35: #{preparation_network.1} parent=31 // pred_region
        %p181 = scmp.lt.s32.totalorder %s11, 1
        %s182 = scalar_select %p181, %s11, 1
        %s183 = smul.addr %s182, 43
        %s184 = smul.addr %s183, 8
        %s185 = scalar_lea.vmem %s0, %s184
      $region36: #{preparation_network.1} parent=31 // pred_fallthru
        _
    $region32: #{preparation_network.1} parent=5 // pred_fallthru
      _
    %p186 = scmp.le.s32.totalorder 1, %s11
    %p187 = scmp.lt.s32.totalorder %s11, 3
    %p188 = pnand %p186, %p187
    %p189 = pneg %p188
    // Predicated region
    $region37: #{preparation_network.1} parent=5 // pred_check
      _
    $region38: #{preparation_network.1} parent=5 // pred_check_branch
      %191 = sbr.rel (%p188) target = $region40
    $region39: #{preparation_network.1} parent=5 // pred_region
      %s192 = ssub.s32 %s11, 1
      %p193 = scmp.lt.s32.totalorder %s16, 1
      %s194 = scalar_select %p193, %s16, 1
      %s195 = smul.addr %s194, 43
      %s196 = smul.addr %s195, 8
      %s197 = scalar_lea.vmem %s0, %s196
      %p198 = pneg %p37
      %p199 = pneg %p34
      %p200 = pneg %p58
      %p201 = pneg %p55
      %p202 = pneg %p79
      %p203 = pneg %p76
      %p204 = pneg %p100
      %p205 = pneg %p97
      %p206 = pneg %p121
      %p207 = pneg %p118
      %p208 = pneg %p147
      %p209 = pneg %p144
      %p210 = scmp.lt.s32.totalorder %s16, 1
      %s211 = scalar_select %p210, %s16, 1
      %s212 = smul.addr %s211, 36
      %s213 = smul.addr %s212, 8
      %s214 = scalar_lea.vmem %s5, %s213
      %p215 = scmp.lt.s32.totalorder %s16, 1
      %s216 = scalar_select %p215, %s16, 1
      %s217 = smul.addr %s216, 43
      %s218 = smul.addr %s217, 8
      %s219 = scalar_lea.vmem %s0, %s218
      %p220 = scmp.lt.s32.totalorder %s16, 1
      %s221 = scalar_select %p220, %s16, 1
      %s222 = smul.addr %s221, 36
      %s223 = smul.addr %s222, 8
      %s224 = scalar_lea.vmem %s5, %s223
      %v225 = vlaneseq
      %v226 = vshrl.u32 %v225, 7
      %v227 = vadd.s32 %v226, 8
      %v228 = vadd.s32 %v226, 16
      %v229 = vadd.s32 %v226, 24
      %v230 = vadd.s32 %v226, 32
      %v231 = vadd.s32 %v226, 40
      %v232 = vadd.s32 %v226, 48
      %v233 = vadd.s32 %v226, 56
      %v234 = vadd.s32 %v226, 64
      %v235 = vadd.s32 %v226, 72
      %v236 = vadd.s32 %v226, 80
      %v237 = vadd.s32 %v226, 88
      %v238 = vadd.s32 %v226, 96
      %v239 = vadd.s32 %v226, 104
      %v240 = vadd.s32 %v226, 112
      %v241 = vadd.s32 %v226, 120
      %v242 = vadd.s32 %v226, 128
      %v243 = vadd.s32 %v226, 136
      %v244 = vadd.s32 %v226, 144
      %v245 = vadd.s32 %v226, 152
      %v246 = vadd.s32 %v226, 160
      %v247 = vadd.s32 %v226, 168
      %v248 = vadd.s32 %v226, 176
      %v249 = vadd.s32 %v226, 184
      %v250 = vadd.s32 %v226, 192
      %v251 = vadd.s32 %v226, 200
      %v252 = vadd.s32 %v226, 208
      %v253 = vadd.s32 %v226, 216
      %v254 = vadd.s32 %v226, 224
      %v255 = vadd.s32 %v226, 232
      %v256 = vadd.s32 %v226, 240
      %v257 = vadd.s32 %v226, 248
      %v258 = vadd.s32 %v226, 256
      %v259 = vadd.s32 %v226, 264
      %v260 = vadd.s32 %v226, 272
      %v261 = vadd.s32 %v226, 280
      %vm262 = vcmp.lt.s32.totalorder %v226, 0
      %v263 = vsub.s32 0, %v226
      %v264 = vsel %vm262, %v263, %v226
      %v265 = vand.u32 %v264, 65535
      %v266 = vshrl.u32 %v264, 16
      %v268 = vmul.u32 %v265, 14564
      %v269 = vmul.u32 %v265, 58254
      %v270 = vmul.u32 %v266, 14564
      %v271 = vmul.u32 %v266, 58254
      %v272 = vshll.u32 %v269, 16
      %v273 = vshrl.u32 %v269, 16
      %v274 = vshll.u32 %v270, 16
      %v275 = vshrl.u32 %v270, 16
      %vm276 = vc.u32 %v268, %v272
      %v277 = vsel %vm276, 1, 0
      %v278 = vadd.s32 %v268, %v272
      %v279 = vadd.s32 %v271, %v277
      %vm280 = vc.u32 %v278, %v274
      %v281 = vsel %vm280, 1, 0
      %v282 = vadd.s32 %v278, %v274
      %v283 = vadd.s32 %v279, %v281
      %v284 = vadd.s32 %v283, %v273
      %v285 = vadd.s32 %v284, %v275
      %v286 = vshrl.u32 %v285, 4
      %v287 = vmul.u32 %v286, 18
      %v288 = vsub.s32 %v264, %v287
      %v289 = vsub.s32 0, %v288
      %v290 = vsel %vm262, %v289, %v288
      %vm291 = vcmp.lt.s32.totalorder %v227, 0
      %v292 = vsub.s32 0, %v227
      %v293 = vsel %vm291, %v292, %v227
      %v294 = vand.u32 %v293, 65535
      %v295 = vshrl.u32 %v293, 16
      %v297 = vmul.u32 %v294, 14564
      %v298 = vmul.u32 %v294, 58254
      %v299 = vmul.u32 %v295, 14564
      %v300 = vmul.u32 %v295, 58254
      %v301 = vshll.u32 %v298, 16
      %v302 = vshrl.u32 %v298, 16
      %v303 = vshll.u32 %v299, 16
      %v304 = vshrl.u32 %v299, 16
      %vm305 = vc.u32 %v297, %v301
      %v306 = vsel %vm305, 1, 0
      %v307 = vadd.s32 %v297, %v301
      %v308 = vadd.s32 %v300, %v306
      %vm309 = vc.u32 %v307, %v303
      %v310 = vsel %vm309, 1, 0
      %v311 = vadd.s32 %v307, %v303
      %v312 = vadd.s32 %v308, %v310
      %v313 = vadd.s32 %v312, %v302
      %v314 = vadd.s32 %v313, %v304
      %v315 = vshrl.u32 %v314, 4
      %v316 = vmul.u32 %v315, 18
      %v317 = vsub.s32 %v293, %v316
      %v318 = vsub.s32 0, %v317
      %v319 = vsel %vm291, %v318, %v317
      %vm320 = vcmp.lt.s32.totalorder %v228, 0
      %v321 = vsub.s32 0, %v228
      %v322 = vsel %vm320, %v321, %v228
      %v323 = vand.u32 %v322, 65535
      %v324 = vshrl.u32 %v322, 16
      %v326 = vmul.u32 %v323, 14564
      %v327 = vmul.u32 %v323, 58254
      %v328 = vmul.u32 %v324, 14564
      %v329 = vmul.u32 %v324, 58254
      %v330 = vshll.u32 %v327, 16
      %v331 = vshrl.u32 %v327, 16
      %v332 = vshll.u32 %v328, 16
      %v333 = vshrl.u32 %v328, 16
      %vm334 = vc.u32 %v326, %v330
      %v335 = vsel %vm334, 1, 0
      %v336 = vadd.s32 %v326, %v330
      %v337 = vadd.s32 %v329, %v335
      %vm338 = vc.u32 %v336, %v332
      %v339 = vsel %vm338, 1, 0
      %v340 = vadd.s32 %v336, %v332
      %v341 = vadd.s32 %v337, %v339
      %v342 = vadd.s32 %v341, %v331
      %v343 = vadd.s32 %v342, %v333
      %v344 = vshrl.u32 %v343, 4
      %v345 = vmul.u32 %v344, 18
      %v346 = vsub.s32 %v322, %v345
      %v347 = vsub.s32 0, %v346
      %v348 = vsel %vm320, %v347, %v346
      %vm349 = vcmp.lt.s32.totalorder %v229, 0
      %v350 = vsub.s32 0, %v229
      %v351 = vsel %vm349, %v350, %v229
      %v352 = vand.u32 %v351, 65535
      %v353 = vshrl.u32 %v351, 16
      %v355 = vmul.u32 %v352, 14564
      %v356 = vmul.u32 %v352, 58254
      %v357 = vmul.u32 %v353, 14564
      %v358 = vmul.u32 %v353, 58254
      %v359 = vshll.u32 %v356, 16
      %v360 = vshrl.u32 %v356, 16
      %v361 = vshll.u32 %v357, 16
      %v362 = vshrl.u32 %v357, 16
      %vm363 = vc.u32 %v355, %v359
      %v364 = vsel %vm363, 1, 0
      %v365 = vadd.s32 %v355, %v359
      %v366 = vadd.s32 %v358, %v364
      %vm367 = vc.u32 %v365, %v361
      %v368 = vsel %vm367, 1, 0
      %v369 = vadd.s32 %v365, %v361
      %v370 = vadd.s32 %v366, %v368
      %v371 = vadd.s32 %v370, %v360
      %v372 = vadd.s32 %v371, %v362
      %v373 = vshrl.u32 %v372, 4
      %v374 = vmul.u32 %v373, 18
      %v375 = vsub.s32 %v351, %v374
      %v376 = vsub.s32 0, %v375
      %v377 = vsel %vm349, %v376, %v375
      %vm378 = vcmp.lt.s32.totalorder %v230, 0
      %v379 = vsub.s32 0, %v230
      %v380 = vsel %vm378, %v379, %v230
      %v381 = vand.u32 %v380, 65535
      %v382 = vshrl.u32 %v380, 16
      %v384 = vmul.u32 %v381, 14564
      %v385 = vmul.u32 %v381, 58254
      %v386 = vmul.u32 %v382, 14564
      %v387 = vmul.u32 %v382, 58254
      %v388 = vshll.u32 %v385, 16
      %v389 = vshrl.u32 %v385, 16
      %v390 = vshll.u32 %v386, 16
      %v391 = vshrl.u32 %v386, 16
      %vm392 = vc.u32 %v384, %v388
      %v393 = vsel %vm392, 1, 0
      %v394 = vadd.s32 %v384, %v388
      %v395 = vadd.s32 %v387, %v393
      %vm396 = vc.u32 %v394, %v390
      %v397 = vsel %vm396, 1, 0
      %v398 = vadd.s32 %v394, %v390
      %v399 = vadd.s32 %v395, %v397
      %v400 = vadd.s32 %v399, %v389
      %v401 = vadd.s32 %v400, %v391
      %v402 = vshrl.u32 %v401, 4
      %v403 = vmul.u32 %v402, 18
      %v404 = vsub.s32 %v380, %v403
      %v405 = vsub.s32 0, %v404
      %v406 = vsel %vm378, %v405, %v404
      %vm407 = vcmp.lt.s32.totalorder %v231, 0
      %v408 = vsub.s32 0, %v231
      %v409 = vsel %vm407, %v408, %v231
      %v410 = vand.u32 %v409, 65535
      %v411 = vshrl.u32 %v409, 16
      %v413 = vmul.u32 %v410, 14564
      %v414 = vmul.u32 %v410, 58254
      %v415 = vmul.u32 %v411, 14564
      %v416 = vmul.u32 %v411, 58254
      %v417 = vshll.u32 %v414, 16
      %v418 = vshrl.u32 %v414, 16
      %v419 = vshll.u32 %v415, 16
      %v420 = vshrl.u32 %v415, 16
      %vm421 = vc.u32 %v413, %v417
      %v422 = vsel %vm421, 1, 0
      %v423 = vadd.s32 %v413, %v417
      %v424 = vadd.s32 %v416, %v422
      %vm425 = vc.u32 %v423, %v419
      %v426 = vsel %vm425, 1, 0
      %v427 = vadd.s32 %v423, %v419
      %v428 = vadd.s32 %v424, %v426
      %v429 = vadd.s32 %v428, %v418
      %v430 = vadd.s32 %v429, %v420
      %v431 = vshrl.u32 %v430, 4
      %v432 = vmul.u32 %v431, 18
      %v433 = vsub.s32 %v409, %v432
      %v434 = vsub.s32 0, %v433
      %v435 = vsel %vm407, %v434, %v433
      %vm436 = vcmp.lt.s32.totalorder %v232, 0
      %v437 = vsub.s32 0, %v232
      %v438 = vsel %vm436, %v437, %v232
      %v439 = vand.u32 %v438, 65535
      %v440 = vshrl.u32 %v438, 16
      %v442 = vmul.u32 %v439, 14564
      %v443 = vmul.u32 %v439, 58254
      %v444 = vmul.u32 %v440, 14564
      %v445 = vmul.u32 %v440, 58254
      %v446 = vshll.u32 %v443, 16
      %v447 = vshrl.u32 %v443, 16
      %v448 = vshll.u32 %v444, 16
      %v449 = vshrl.u32 %v444, 16
      %vm450 = vc.u32 %v442, %v446
      %v451 = vsel %vm450, 1, 0
      %v452 = vadd.s32 %v442, %v446
      %v453 = vadd.s32 %v445, %v451
      %vm454 = vc.u32 %v452, %v448
      %v455 = vsel %vm454, 1, 0
      %v456 = vadd.s32 %v452, %v448
      %v457 = vadd.s32 %v453, %v455
      %v458 = vadd.s32 %v457, %v447
      %v459 = vadd.s32 %v458, %v449
      %v460 = vshrl.u32 %v459, 4
      %v461 = vmul.u32 %v460, 18
      %v462 = vsub.s32 %v438, %v461
      %v463 = vsub.s32 0, %v462
      %v464 = vsel %vm436, %v463, %v462
      %vm465 = vcmp.lt.s32.totalorder %v233, 0
      %v466 = vsub.s32 0, %v233
      %v467 = vsel %vm465, %v466, %v233
      %v468 = vand.u32 %v467, 65535
      %v469 = vshrl.u32 %v467, 16
      %v471 = vmul.u32 %v468, 14564
      %v472 = vmul.u32 %v468, 58254
      %v473 = vmul.u32 %v469, 14564
      %v474 = vmul.u32 %v469, 58254
      %v475 = vshll.u32 %v472, 16
      %v476 = vshrl.u32 %v472, 16
      %v477 = vshll.u32 %v473, 16
      %v478 = vshrl.u32 %v473, 16
      %vm479 = vc.u32 %v471, %v475
      %v480 = vsel %vm479, 1, 0
      %v481 = vadd.s32 %v471, %v475
      %v482 = vadd.s32 %v474, %v480
      %vm483 = vc.u32 %v481, %v477
      %v484 = vsel %vm483, 1, 0
      %v485 = vadd.s32 %v481, %v477
      %v486 = vadd.s32 %v482, %v484
      %v487 = vadd.s32 %v486, %v476
      %v488 = vadd.s32 %v487, %v478
      %v489 = vshrl.u32 %v488, 4
      %v490 = vmul.u32 %v489, 18
      %v491 = vsub.s32 %v467, %v490
      %v492 = vsub.s32 0, %v491
      %v493 = vsel %vm465, %v492, %v491
      %vm494 = vcmp.lt.s32.totalorder %v234, 0
      %v495 = vsub.s32 0, %v234
      %v496 = vsel %vm494, %v495, %v234
      %v497 = vand.u32 %v496, 65535
      %v498 = vshrl.u32 %v496, 16
      %v500 = vmul.u32 %v497, 14564
      %v501 = vmul.u32 %v497, 58254
      %v502 = vmul.u32 %v498, 14564
      %v503 = vmul.u32 %v498, 58254
      %v504 = vshll.u32 %v501, 16
      %v505 = vshrl.u32 %v501, 16
      %v506 = vshll.u32 %v502, 16
      %v507 = vshrl.u32 %v502, 16
      %vm508 = vc.u32 %v500, %v504
      %v509 = vsel %vm508, 1, 0
      %v510 = vadd.s32 %v500, %v504
      %v511 = vadd.s32 %v503, %v509
      %vm512 = vc.u32 %v510, %v506
      %v513 = vsel %vm512, 1, 0
      %v514 = vadd.s32 %v510, %v506
      %v515 = vadd.s32 %v511, %v513
      %v516 = vadd.s32 %v515, %v505
      %v517 = vadd.s32 %v516, %v507
      %v518 = vshrl.u32 %v517, 4
      %v519 = vmul.u32 %v518, 18
      %v520 = vsub.s32 %v496, %v519
      %v521 = vsub.s32 0, %v520
      %v522 = vsel %vm494, %v521, %v520
      %vm523 = vcmp.lt.s32.totalorder %v235, 0
      %v524 = vsub.s32 0, %v235
      %v525 = vsel %vm523, %v524, %v235
      %v526 = vand.u32 %v525, 65535
      %v527 = vshrl.u32 %v525, 16
      %v529 = vmul.u32 %v526, 14564
      %v530 = vmul.u32 %v526, 58254
      %v531 = vmul.u32 %v527, 14564
      %v532 = vmul.u32 %v527, 58254
      %v533 = vshll.u32 %v530, 16
      %v534 = vshrl.u32 %v530, 16
      %v535 = vshll.u32 %v531, 16
      %v536 = vshrl.u32 %v531, 16
      %vm537 = vc.u32 %v529, %v533
      %v538 = vsel %vm537, 1, 0
      %v539 = vadd.s32 %v529, %v533
      %v540 = vadd.s32 %v532, %v538
      %vm541 = vc.u32 %v539, %v535
      %v542 = vsel %vm541, 1, 0
      %v543 = vadd.s32 %v539, %v535
      %v544 = vadd.s32 %v540, %v542
      %v545 = vadd.s32 %v544, %v534
      %v546 = vadd.s32 %v545, %v536
      %v547 = vshrl.u32 %v546, 4
      %v548 = vmul.u32 %v547, 18
      %v549 = vsub.s32 %v525, %v548
      %v550 = vsub.s32 0, %v549
      %v551 = vsel %vm523, %v550, %v549
      %vm552 = vcmp.lt.s32.totalorder %v236, 0
      %v553 = vsub.s32 0, %v236
      %v554 = vsel %vm552, %v553, %v236
      %v555 = vand.u32 %v554, 65535
      %v556 = vshrl.u32 %v554, 16
      %v558 = vmul.u32 %v555, 14564
      %v559 = vmul.u32 %v555, 58254
      %v560 = vmul.u32 %v556, 14564
      %v561 = vmul.u32 %v556, 58254
      %v562 = vshll.u32 %v559, 16
      %v563 = vshrl.u32 %v559, 16
      %v564 = vshll.u32 %v560, 16
      %v565 = vshrl.u32 %v560, 16
      %vm566 = vc.u32 %v558, %v562
      %v567 = vsel %vm566, 1, 0
      %v568 = vadd.s32 %v558, %v562
      %v569 = vadd.s32 %v561, %v567
      %vm570 = vc.u32 %v568, %v564
      %v571 = vsel %vm570, 1, 0
      %v572 = vadd.s32 %v568, %v564
      %v573 = vadd.s32 %v569, %v571
      %v574 = vadd.s32 %v573, %v563
      %v575 = vadd.s32 %v574, %v565
      %v576 = vshrl.u32 %v575, 4
      %v577 = vmul.u32 %v576, 18
      %v578 = vsub.s32 %v554, %v577
      %v579 = vsub.s32 0, %v578
      %v580 = vsel %vm552, %v579, %v578
      %vm581 = vcmp.lt.s32.totalorder %v237, 0
      %v582 = vsub.s32 0, %v237
      %v583 = vsel %vm581, %v582, %v237
      %v584 = vand.u32 %v583, 65535
      %v585 = vshrl.u32 %v583, 16
      %v587 = vmul.u32 %v584, 14564
      %v588 = vmul.u32 %v584, 58254
      %v589 = vmul.u32 %v585, 14564
      %v590 = vmul.u32 %v585, 58254
      %v591 = vshll.u32 %v588, 16
      %v592 = vshrl.u32 %v588, 16
      %v593 = vshll.u32 %v589, 16
      %v594 = vshrl.u32 %v589, 16
      %vm595 = vc.u32 %v587, %v591
      %v596 = vsel %vm595, 1, 0
      %v597 = vadd.s32 %v587, %v591
      %v598 = vadd.s32 %v590, %v596
      %vm599 = vc.u32 %v597, %v593
      %v600 = vsel %vm599, 1, 0
      %v601 = vadd.s32 %v597, %v593
      %v602 = vadd.s32 %v598, %v600
      %v603 = vadd.s32 %v602, %v592
      %v604 = vadd.s32 %v603, %v594
      %v605 = vshrl.u32 %v604, 4
      %v606 = vmul.u32 %v605, 18
      %v607 = vsub.s32 %v583, %v606
      %v608 = vsub.s32 0, %v607
      %v609 = vsel %vm581, %v608, %v607
      %vm610 = vcmp.lt.s32.totalorder %v238, 0
      %v611 = vsub.s32 0, %v238
      %v612 = vsel %vm610, %v611, %v238
      %v613 = vand.u32 %v612, 65535
      %v614 = vshrl.u32 %v612, 16
      %v616 = vmul.u32 %v613, 14564
      %v617 = vmul.u32 %v613, 58254
      %v618 = vmul.u32 %v614, 14564
      %v619 = vmul.u32 %v614, 58254
      %v620 = vshll.u32 %v617, 16
      %v621 = vshrl.u32 %v617, 16
      %v622 = vshll.u32 %v618, 16
      %v623 = vshrl.u32 %v618, 16
      %vm624 = vc.u32 %v616, %v620
      %v625 = vsel %vm624, 1, 0
      %v626 = vadd.s32 %v616, %v620
      %v627 = vadd.s32 %v619, %v625
      %vm628 = vc.u32 %v626, %v622
      %v629 = vsel %vm628, 1, 0
      %v630 = vadd.s32 %v626, %v622
      %v631 = vadd.s32 %v627, %v629
      %v632 = vadd.s32 %v631, %v621
      %v633 = vadd.s32 %v632, %v623
      %v634 = vshrl.u32 %v633, 4
      %v635 = vmul.u32 %v634, 18
      %v636 = vsub.s32 %v612, %v635
      %v637 = vsub.s32 0, %v636
      %v638 = vsel %vm610, %v637, %v636
      %vm639 = vcmp.lt.s32.totalorder %v239, 0
      %v640 = vsub.s32 0, %v239
      %v641 = vsel %vm639, %v640, %v239
      %v642 = vand.u32 %v641, 65535
      %v643 = vshrl.u32 %v641, 16
      %v645 = vmul.u32 %v642, 14564
      %v646 = vmul.u32 %v642, 58254
      %v647 = vmul.u32 %v643, 14564
      %v648 = vmul.u32 %v643, 58254
      %v649 = vshll.u32 %v646, 16
      %v650 = vshrl.u32 %v646, 16
      %v651 = vshll.u32 %v647, 16
      %v652 = vshrl.u32 %v647, 16
      %vm653 = vc.u32 %v645, %v649
      %v654 = vsel %vm653, 1, 0
      %v655 = vadd.s32 %v645, %v649
      %v656 = vadd.s32 %v648, %v654
      %vm657 = vc.u32 %v655, %v651
      %v658 = vsel %vm657, 1, 0
      %v659 = vadd.s32 %v655, %v651
      %v660 = vadd.s32 %v656, %v658
      %v661 = vadd.s32 %v660, %v650
      %v662 = vadd.s32 %v661, %v652
      %v663 = vshrl.u32 %v662, 4
      %v664 = vmul.u32 %v663, 18
      %v665 = vsub.s32 %v641, %v664
      %v666 = vsub.s32 0, %v665
      %v667 = vsel %vm639, %v666, %v665
      %vm668 = vcmp.lt.s32.totalorder %v240, 0
      %v669 = vsub.s32 0, %v240
      %v670 = vsel %vm668, %v669, %v240
      %v671 = vand.u32 %v670, 65535
      %v672 = vshrl.u32 %v670, 16
      %v674 = vmul.u32 %v671, 14564
      %v675 = vmul.u32 %v671, 58254
      %v676 = vmul.u32 %v672, 14564
      %v677 = vmul.u32 %v672, 58254
      %v678 = vshll.u32 %v675, 16
      %v679 = vshrl.u32 %v675, 16
      %v680 = vshll.u32 %v676, 16
      %v681 = vshrl.u32 %v676, 16
      %vm682 = vc.u32 %v674, %v678
      %v683 = vsel %vm682, 1, 0
      %v684 = vadd.s32 %v674, %v678
      %v685 = vadd.s32 %v677, %v683
      %vm686 = vc.u32 %v684, %v680
      %v687 = vsel %vm686, 1, 0
      %v688 = vadd.s32 %v684, %v680
      %v689 = vadd.s32 %v685, %v687
      %v690 = vadd.s32 %v689, %v679
      %v691 = vadd.s32 %v690, %v681
      %v692 = vshrl.u32 %v691, 4
      %v693 = vmul.u32 %v692, 18
      %v694 = vsub.s32 %v670, %v693
      %v695 = vsub.s32 0, %v694
      %v696 = vsel %vm668, %v695, %v694
      %vm697 = vcmp.lt.s32.totalorder %v241, 0
      %v698 = vsub.s32 0, %v241
      %v699 = vsel %vm697, %v698, %v241
      %v700 = vand.u32 %v699, 65535
      %v701 = vshrl.u32 %v699, 16
      %v703 = vmul.u32 %v700, 14564
      %v704 = vmul.u32 %v700, 58254
      %v705 = vmul.u32 %v701, 14564
      %v706 = vmul.u32 %v701, 58254
      %v707 = vshll.u32 %v704, 16
      %v708 = vshrl.u32 %v704, 16
      %v709 = vshll.u32 %v705, 16
      %v710 = vshrl.u32 %v705, 16
      %vm711 = vc.u32 %v703, %v707
      %v712 = vsel %vm711, 1, 0
      %v713 = vadd.s32 %v703, %v707
      %v714 = vadd.s32 %v706, %v712
      %vm715 = vc.u32 %v713, %v709
      %v716 = vsel %vm715, 1, 0
      %v717 = vadd.s32 %v713, %v709
      %v718 = vadd.s32 %v714, %v716
      %v719 = vadd.s32 %v718, %v708
      %v720 = vadd.s32 %v719, %v710
      %v721 = vshrl.u32 %v720, 4
      %v722 = vmul.u32 %v721, 18
      %v723 = vsub.s32 %v699, %v722
      %v724 = vsub.s32 0, %v723
      %v725 = vsel %vm697, %v724, %v723
      %vm726 = vcmp.lt.s32.totalorder %v242, 0
      %v727 = vsub.s32 0, %v242
      %v728 = vsel %vm726, %v727, %v242
      %v729 = vand.u32 %v728, 65535
      %v730 = vshrl.u32 %v728, 16
      %v732 = vmul.u32 %v729, 14564
      %v733 = vmul.u32 %v729, 58254
      %v734 = vmul.u32 %v730, 14564
      %v735 = vmul.u32 %v730, 58254
      %v736 = vshll.u32 %v733, 16
      %v737 = vshrl.u32 %v733, 16
      %v738 = vshll.u32 %v734, 16
      %v739 = vshrl.u32 %v734, 16
      %vm740 = vc.u32 %v732, %v736
      %v741 = vsel %vm740, 1, 0
      %v742 = vadd.s32 %v732, %v736
      %v743 = vadd.s32 %v735, %v741
      %vm744 = vc.u32 %v742, %v738
      %v745 = vsel %vm744, 1, 0
      %v746 = vadd.s32 %v742, %v738
      %v747 = vadd.s32 %v743, %v745
      %v748 = vadd.s32 %v747, %v737
      %v749 = vadd.s32 %v748, %v739
      %v750 = vshrl.u32 %v749, 4
      %v751 = vmul.u32 %v750, 18
      %v752 = vsub.s32 %v728, %v751
      %v753 = vsub.s32 0, %v752
      %v754 = vsel %vm726, %v753, %v752
      %vm755 = vcmp.lt.s32.totalorder %v243, 0
      %v756 = vsub.s32 0, %v243
      %v757 = vsel %vm755, %v756, %v243
      %v758 = vand.u32 %v757, 65535
      %v759 = vshrl.u32 %v757, 16
      %v761 = vmul.u32 %v758, 14564
      %v762 = vmul.u32 %v758, 58254
      %v763 = vmul.u32 %v759, 14564
      %v764 = vmul.u32 %v759, 58254
      %v765 = vshll.u32 %v762, 16
      %v766 = vshrl.u32 %v762, 16
      %v767 = vshll.u32 %v763, 16
      %v768 = vshrl.u32 %v763, 16
      %vm769 = vc.u32 %v761, %v765
      %v770 = vsel %vm769, 1, 0
      %v771 = vadd.s32 %v761, %v765
      %v772 = vadd.s32 %v764, %v770
      %vm773 = vc.u32 %v771, %v767
      %v774 = vsel %vm773, 1, 0
      %v775 = vadd.s32 %v771, %v767
      %v776 = vadd.s32 %v772, %v774
      %v777 = vadd.s32 %v776, %v766
      %v778 = vadd.s32 %v777, %v768
      %v779 = vshrl.u32 %v778, 4
      %v780 = vmul.u32 %v779, 18
      %v781 = vsub.s32 %v757, %v780
      %v782 = vsub.s32 0, %v781
      %v783 = vsel %vm755, %v782, %v781
      %vm784 = vcmp.lt.s32.totalorder %v244, 0
      %v785 = vsub.s32 0, %v244
      %v786 = vsel %vm784, %v785, %v244
      %v787 = vand.u32 %v786, 65535
      %v788 = vshrl.u32 %v786, 16
      %v790 = vmul.u32 %v787, 14564
      %v791 = vmul.u32 %v787, 58254
      %v792 = vmul.u32 %v788, 14564
      %v793 = vmul.u32 %v788, 58254
      %v794 = vshll.u32 %v791, 16
      %v795 = vshrl.u32 %v791, 16
      %v796 = vshll.u32 %v792, 16
      %v797 = vshrl.u32 %v792, 16
      %vm798 = vc.u32 %v790, %v794
      %v799 = vsel %vm798, 1, 0
      %v800 = vadd.s32 %v790, %v794
      %v801 = vadd.s32 %v793, %v799
      %vm802 = vc.u32 %v800, %v796
      %v803 = vsel %vm802, 1, 0
      %v804 = vadd.s32 %v800, %v796
      %v805 = vadd.s32 %v801, %v803
      %v806 = vadd.s32 %v805, %v795
      %v807 = vadd.s32 %v806, %v797
      %v808 = vshrl.u32 %v807, 4
      %v809 = vmul.u32 %v808, 18
      %v810 = vsub.s32 %v786, %v809
      %v811 = vsub.s32 0, %v810
      %v812 = vsel %vm784, %v811, %v810
      %vm813 = vcmp.lt.s32.totalorder %v245, 0
      %v814 = vsub.s32 0, %v245
      %v815 = vsel %vm813, %v814, %v245
      %v816 = vand.u32 %v815, 65535
      %v817 = vshrl.u32 %v815, 16
      %v819 = vmul.u32 %v816, 14564
      %v820 = vmul.u32 %v816, 58254
      %v821 = vmul.u32 %v817, 14564
      %v822 = vmul.u32 %v817, 58254
      %v823 = vshll.u32 %v820, 16
      %v824 = vshrl.u32 %v820, 16
      %v825 = vshll.u32 %v821, 16
      %v826 = vshrl.u32 %v821, 16
      %vm827 = vc.u32 %v819, %v823
      %v828 = vsel %vm827, 1, 0
      %v829 = vadd.s32 %v819, %v823
      %v830 = vadd.s32 %v822, %v828
      %vm831 = vc.u32 %v829, %v825
      %v832 = vsel %vm831, 1, 0
      %v833 = vadd.s32 %v829, %v825
      %v834 = vadd.s32 %v830, %v832
      %v835 = vadd.s32 %v834, %v824
      %v836 = vadd.s32 %v835, %v826
      %v837 = vshrl.u32 %v836, 4
      %v838 = vmul.u32 %v837, 18
      %v839 = vsub.s32 %v815, %v838
      %v840 = vsub.s32 0, %v839
      %v841 = vsel %vm813, %v840, %v839
      %vm842 = vcmp.lt.s32.totalorder %v246, 0
      %v843 = vsub.s32 0, %v246
      %v844 = vsel %vm842, %v843, %v246
      %v845 = vand.u32 %v844, 65535
      %v846 = vshrl.u32 %v844, 16
      %v848 = vmul.u32 %v845, 14564
      %v849 = vmul.u32 %v845, 58254
      %v850 = vmul.u32 %v846, 14564
      %v851 = vmul.u32 %v846, 58254
      %v852 = vshll.u32 %v849, 16
      %v853 = vshrl.u32 %v849, 16
      %v854 = vshll.u32 %v850, 16
      %v855 = vshrl.u32 %v850, 16
      %vm856 = vc.u32 %v848, %v852
      %v857 = vsel %vm856, 1, 0
      %v858 = vadd.s32 %v848, %v852
      %v859 = vadd.s32 %v851, %v857
      %vm860 = vc.u32 %v858, %v854
      %v861 = vsel %vm860, 1, 0
      %v862 = vadd.s32 %v858, %v854
      %v863 = vadd.s32 %v859, %v861
      %v864 = vadd.s32 %v863, %v853
      %v865 = vadd.s32 %v864, %v855
      %v866 = vshrl.u32 %v865, 4
      %v867 = vmul.u32 %v866, 18
      %v868 = vsub.s32 %v844, %v867
      %v869 = vsub.s32 0, %v868
      %v870 = vsel %vm842, %v869, %v868
      %vm871 = vcmp.lt.s32.totalorder %v247, 0
      %v872 = vsub.s32 0, %v247
      %v873 = vsel %vm871, %v872, %v247
      %v874 = vand.u32 %v873, 65535
      %v875 = vshrl.u32 %v873, 16
      %v877 = vmul.u32 %v874, 14564
      %v878 = vmul.u32 %v874, 58254
      %v879 = vmul.u32 %v875, 14564
      %v880 = vmul.u32 %v875, 58254
      %v881 = vshll.u32 %v878, 16
      %v882 = vshrl.u32 %v878, 16
      %v883 = vshll.u32 %v879, 16
      %v884 = vshrl.u32 %v879, 16
      %vm885 = vc.u32 %v877, %v881
      %v886 = vsel %vm885, 1, 0
      %v887 = vadd.s32 %v877, %v881
      %v888 = vadd.s32 %v880, %v886
      %vm889 = vc.u32 %v887, %v883
      %v890 = vsel %vm889, 1, 0
      %v891 = vadd.s32 %v887, %v883
      %v892 = vadd.s32 %v888, %v890
      %v893 = vadd.s32 %v892, %v882
      %v894 = vadd.s32 %v893, %v884
      %v895 = vshrl.u32 %v894, 4
      %v896 = vmul.u32 %v895, 18
      %v897 = vsub.s32 %v873, %v896
      %v898 = vsub.s32 0, %v897
      %v899 = vsel %vm871, %v898, %v897
      %vm900 = vcmp.lt.s32.totalorder %v248, 0
      %v901 = vsub.s32 0, %v248
      %v902 = vsel %vm900, %v901, %v248
      %v903 = vand.u32 %v902, 65535
      %v904 = vshrl.u32 %v902, 16
      %v906 = vmul.u32 %v903, 14564
      %v907 = vmul.u32 %v903, 58254
      %v908 = vmul.u32 %v904, 14564
      %v909 = vmul.u32 %v904, 58254
      %v910 = vshll.u32 %v907, 16
      %v911 = vshrl.u32 %v907, 16
      %v912 = vshll.u32 %v908, 16
      %v913 = vshrl.u32 %v908, 16
      %vm914 = vc.u32 %v906, %v910
      %v915 = vsel %vm914, 1, 0
      %v916 = vadd.s32 %v906, %v910
      %v917 = vadd.s32 %v909, %v915
      %vm918 = vc.u32 %v916, %v912
      %v919 = vsel %vm918, 1, 0
      %v920 = vadd.s32 %v916, %v912
      %v921 = vadd.s32 %v917, %v919
      %v922 = vadd.s32 %v921, %v911
      %v923 = vadd.s32 %v922, %v913
      %v924 = vshrl.u32 %v923, 4
      %v925 = vmul.u32 %v924, 18
      %v926 = vsub.s32 %v902, %v925
      %v927 = vsub.s32 0, %v926
      %v928 = vsel %vm900, %v927, %v926
      %vm929 = vcmp.lt.s32.totalorder %v249, 0
      %v930 = vsub.s32 0, %v249
      %v931 = vsel %vm929, %v930, %v249
      %v932 = vand.u32 %v931, 65535
      %v933 = vshrl.u32 %v931, 16
      %v935 = vmul.u32 %v932, 14564
      %v936 = vmul.u32 %v932, 58254
      %v937 = vmul.u32 %v933, 14564
      %v938 = vmul.u32 %v933, 58254
      %v939 = vshll.u32 %v936, 16
      %v940 = vshrl.u32 %v936, 16
      %v941 = vshll.u32 %v937, 16
      %v942 = vshrl.u32 %v937, 16
      %vm943 = vc.u32 %v935, %v939
      %v944 = vsel %vm943, 1, 0
      %v945 = vadd.s32 %v935, %v939
      %v946 = vadd.s32 %v938, %v944
      %vm947 = vc.u32 %v945, %v941
      %v948 = vsel %vm947, 1, 0
      %v949 = vadd.s32 %v945, %v941
      %v950 = vadd.s32 %v946, %v948
      %v951 = vadd.s32 %v950, %v940
      %v952 = vadd.s32 %v951, %v942
      %v953 = vshrl.u32 %v952, 4
      %v954 = vmul.u32 %v953, 18
      %v955 = vsub.s32 %v931, %v954
      %v956 = vsub.s32 0, %v955
      %v957 = vsel %vm929, %v956, %v955
      %vm958 = vcmp.lt.s32.totalorder %v250, 0
      %v959 = vsub.s32 0, %v250
      %v960 = vsel %vm958, %v959, %v250
      %v961 = vand.u32 %v960, 65535
      %v962 = vshrl.u32 %v960, 16
      %v964 = vmul.u32 %v961, 14564
      %v965 = vmul.u32 %v961, 58254
      %v966 = vmul.u32 %v962, 14564
      %v967 = vmul.u32 %v962, 58254
      %v968 = vshll.u32 %v965, 16
      %v969 = vshrl.u32 %v965, 16
      %v970 = vshll.u32 %v966, 16
      %v971 = vshrl.u32 %v966, 16
      %vm972 = vc.u32 %v964, %v968
      %v973 = vsel %vm972, 1, 0
      %v974 = vadd.s32 %v964, %v968
      %v975 = vadd.s32 %v967, %v973
      %vm976 = vc.u32 %v974, %v970
      %v977 = vsel %vm976, 1, 0
      %v978 = vadd.s32 %v974, %v970
      %v979 = vadd.s32 %v975, %v977
      %v980 = vadd.s32 %v979, %v969
      %v981 = vadd.s32 %v980, %v971
      %v982 = vshrl.u32 %v981, 4
      %v983 = vmul.u32 %v982, 18
      %v984 = vsub.s32 %v960, %v983
      %v985 = vsub.s32 0, %v984
      %v986 = vsel %vm958, %v985, %v984
      %vm987 = vcmp.lt.s32.totalorder %v251, 0
      %v988 = vsub.s32 0, %v251
      %v989 = vsel %vm987, %v988, %v251
      %v990 = vand.u32 %v989, 65535
      %v991 = vshrl.u32 %v989, 16
      %v993 = vmul.u32 %v990, 14564
      %v994 = vmul.u32 %v990, 58254
      %v995 = vmul.u32 %v991, 14564
      %v996 = vmul.u32 %v991, 58254
      %v997 = vshll.u32 %v994, 16
      %v998 = vshrl.u32 %v994, 16
      %v999 = vshll.u32 %v995, 16
      %v1000 = vshrl.u32 %v995, 16
      %vm1001 = vc.u32 %v993, %v997
      %v1002 = vsel %vm1001, 1, 0
      %v1003 = vadd.s32 %v993, %v997
      %v1004 = vadd.s32 %v996, %v1002
      %vm1005 = vc.u32 %v1003, %v999
      %v1006 = vsel %vm1005, 1, 0
      %v1007 = vadd.s32 %v1003, %v999
      %v1008 = vadd.s32 %v1004, %v1006
      %v1009 = vadd.s32 %v1008, %v998
      %v1010 = vadd.s32 %v1009, %v1000
      %v1011 = vshrl.u32 %v1010, 4
      %v1012 = vmul.u32 %v1011, 18
      %v1013 = vsub.s32 %v989, %v1012
      %v1014 = vsub.s32 0, %v1013
      %v1015 = vsel %vm987, %v1014, %v1013
      %vm1016 = vcmp.lt.s32.totalorder %v252, 0
      %v1017 = vsub.s32 0, %v252
      %v1018 = vsel %vm1016, %v1017, %v252
      %v1019 = vand.u32 %v1018, 65535
      %v1020 = vshrl.u32 %v1018, 16
      %v1022 = vmul.u32 %v1019, 14564
      %v1023 = vmul.u32 %v1019, 58254
      %v1024 = vmul.u32 %v1020, 14564
      %v1025 = vmul.u32 %v1020, 58254
      %v1026 = vshll.u32 %v1023, 16
      %v1027 = vshrl.u32 %v1023, 16
      %v1028 = vshll.u32 %v1024, 16
      %v1029 = vshrl.u32 %v1024, 16
      %vm1030 = vc.u32 %v1022, %v1026
      %v1031 = vsel %vm1030, 1, 0
      %v1032 = vadd.s32 %v1022, %v1026
      %v1033 = vadd.s32 %v1025, %v1031
      %vm1034 = vc.u32 %v1032, %v1028
      %v1035 = vsel %vm1034, 1, 0
      %v1036 = vadd.s32 %v1032, %v1028
      %v1037 = vadd.s32 %v1033, %v1035
      %v1038 = vadd.s32 %v1037, %v1027
      %v1039 = vadd.s32 %v1038, %v1029
      %v1040 = vshrl.u32 %v1039, 4
      %v1041 = vmul.u32 %v1040, 18
      %v1042 = vsub.s32 %v1018, %v1041
      %v1043 = vsub.s32 0, %v1042
      %v1044 = vsel %vm1016, %v1043, %v1042
      %vm1045 = vcmp.lt.s32.totalorder %v253, 0
      %v1046 = vsub.s32 0, %v253
      %v1047 = vsel %vm1045, %v1046, %v253
      %v1048 = vand.u32 %v1047, 65535
      %v1049 = vshrl.u32 %v1047, 16
      %v1051 = vmul.u32 %v1048, 14564
      %v1052 = vmul.u32 %v1048, 58254
      %v1053 = vmul.u32 %v1049, 14564
      %v1054 = vmul.u32 %v1049, 58254
      %v1055 = vshll.u32 %v1052, 16
      %v1056 = vshrl.u32 %v1052, 16
      %v1057 = vshll.u32 %v1053, 16
      %v1058 = vshrl.u32 %v1053, 16
      %vm1059 = vc.u32 %v1051, %v1055
      %v1060 = vsel %vm1059, 1, 0
      %v1061 = vadd.s32 %v1051, %v1055
      %v1062 = vadd.s32 %v1054, %v1060
      %vm1063 = vc.u32 %v1061, %v1057
      %v1064 = vsel %vm1063, 1, 0
      %v1065 = vadd.s32 %v1061, %v1057
      %v1066 = vadd.s32 %v1062, %v1064
      %v1067 = vadd.s32 %v1066, %v1056
      %v1068 = vadd.s32 %v1067, %v1058
      %v1069 = vshrl.u32 %v1068, 4
      %v1070 = vmul.u32 %v1069, 18
      %v1071 = vsub.s32 %v1047, %v1070
      %v1072 = vsub.s32 0, %v1071
      %v1073 = vsel %vm1045, %v1072, %v1071
      %vm1074 = vcmp.lt.s32.totalorder %v254, 0
      %v1075 = vsub.s32 0, %v254
      %v1076 = vsel %vm1074, %v1075, %v254
      %v1077 = vand.u32 %v1076, 65535
      %v1078 = vshrl.u32 %v1076, 16
      %v1080 = vmul.u32 %v1077, 14564
      %v1081 = vmul.u32 %v1077, 58254
      %v1082 = vmul.u32 %v1078, 14564
      %v1083 = vmul.u32 %v1078, 58254
      %v1084 = vshll.u32 %v1081, 16
      %v1085 = vshrl.u32 %v1081, 16
      %v1086 = vshll.u32 %v1082, 16
      %v1087 = vshrl.u32 %v1082, 16
      %vm1088 = vc.u32 %v1080, %v1084
      %v1089 = vsel %vm1088, 1, 0
      %v1090 = vadd.s32 %v1080, %v1084
      %v1091 = vadd.s32 %v1083, %v1089
      %vm1092 = vc.u32 %v1090, %v1086
      %v1093 = vsel %vm1092, 1, 0
      %v1094 = vadd.s32 %v1090, %v1086
      %v1095 = vadd.s32 %v1091, %v1093
      %v1096 = vadd.s32 %v1095, %v1085
      %v1097 = vadd.s32 %v1096, %v1087
      %v1098 = vshrl.u32 %v1097, 4
      %v1099 = vmul.u32 %v1098, 18
      %v1100 = vsub.s32 %v1076, %v1099
      %v1101 = vsub.s32 0, %v1100
      %v1102 = vsel %vm1074, %v1101, %v1100
      %vm1103 = vcmp.lt.s32.totalorder %v255, 0
      %v1104 = vsub.s32 0, %v255
      %v1105 = vsel %vm1103, %v1104, %v255
      %v1106 = vand.u32 %v1105, 65535
      %v1107 = vshrl.u32 %v1105, 16
      %v1109 = vmul.u32 %v1106, 14564
      %v1110 = vmul.u32 %v1106, 58254
      %v1111 = vmul.u32 %v1107, 14564
      %v1112 = vmul.u32 %v1107, 58254
      %v1113 = vshll.u32 %v1110, 16
      %v1114 = vshrl.u32 %v1110, 16
      %v1115 = vshll.u32 %v1111, 16
      %v1116 = vshrl.u32 %v1111, 16
      %vm1117 = vc.u32 %v1109, %v1113
      %v1118 = vsel %vm1117, 1, 0
      %v1119 = vadd.s32 %v1109, %v1113
      %v1120 = vadd.s32 %v1112, %v1118
      %vm1121 = vc.u32 %v1119, %v1115
      %v1122 = vsel %vm1121, 1, 0
      %v1123 = vadd.s32 %v1119, %v1115
      %v1124 = vadd.s32 %v1120, %v1122
      %v1125 = vadd.s32 %v1124, %v1114
      %v1126 = vadd.s32 %v1125, %v1116
      %v1127 = vshrl.u32 %v1126, 4
      %v1128 = vmul.u32 %v1127, 18
      %v1129 = vsub.s32 %v1105, %v1128
      %v1130 = vsub.s32 0, %v1129
      %v1131 = vsel %vm1103, %v1130, %v1129
      %vm1132 = vcmp.lt.s32.totalorder %v256, 0
      %v1133 = vsub.s32 0, %v256
      %v1134 = vsel %vm1132, %v1133, %v256
      %v1135 = vand.u32 %v1134, 65535
      %v1136 = vshrl.u32 %v1134, 16
      %v1138 = vmul.u32 %v1135, 14564
      %v1139 = vmul.u32 %v1135, 58254
      %v1140 = vmul.u32 %v1136, 14564
      %v1141 = vmul.u32 %v1136, 58254
      %v1142 = vshll.u32 %v1139, 16
      %v1143 = vshrl.u32 %v1139, 16
      %v1144 = vshll.u32 %v1140, 16
      %v1145 = vshrl.u32 %v1140, 16
      %vm1146 = vc.u32 %v1138, %v1142
      %v1147 = vsel %vm1146, 1, 0
      %v1148 = vadd.s32 %v1138, %v1142
      %v1149 = vadd.s32 %v1141, %v1147
      %vm1150 = vc.u32 %v1148, %v1144
      %v1151 = vsel %vm1150, 1, 0
      %v1152 = vadd.s32 %v1148, %v1144
      %v1153 = vadd.s32 %v1149, %v1151
      %v1154 = vadd.s32 %v1153, %v1143
      %v1155 = vadd.s32 %v1154, %v1145
      %v1156 = vshrl.u32 %v1155, 4
      %v1157 = vmul.u32 %v1156, 18
      %v1158 = vsub.s32 %v1134, %v1157
      %v1159 = vsub.s32 0, %v1158
      %v1160 = vsel %vm1132, %v1159, %v1158
      %vm1161 = vcmp.lt.s32.totalorder %v257, 0
      %v1162 = vsub.s32 0, %v257
      %v1163 = vsel %vm1161, %v1162, %v257
      %v1164 = vand.u32 %v1163, 65535
      %v1165 = vshrl.u32 %v1163, 16
      %v1167 = vmul.u32 %v1164, 14564
      %v1168 = vmul.u32 %v1164, 58254
      %v1169 = vmul.u32 %v1165, 14564
      %v1170 = vmul.u32 %v1165, 58254
      %v1171 = vshll.u32 %v1168, 16
      %v1172 = vshrl.u32 %v1168, 16
      %v1173 = vshll.u32 %v1169, 16
      %v1174 = vshrl.u32 %v1169, 16
      %vm1175 = vc.u32 %v1167, %v1171
      %v1176 = vsel %vm1175, 1, 0
      %v1177 = vadd.s32 %v1167, %v1171
      %v1178 = vadd.s32 %v1170, %v1176
      %vm1179 = vc.u32 %v1177, %v1173
      %v1180 = vsel %vm1179, 1, 0
      %v1181 = vadd.s32 %v1177, %v1173
      %v1182 = vadd.s32 %v1178, %v1180
      %v1183 = vadd.s32 %v1182, %v1172
      %v1184 = vadd.s32 %v1183, %v1174
      %v1185 = vshrl.u32 %v1184, 4
      %v1186 = vmul.u32 %v1185, 18
      %v1187 = vsub.s32 %v1163, %v1186
      %v1188 = vsub.s32 0, %v1187
      %v1189 = vsel %vm1161, %v1188, %v1187
      %vm1190 = vcmp.lt.s32.totalorder %v258, 0
      %v1191 = vsub.s32 0, %v258
      %v1192 = vsel %vm1190, %v1191, %v258
      %v1193 = vand.u32 %v1192, 65535
      %v1194 = vshrl.u32 %v1192, 16
      %v1196 = vmul.u32 %v1193, 14564
      %v1197 = vmul.u32 %v1193, 58254
      %v1198 = vmul.u32 %v1194, 14564
      %v1199 = vmul.u32 %v1194, 58254
      %v1200 = vshll.u32 %v1197, 16
      %v1201 = vshrl.u32 %v1197, 16
      %v1202 = vshll.u32 %v1198, 16
      %v1203 = vshrl.u32 %v1198, 16
      %vm1204 = vc.u32 %v1196, %v1200
      %v1205 = vsel %vm1204, 1, 0
      %v1206 = vadd.s32 %v1196, %v1200
      %v1207 = vadd.s32 %v1199, %v1205
      %vm1208 = vc.u32 %v1206, %v1202
      %v1209 = vsel %vm1208, 1, 0
      %v1210 = vadd.s32 %v1206, %v1202
      %v1211 = vadd.s32 %v1207, %v1209
      %v1212 = vadd.s32 %v1211, %v1201
      %v1213 = vadd.s32 %v1212, %v1203
      %v1214 = vshrl.u32 %v1213, 4
      %v1215 = vmul.u32 %v1214, 18
      %v1216 = vsub.s32 %v1192, %v1215
      %v1217 = vsub.s32 0, %v1216
      %v1218 = vsel %vm1190, %v1217, %v1216
      %vm1219 = vcmp.lt.s32.totalorder %v259, 0
      %v1220 = vsub.s32 0, %v259
      %v1221 = vsel %vm1219, %v1220, %v259
      %v1222 = vand.u32 %v1221, 65535
      %v1223 = vshrl.u32 %v1221, 16
      %v1225 = vmul.u32 %v1222, 14564
      %v1226 = vmul.u32 %v1222, 58254
      %v1227 = vmul.u32 %v1223, 14564
      %v1228 = vmul.u32 %v1223, 58254
      %v1229 = vshll.u32 %v1226, 16
      %v1230 = vshrl.u32 %v1226, 16
      %v1231 = vshll.u32 %v1227, 16
      %v1232 = vshrl.u32 %v1227, 16
      %vm1233 = vc.u32 %v1225, %v1229
      %v1234 = vsel %vm1233, 1, 0
      %v1235 = vadd.s32 %v1225, %v1229
      %v1236 = vadd.s32 %v1228, %v1234
      %vm1237 = vc.u32 %v1235, %v1231
      %v1238 = vsel %vm1237, 1, 0
      %v1239 = vadd.s32 %v1235, %v1231
      %v1240 = vadd.s32 %v1236, %v1238
      %v1241 = vadd.s32 %v1240, %v1230
      %v1242 = vadd.s32 %v1241, %v1232
      %v1243 = vshrl.u32 %v1242, 4
      %v1244 = vmul.u32 %v1243, 18
      %v1245 = vsub.s32 %v1221, %v1244
      %v1246 = vsub.s32 0, %v1245
      %v1247 = vsel %vm1219, %v1246, %v1245
      %vm1248 = vcmp.lt.s32.totalorder %v260, 0
      %v1249 = vsub.s32 0, %v260
      %v1250 = vsel %vm1248, %v1249, %v260
      %v1251 = vand.u32 %v1250, 65535
      %v1252 = vshrl.u32 %v1250, 16
      %v1254 = vmul.u32 %v1251, 14564
      %v1255 = vmul.u32 %v1251, 58254
      %v1256 = vmul.u32 %v1252, 14564
      %v1257 = vmul.u32 %v1252, 58254
      %v1258 = vshll.u32 %v1255, 16
      %v1259 = vshrl.u32 %v1255, 16
      %v1260 = vshll.u32 %v1256, 16
      %v1261 = vshrl.u32 %v1256, 16
      %vm1262 = vc.u32 %v1254, %v1258
      %v1263 = vsel %vm1262, 1, 0
      %v1264 = vadd.s32 %v1254, %v1258
      %v1265 = vadd.s32 %v1257, %v1263
      %vm1266 = vc.u32 %v1264, %v1260
      %v1267 = vsel %vm1266, 1, 0
      %v1268 = vadd.s32 %v1264, %v1260
      %v1269 = vadd.s32 %v1265, %v1267
      %v1270 = vadd.s32 %v1269, %v1259
      %v1271 = vadd.s32 %v1270, %v1261
      %v1272 = vshrl.u32 %v1271, 4
      %v1273 = vmul.u32 %v1272, 18
      %v1274 = vsub.s32 %v1250, %v1273
      %v1275 = vsub.s32 0, %v1274
      %v1276 = vsel %vm1248, %v1275, %v1274
      %vm1277 = vcmp.lt.s32.totalorder %v261, 0
      %v1278 = vsub.s32 0, %v261
      %v1279 = vsel %vm1277, %v1278, %v261
      %v1280 = vand.u32 %v1279, 65535
      %v1281 = vshrl.u32 %v1279, 16
      %v1283 = vmul.u32 %v1280, 14564
      %v1284 = vmul.u32 %v1280, 58254
      %v1285 = vmul.u32 %v1281, 14564
      %v1286 = vmul.u32 %v1281, 58254
      %v1287 = vshll.u32 %v1284, 16
      %v1288 = vshrl.u32 %v1284, 16
      %v1289 = vshll.u32 %v1285, 16
      %v1290 = vshrl.u32 %v1285, 16
      %vm1291 = vc.u32 %v1283, %v1287
      %v1292 = vsel %vm1291, 1, 0
      %v1293 = vadd.s32 %v1283, %v1287
      %v1294 = vadd.s32 %v1286, %v1292
      %vm1295 = vc.u32 %v1293, %v1289
      %v1296 = vsel %vm1295, 1, 0
      %v1297 = vadd.s32 %v1293, %v1289
      %v1298 = vadd.s32 %v1294, %v1296
      %v1299 = vadd.s32 %v1298, %v1288
      %v1300 = vadd.s32 %v1299, %v1290
      %v1301 = vshrl.u32 %v1300, 4
      %v1302 = vmul.u32 %v1301, 18
      %v1303 = vsub.s32 %v1279, %v1302
      %v1304 = vsub.s32 0, %v1303
      %v1305 = vsel %vm1277, %v1304, %v1303
      %vm1306 = vcmp.ne.s32.totalorder %v290, 0
      %vm1307 = vcmp.ne.s32.totalorder %v319, 0
      %vm1308 = vcmp.ne.s32.totalorder %v348, 0
      %vm1309 = vcmp.ne.s32.totalorder %v377, 0
      %vm1310 = vcmp.ne.s32.totalorder %v406, 0
      %vm1311 = vcmp.ne.s32.totalorder %v435, 0
      %vm1312 = vcmp.ne.s32.totalorder %v464, 0
      %vm1313 = vcmp.ne.s32.totalorder %v493, 0
      %vm1314 = vcmp.ne.s32.totalorder %v522, 0
      %vm1315 = vcmp.ne.s32.totalorder %v551, 0
      %vm1316 = vcmp.ne.s32.totalorder %v580, 0
      %vm1317 = vcmp.ne.s32.totalorder %v609, 0
      %vm1318 = vcmp.ne.s32.totalorder %v638, 0
      %vm1319 = vcmp.ne.s32.totalorder %v667, 0
      %vm1320 = vcmp.ne.s32.totalorder %v696, 0
      %vm1321 = vcmp.ne.s32.totalorder %v725, 0
      %vm1322 = vcmp.ne.s32.totalorder %v754, 0
      %vm1323 = vcmp.ne.s32.totalorder %v783, 0
      %vm1324 = vcmp.ne.s32.totalorder %v812, 0
      %vm1325 = vcmp.ne.s32.totalorder %v841, 0
      %vm1326 = vcmp.ne.s32.totalorder %v870, 0
      %vm1327 = vcmp.ne.s32.totalorder %v899, 0
      %vm1328 = vcmp.ne.s32.totalorder %v928, 0
      %vm1329 = vcmp.ne.s32.totalorder %v957, 0
      %vm1330 = vcmp.ne.s32.totalorder %v986, 0
      %vm1331 = vcmp.ne.s32.totalorder %v1015, 0
      %vm1332 = vcmp.ne.s32.totalorder %v1044, 0
      %vm1333 = vcmp.ne.s32.totalorder %v1073, 0
      %vm1334 = vcmp.ne.s32.totalorder %v1102, 0
      %vm1335 = vcmp.ne.s32.totalorder %v1131, 0
      %vm1336 = vcmp.ne.s32.totalorder %v1160, 0
      %vm1337 = vcmp.ne.s32.totalorder %v1189, 0
      %vm1338 = vcmp.ne.s32.totalorder %v1218, 0
      %vm1339 = vcmp.ne.s32.totalorder %v1247, 0
      %vm1340 = vcmp.ne.s32.totalorder %v1276, 0
      %vm1341 = vcmp.ne.s32.totalorder %v1305, 0
      %vm1342 = vcmp.lt.s32.totalorder %v290, 0
      %vm1343 = vcmp.lt.s32.totalorder %v319, 0
      %vm1344 = vcmp.lt.s32.totalorder %v348, 0
      %vm1345 = vcmp.lt.s32.totalorder %v377, 0
      %vm1346 = vcmp.lt.s32.totalorder %v406, 0
      %vm1347 = vcmp.lt.s32.totalorder %v435, 0
      %vm1348 = vcmp.lt.s32.totalorder %v464, 0
      %vm1349 = vcmp.lt.s32.totalorder %v493, 0
      %vm1350 = vcmp.lt.s32.totalorder %v522, 0
      %vm1351 = vcmp.lt.s32.totalorder %v551, 0
      %vm1352 = vcmp.lt.s32.totalorder %v580, 0
      %vm1353 = vcmp.lt.s32.totalorder %v609, 0
      %vm1354 = vcmp.lt.s32.totalorder %v638, 0
      %vm1355 = vcmp.lt.s32.totalorder %v667, 0
      %vm1356 = vcmp.lt.s32.totalorder %v696, 0
      %vm1357 = vcmp.lt.s32.totalorder %v725, 0
      %vm1358 = vcmp.lt.s32.totalorder %v754, 0
      %vm1359 = vcmp.lt.s32.totalorder %v783, 0
      %vm1360 = vcmp.lt.s32.totalorder %v812, 0
      %vm1361 = vcmp.lt.s32.totalorder %v841, 0
      %vm1362 = vcmp.lt.s32.totalorder %v870, 0
      %vm1363 = vcmp.lt.s32.totalorder %v899, 0
      %vm1364 = vcmp.lt.s32.totalorder %v928, 0
      %vm1365 = vcmp.lt.s32.totalorder %v957, 0
      %vm1366 = vcmp.lt.s32.totalorder %v986, 0
      %vm1367 = vcmp.lt.s32.totalorder %v1015, 0
      %vm1368 = vcmp.lt.s32.totalorder %v1044, 0
      %vm1369 = vcmp.lt.s32.totalorder %v1073, 0
      %vm1370 = vcmp.lt.s32.totalorder %v1102, 0
      %vm1371 = vcmp.lt.s32.totalorder %v1131, 0
      %vm1372 = vcmp.lt.s32.totalorder %v1160, 0
      %vm1373 = vcmp.lt.s32.totalorder %v1189, 0
      %vm1374 = vcmp.lt.s32.totalorder %v1218, 0
      %vm1375 = vcmp.lt.s32.totalorder %v1247, 0
      %vm1376 = vcmp.lt.s32.totalorder %v1276, 0
      %vm1377 = vcmp.lt.s32.totalorder %v1305, 0
      %vm1378 = vmand %vm1342, %vm1306
      %vm1379 = vmand %vm1343, %vm1307
      %vm1380 = vmand %vm1344, %vm1308
      %vm1381 = vmand %vm1345, %vm1309
      %vm1382 = vmand %vm1346, %vm1310
      %vm1383 = vmand %vm1347, %vm1311
      %vm1384 = vmand %vm1348, %vm1312
      %vm1385 = vmand %vm1349, %vm1313
      %vm1386 = vmand %vm1350, %vm1314
      %vm1387 = vmand %vm1351, %vm1315
      %vm1388 = vmand %vm1352, %vm1316
      %vm1389 = vmand %vm1353, %vm1317
      %vm1390 = vmand %vm1354, %vm1318
      %vm1391 = vmand %vm1355, %vm1319
      %vm1392 = vmand %vm1356, %vm1320
      %vm1393 = vmand %vm1357, %vm1321
      %vm1394 = vmand %vm1358, %vm1322
      %vm1395 = vmand %vm1359, %vm1323
      %vm1396 = vmand %vm1360, %vm1324
      %vm1397 = vmand %vm1361, %vm1325
      %vm1398 = vmand %vm1362, %vm1326
      %vm1399 = vmand %vm1363, %vm1327
      %vm1400 = vmand %vm1364, %vm1328
      %vm1401 = vmand %vm1365, %vm1329
      %vm1402 = vmand %vm1366, %vm1330
      %vm1403 = vmand %vm1367, %vm1331
      %vm1404 = vmand %vm1368, %vm1332
      %vm1405 = vmand %vm1369, %vm1333
      %vm1406 = vmand %vm1370, %vm1334
      %vm1407 = vmand %vm1371, %vm1335
      %vm1408 = vmand %vm1372, %vm1336
      %vm1409 = vmand %vm1373, %vm1337
      %vm1410 = vmand %vm1374, %vm1338
      %vm1411 = vmand %vm1375, %vm1339
      %vm1412 = vmand %vm1376, %vm1340
      %vm1413 = vmand %vm1377, %vm1341
      %v1414 = vadd.s32 %v290, 18
      %v1415 = vadd.s32 %v319, 18
      %v1416 = vadd.s32 %v348, 18
      %v1417 = vadd.s32 %v377, 18
      %v1418 = vadd.s32 %v406, 18
      %v1419 = vadd.s32 %v435, 18
      %v1420 = vadd.s32 %v464, 18
      %v1421 = vadd.s32 %v493, 18
      %v1422 = vadd.s32 %v522, 18
      %v1423 = vadd.s32 %v551, 18
      %v1424 = vadd.s32 %v580, 18
      %v1425 = vadd.s32 %v609, 18
      %v1426 = vadd.s32 %v638, 18
      %v1427 = vadd.s32 %v667, 18
      %v1428 = vadd.s32 %v696, 18
      %v1429 = vadd.s32 %v725, 18
      %v1430 = vadd.s32 %v754, 18
      %v1431 = vadd.s32 %v783, 18
      %v1432 = vadd.s32 %v812, 18
      %v1433 = vadd.s32 %v841, 18
      %v1434 = vadd.s32 %v870, 18
      %v1435 = vadd.s32 %v899, 18
      %v1436 = vadd.s32 %v928, 18
      %v1437 = vadd.s32 %v957, 18
      %v1438 = vadd.s32 %v986, 18
      %v1439 = vadd.s32 %v1015, 18
      %v1440 = vadd.s32 %v1044, 18
      %v1441 = vadd.s32 %v1073, 18
      %v1442 = vadd.s32 %v1102, 18
      %v1443 = vadd.s32 %v1131, 18
      %v1444 = vadd.s32 %v1160, 18
      %v1445 = vadd.s32 %v1189, 18
      %v1446 = vadd.s32 %v1218, 18
      %v1447 = vadd.s32 %v1247, 18
      %v1448 = vadd.s32 %v1276, 18
      %v1449 = vadd.s32 %v1305, 18
      %v1450 = vsel %vm1378, %v1414, %v290
      %v1451 = vsel %vm1379, %v1415, %v319
      %v1452 = vsel %vm1380, %v1416, %v348
      %v1453 = vsel %vm1381, %v1417, %v377
      %v1454 = vsel %vm1382, %v1418, %v406
      %v1455 = vsel %vm1383, %v1419, %v435
      %v1456 = vsel %vm1384, %v1420, %v464
      %v1457 = vsel %vm1385, %v1421, %v493
      %v1458 = vsel %vm1386, %v1422, %v522
      %v1459 = vsel %vm1387, %v1423, %v551
      %v1460 = vsel %vm1388, %v1424, %v580
      %v1461 = vsel %vm1389, %v1425, %v609
      %v1462 = vsel %vm1390, %v1426, %v638
      %v1463 = vsel %vm1391, %v1427, %v667
      %v1464 = vsel %vm1392, %v1428, %v696
      %v1465 = vsel %vm1393, %v1429, %v725
      %v1466 = vsel %vm1394, %v1430, %v754
      %v1467 = vsel %vm1395, %v1431, %v783
      %v1468 = vsel %vm1396, %v1432, %v812
      %v1469 = vsel %vm1397, %v1433, %v841
      %v1470 = vsel %vm1398, %v1434, %v870
      %v1471 = vsel %vm1399, %v1435, %v899
      %v1472 = vsel %vm1400, %v1436, %v928
      %v1473 = vsel %vm1401, %v1437, %v957
      %v1474 = vsel %vm1402, %v1438, %v986
      %v1475 = vsel %vm1403, %v1439, %v1015
      %v1476 = vsel %vm1404, %v1440, %v1044
      %v1477 = vsel %vm1405, %v1441, %v1073
      %v1478 = vsel %vm1406, %v1442, %v1102
      %v1479 = vsel %vm1407, %v1443, %v1131
      %v1480 = vsel %vm1408, %v1444, %v1160
      %v1481 = vsel %vm1409, %v1445, %v1189
      %v1482 = vsel %vm1410, %v1446, %v1218
      %v1483 = vsel %vm1411, %v1447, %v1247
      %v1484 = vsel %vm1412, %v1448, %v1276
      %v1485 = vsel %vm1413, %v1449, %v1305
      %vm1486 = vcmp.lt.s32.totalorder %v1450, 16
      %vm1487 = vcmp.lt.s32.totalorder %v1451, 16
      %vm1488 = vcmp.lt.s32.totalorder %v1452, 16
      %vm1489 = vcmp.lt.s32.totalorder %v1453, 16
      %vm1490 = vcmp.lt.s32.totalorder %v1454, 16
      %vm1491 = vcmp.lt.s32.totalorder %v1455, 16
      %vm1492 = vcmp.lt.s32.totalorder %v1456, 16
      %vm1493 = vcmp.lt.s32.totalorder %v1457, 16
      %vm1494 = vcmp.lt.s32.totalorder %v1458, 16
      %vm1495 = vcmp.lt.s32.totalorder %v1459, 16
      %vm1496 = vcmp.lt.s32.totalorder %v1460, 16
      %vm1497 = vcmp.lt.s32.totalorder %v1461, 16
      %vm1498 = vcmp.lt.s32.totalorder %v1462, 16
      %vm1499 = vcmp.lt.s32.totalorder %v1463, 16
      %vm1500 = vcmp.lt.s32.totalorder %v1464, 16
      %vm1501 = vcmp.lt.s32.totalorder %v1465, 16
      %vm1502 = vcmp.lt.s32.totalorder %v1466, 16
      %vm1503 = vcmp.lt.s32.totalorder %v1467, 16
      %vm1504 = vcmp.lt.s32.totalorder %v1468, 16
      %vm1505 = vcmp.lt.s32.totalorder %v1469, 16
      %vm1506 = vcmp.lt.s32.totalorder %v1470, 16
      %vm1507 = vcmp.lt.s32.totalorder %v1471, 16
      %vm1508 = vcmp.lt.s32.totalorder %v1472, 16
      %vm1509 = vcmp.lt.s32.totalorder %v1473, 16
      %vm1510 = vcmp.lt.s32.totalorder %v1474, 16
      %vm1511 = vcmp.lt.s32.totalorder %v1475, 16
      %vm1512 = vcmp.lt.s32.totalorder %v1476, 16
      %vm1513 = vcmp.lt.s32.totalorder %v1477, 16
      %vm1514 = vcmp.lt.s32.totalorder %v1478, 16
      %vm1515 = vcmp.lt.s32.totalorder %v1479, 16
      %vm1516 = vcmp.lt.s32.totalorder %v1480, 16
      %vm1517 = vcmp.lt.s32.totalorder %v1481, 16
      %vm1518 = vcmp.lt.s32.totalorder %v1482, 16
      %vm1519 = vcmp.lt.s32.totalorder %v1483, 16
      %vm1520 = vcmp.lt.s32.totalorder %v1484, 16
      %vm1521 = vcmp.lt.s32.totalorder %v1485, 16
      %v1522 = vld [vmem:[%s219] sm:$0xff]
      %v1523 = vld [vmem:[%s219 + $0x8] sm:$0xff]
      %v1524 = vld [vmem:[%s219 + $0x10] sm:$0xff]
      %v1525 = vld [vmem:[%s219 + $0x18] sm:$0xff]
      %v1526 = vld [vmem:[%s219 + $0x20] sm:$0xff]
      %v1527 = vld [vmem:[%s219 + $0x28] sm:$0xff]
      %v1528 = vld [vmem:[%s219 + $0x30] sm:$0xff]
      %v1529 = vld [vmem:[%s219 + $0x38] sm:$0xff]
      %v1530 = vld [vmem:[%s219 + $0x40] sm:$0xff]
      %v1531 = vld [vmem:[%s219 + $0x48] sm:$0xff]
      %v1532 = vld [vmem:[%s219 + $0x50] sm:$0xff]
      %v1533 = vld [vmem:[%s219 + $0x58] sm:$0xff]
      %v1534 = vld [vmem:[%s219 + $0x60] sm:$0xff]
      %v1535 = vld [vmem:[%s219 + $0x68] sm:$0xff]
      %v1536 = vld [vmem:[%s219 + $0x70] sm:$0xff]
      %v1537 = vld [vmem:[%s219 + $0x78] sm:$0xff]
      %v1538 = vld [vmem:[%s219 + $0x80] sm:$0xff]
      %v1539 = vld [vmem:[%s219 + $0x88] sm:$0xff]
      %v1540 = vld [vmem:[%s219 + $0x90] sm:$0xff]
      %v1541 = vld [vmem:[%s219 + $0x98] sm:$0xff]
      %v1542 = vld [vmem:[%s219 + $0xa0] sm:$0xff]
      %v1543 = vld [vmem:[%s219 + $0xa8] sm:$0xff]
      %v1544 = vld [vmem:[%s219 + $0xb0] sm:$0xff]
      %v1545 = vld [vmem:[%s219 + $0xb8] sm:$0xff]
      %v1546 = vld [vmem:[%s219 + $0xc0] sm:$0xff]
      %v1547 = vld [vmem:[%s219 + $0xc8] sm:$0xff]
      %v1548 = vld [vmem:[%s219 + $0xd0] sm:$0xff]
      %v1549 = vld [vmem:[%s219 + $0xd8] sm:$0xff]
      %v1550 = vld [vmem:[%s219 + $0xe0] sm:$0xff]
      %v1551 = vld [vmem:[%s219 + $0xe8] sm:$0xff]
      %v1552 = vld [vmem:[%s219 + $0xf0] sm:$0xff]
      %v1553 = vld [vmem:[%s219 + $0xf8] sm:$0xff]
      %v1554 = vld [vmem:[%s219 + $0x100] sm:$0xff]
      %v1555 = vld [vmem:[%s219 + $0x108] sm:$0xff]
      %v1556 = vld [vmem:[%s219 + $0x110] sm:$0xff]
      %v1557 = vld [vmem:[%s219 + $0x118] sm:$0xff]
      %v1558 = vld [vmem:[%s219 + $0x120] sm:$0xff]
      %v1559 = vld [vmem:[%s219 + $0x128] sm:$0xff]
      %v1560 = vld [vmem:[%s219 + $0x130] sm:$0xff]
      %v1561 = vld [vmem:[%s219 + $0x138] sm:$0xff]
      %v1562 = vld [vmem:[%s219 + $0x140] sm:$0xff]
      %vm1600 = vcmask 1046528
      %v1601 = vrot.slane %v1522, 1
      %v1602 = vrot.slane %v1523, 1
      %v1603 = vsel %vm1600, %v1601, %v1602
      %v1604 = vrot.slane %v1524, 1
      %v1605 = vsel %vm1600, %v1602, %v1604
      %v1606 = vrot.slane %v1525, 1
      %v1607 = vsel %vm1600, %v1604, %v1606
      %v1608 = vrot.slane %v1526, 1
      %v1609 = vsel %vm1600, %v1606, %v1608
      %v1610 = vrot.slane %v1527, 1
      %v1611 = vsel %vm1600, %v1608, %v1610
      %v1612 = vrot.slane %v1528, 1
      %v1613 = vsel %vm1600, %v1610, %v1612
      %v1614 = vrot.slane %v1529, 1
      %v1615 = vsel %vm1600, %v1612, %v1614
      %v1616 = vrot.slane %v1530, 1
      %v1617 = vsel %vm1600, %v1614, %v1616
      %v1618 = vrot.slane %v1531, 1
      %v1619 = vsel %vm1600, %v1616, %v1618
      %v1620 = vrot.slane %v1532, 1
      %v1621 = vsel %vm1600, %v1618, %v1620
      %v1622 = vrot.slane %v1533, 1
      %v1623 = vsel %vm1600, %v1620, %v1622
      %v1624 = vrot.slane %v1534, 1
      %v1625 = vsel %vm1600, %v1622, %v1624
      %v1626 = vrot.slane %v1535, 1
      %v1627 = vsel %vm1600, %v1624, %v1626
      %v1628 = vrot.slane %v1536, 1
      %v1629 = vsel %vm1600, %v1626, %v1628
      %v1630 = vrot.slane %v1537, 1
      %v1631 = vsel %vm1600, %v1628, %v1630
      %v1632 = vrot.slane %v1538, 1
      %v1633 = vsel %vm1600, %v1630, %v1632
      %v1634 = vrot.slane %v1539, 1
      %v1635 = vsel %vm1600, %v1632, %v1634
      %v1636 = vrot.slane %v1540, 1
      %v1637 = vsel %vm1600, %v1634, %v1636
      %v1638 = vrot.slane %v1541, 1
      %v1639 = vsel %vm1600, %v1636, %v1638
      %v1640 = vrot.slane %v1542, 1
      %v1641 = vsel %vm1600, %v1638, %v1640
      %v1642 = vrot.slane %v1543, 1
      %v1643 = vsel %vm1600, %v1640, %v1642
      %v1644 = vrot.slane %v1544, 1
      %v1645 = vsel %vm1600, %v1642, %v1644
      %v1646 = vrot.slane %v1545, 1
      %v1647 = vsel %vm1600, %v1644, %v1646
      %v1648 = vrot.slane %v1546, 1
      %v1649 = vsel %vm1600, %v1646, %v1648
      %v1650 = vrot.slane %v1547, 1
      %v1651 = vsel %vm1600, %v1648, %v1650
      %v1652 = vrot.slane %v1548, 1
      %v1653 = vsel %vm1600, %v1650, %v1652
      %v1654 = vrot.slane %v1549, 1
      %v1655 = vsel %vm1600, %v1652, %v1654
      %v1656 = vrot.slane %v1550, 1
      %v1657 = vsel %vm1600, %v1654, %v1656
      %v1658 = vrot.slane %v1551, 1
      %v1659 = vsel %vm1600, %v1656, %v1658
      %v1660 = vrot.slane %v1552, 1
      %v1661 = vsel %vm1600, %v1658, %v1660
      %v1662 = vrot.slane %v1553, 1
      %v1663 = vsel %vm1600, %v1660, %v1662
      %v1664 = vrot.slane %v1554, 1
      %v1665 = vsel %vm1600, %v1662, %v1664
      %v1666 = vrot.slane %v1555, 1
      %v1667 = vsel %vm1600, %v1664, %v1666
      %v1668 = vrot.slane %v1556, 1
      %v1669 = vsel %vm1600, %v1666, %v1668
      %v1670 = vrot.slane %v1557, 1
      %v1671 = vsel %vm1600, %v1668, %v1670
      %v1672 = vrot.slane %v1558, 1
      %v1673 = vsel %vm1600, %v1670, %v1672
      %1674 = vrot.lane.b32.xlu0 %v1603, 3
      %v1675 = vpop.permute.xlu0 %1674
      %1676 = vrot.lane.b32.xlu0 %v1605, 3
      %v1677 = vpop.permute.xlu0 %1676
      %1678 = vrot.lane.b32.xlu0 %v1607, 3
      %v1679 = vpop.permute.xlu0 %1678
      %1680 = vrot.lane.b32.xlu0 %v1609, 3
      %v1681 = vpop.permute.xlu0 %1680
      %1682 = vrot.lane.b32.xlu0 %v1611, 3
      %v1683 = vpop.permute.xlu0 %1682
      %1684 = vrot.lane.b32.xlu0 %v1613, 3
      %v1685 = vpop.permute.xlu0 %1684
      %1686 = vrot.lane.b32.xlu0 %v1615, 3
      %v1687 = vpop.permute.xlu0 %1686
      %1688 = vrot.lane.b32.xlu0 %v1617, 3
      %v1689 = vpop.permute.xlu0 %1688
      %1690 = vrot.lane.b32.xlu0 %v1619, 3
      %v1691 = vpop.permute.xlu0 %1690
      %1692 = vrot.lane.b32.xlu0 %v1621, 3
      %v1693 = vpop.permute.xlu0 %1692
      %1694 = vrot.lane.b32.xlu0 %v1623, 3
      %v1695 = vpop.permute.xlu0 %1694
      %1696 = vrot.lane.b32.xlu0 %v1625, 3
      %v1697 = vpop.permute.xlu0 %1696
      %1698 = vrot.lane.b32.xlu0 %v1627, 3
      %v1699 = vpop.permute.xlu0 %1698
      %1700 = vrot.lane.b32.xlu0 %v1629, 3
      %v1701 = vpop.permute.xlu0 %1700
      %1702 = vrot.lane.b32.xlu0 %v1631, 3
      %v1703 = vpop.permute.xlu0 %1702
      %1704 = vrot.lane.b32.xlu0 %v1633, 3
      %v1705 = vpop.permute.xlu0 %1704
      %1706 = vrot.lane.b32.xlu0 %v1635, 3
      %v1707 = vpop.permute.xlu0 %1706
      %1708 = vrot.lane.b32.xlu0 %v1637, 3
      %v1709 = vpop.permute.xlu0 %1708
      %1710 = vrot.lane.b32.xlu0 %v1639, 3
      %v1711 = vpop.permute.xlu0 %1710
      %1712 = vrot.lane.b32.xlu0 %v1641, 3
      %v1713 = vpop.permute.xlu0 %1712
      %1714 = vrot.lane.b32.xlu0 %v1643, 3
      %v1715 = vpop.permute.xlu0 %1714
      %1716 = vrot.lane.b32.xlu0 %v1645, 3
      %v1717 = vpop.permute.xlu0 %1716
      %1718 = vrot.lane.b32.xlu0 %v1647, 3
      %v1719 = vpop.permute.xlu0 %1718
      %1720 = vrot.lane.b32.xlu0 %v1649, 3
      %v1721 = vpop.permute.xlu0 %1720
      %1722 = vrot.lane.b32.xlu0 %v1651, 3
      %v1723 = vpop.permute.xlu0 %1722
      %1724 = vrot.lane.b32.xlu0 %v1653, 3
      %v1725 = vpop.permute.xlu0 %1724
      %1726 = vrot.lane.b32.xlu0 %v1655, 3
      %v1727 = vpop.permute.xlu0 %1726
      %1728 = vrot.lane.b32.xlu0 %v1657, 3
      %v1729 = vpop.permute.xlu0 %1728
      %1730 = vrot.lane.b32.xlu0 %v1659, 3
      %v1731 = vpop.permute.xlu0 %1730
      %1732 = vrot.lane.b32.xlu0 %v1661, 3
      %v1733 = vpop.permute.xlu0 %1732
      %1734 = vrot.lane.b32.xlu0 %v1663, 3
      %v1735 = vpop.permute.xlu0 %1734
      %1736 = vrot.lane.b32.xlu0 %v1665, 3
      %v1737 = vpop.permute.xlu0 %1736
      %1738 = vrot.lane.b32.xlu0 %v1667, 3
      %v1739 = vpop.permute.xlu0 %1738
      %1740 = vrot.lane.b32.xlu0 %v1669, 3
      %v1741 = vpop.permute.xlu0 %1740
      %1742 = vrot.lane.b32.xlu0 %v1671, 3
      %v1743 = vpop.permute.xlu0 %1742
      %1744 = vrot.lane.b32.xlu0 %v1673, 3
      %v1745 = vpop.permute.xlu0 %1744
      %vm1782 = vcmask 1045504
      %v1783 = vrot.slane %v1522, 2
      %v1784 = vrot.slane %v1523, 2
      %v1785 = vsel %vm1782, %v1783, %v1784
      %v1786 = vrot.slane %v1524, 2
      %v1787 = vsel %vm1782, %v1784, %v1786
      %v1788 = vrot.slane %v1525, 2
      %v1789 = vsel %vm1782, %v1786, %v1788
      %v1790 = vrot.slane %v1526, 2
      %v1791 = vsel %vm1782, %v1788, %v1790
      %v1792 = vrot.slane %v1527, 2
      %v1793 = vsel %vm1782, %v1790, %v1792
      %v1794 = vrot.slane %v1528, 2
      %v1795 = vsel %vm1782, %v1792, %v1794
      %v1796 = vrot.slane %v1529, 2
      %v1797 = vsel %vm1782, %v1794, %v1796
      %v1798 = vrot.slane %v1530, 2
      %v1799 = vsel %vm1782, %v1796, %v1798
      %v1800 = vrot.slane %v1531, 2
      %v1801 = vsel %vm1782, %v1798, %v1800
      %v1802 = vrot.slane %v1532, 2
      %v1803 = vsel %vm1782, %v1800, %v1802
      %v1804 = vrot.slane %v1533, 2
      %v1805 = vsel %vm1782, %v1802, %v1804
      %v1806 = vrot.slane %v1534, 2
      %v1807 = vsel %vm1782, %v1804, %v1806
      %v1808 = vrot.slane %v1535, 2
      %v1809 = vsel %vm1782, %v1806, %v1808
      %v1810 = vrot.slane %v1536, 2
      %v1811 = vsel %vm1782, %v1808, %v1810
      %v1812 = vrot.slane %v1537, 2
      %v1813 = vsel %vm1782, %v1810, %v1812
      %v1814 = vrot.slane %v1538, 2
      %v1815 = vsel %vm1782, %v1812, %v1814
      %v1816 = vrot.slane %v1539, 2
      %v1817 = vsel %vm1782, %v1814, %v1816
      %v1818 = vrot.slane %v1540, 2
      %v1819 = vsel %vm1782, %v1816, %v1818
      %v1820 = vrot.slane %v1541, 2
      %v1821 = vsel %vm1782, %v1818, %v1820
      %v1822 = vrot.slane %v1542, 2
      %v1823 = vsel %vm1782, %v1820, %v1822
      %v1824 = vrot.slane %v1543, 2
      %v1825 = vsel %vm1782, %v1822, %v1824
      %v1826 = vrot.slane %v1544, 2
      %v1827 = vsel %vm1782, %v1824, %v1826
      %v1828 = vrot.slane %v1545, 2
      %v1829 = vsel %vm1782, %v1826, %v1828
      %v1830 = vrot.slane %v1546, 2
      %v1831 = vsel %vm1782, %v1828, %v1830
      %v1832 = vrot.slane %v1547, 2
      %v1833 = vsel %vm1782, %v1830, %v1832
      %v1834 = vrot.slane %v1548, 2
      %v1835 = vsel %vm1782, %v1832, %v1834
      %v1836 = vrot.slane %v1549, 2
      %v1837 = vsel %vm1782, %v1834, %v1836
      %v1838 = vrot.slane %v1550, 2
      %v1839 = vsel %vm1782, %v1836, %v1838
      %v1840 = vrot.slane %v1551, 2
      %v1841 = vsel %vm1782, %v1838, %v1840
      %v1842 = vrot.slane %v1552, 2
      %v1843 = vsel %vm1782, %v1840, %v1842
      %v1844 = vrot.slane %v1553, 2
      %v1845 = vsel %vm1782, %v1842, %v1844
      %v1846 = vrot.slane %v1554, 2
      %v1847 = vsel %vm1782, %v1844, %v1846
      %v1848 = vrot.slane %v1555, 2
      %v1849 = vsel %vm1782, %v1846, %v1848
      %v1850 = vrot.slane %v1556, 2
      %v1851 = vsel %vm1782, %v1848, %v1850
      %v1852 = vrot.slane %v1557, 2
      %v1853 = vsel %vm1782, %v1850, %v1852
      %v1854 = vrot.slane %v1558, 2
      %v1855 = vsel %vm1782, %v1852, %v1854
      %1856 = vrot.lane.b32.xlu0 %v1785, 6
      %v1857 = vpop.permute.xlu0 %1856
      %1858 = vrot.lane.b32.xlu0 %v1787, 6
      %v1859 = vpop.permute.xlu0 %1858
      %1860 = vrot.lane.b32.xlu0 %v1789, 6
      %v1861 = vpop.permute.xlu0 %1860
      %1862 = vrot.lane.b32.xlu0 %v1791, 6
      %v1863 = vpop.permute.xlu0 %1862
      %1864 = vrot.lane.b32.xlu0 %v1793, 6
      %v1865 = vpop.permute.xlu0 %1864
      %1866 = vrot.lane.b32.xlu0 %v1795, 6
      %v1867 = vpop.permute.xlu0 %1866
      %1868 = vrot.lane.b32.xlu0 %v1797, 6
      %v1869 = vpop.permute.xlu0 %1868
      %1870 = vrot.lane.b32.xlu0 %v1799, 6
      %v1871 = vpop.permute.xlu0 %1870
      %1872 = vrot.lane.b32.xlu0 %v1801, 6
      %v1873 = vpop.permute.xlu0 %1872
      %1874 = vrot.lane.b32.xlu0 %v1803, 6
      %v1875 = vpop.permute.xlu0 %1874
      %1876 = vrot.lane.b32.xlu0 %v1805, 6
      %v1877 = vpop.permute.xlu0 %1876
      %1878 = vrot.lane.b32.xlu0 %v1807, 6
      %v1879 = vpop.permute.xlu0 %1878
      %1880 = vrot.lane.b32.xlu0 %v1809, 6
      %v1881 = vpop.permute.xlu0 %1880
      %1882 = vrot.lane.b32.xlu0 %v1811, 6
      %v1883 = vpop.permute.xlu0 %1882
      %1884 = vrot.lane.b32.xlu0 %v1813, 6
      %v1885 = vpop.permute.xlu0 %1884
      %1886 = vrot.lane.b32.xlu0 %v1815, 6
      %v1887 = vpop.permute.xlu0 %1886
      %1888 = vrot.lane.b32.xlu0 %v1817, 6
      %v1889 = vpop.permute.xlu0 %1888
      %1890 = vrot.lane.b32.xlu0 %v1819, 6
      %v1891 = vpop.permute.xlu0 %1890
      %1892 = vrot.lane.b32.xlu0 %v1821, 6
      %v1893 = vpop.permute.xlu0 %1892
      %1894 = vrot.lane.b32.xlu0 %v1823, 6
      %v1895 = vpop.permute.xlu0 %1894
      %1896 = vrot.lane.b32.xlu0 %v1825, 6
      %v1897 = vpop.permute.xlu0 %1896
      %1898 = vrot.lane.b32.xlu0 %v1827, 6
      %v1899 = vpop.permute.xlu0 %1898
      %1900 = vrot.lane.b32.xlu0 %v1829, 6
      %v1901 = vpop.permute.xlu0 %1900
      %1902 = vrot.lane.b32.xlu0 %v1831, 6
      %v1903 = vpop.permute.xlu0 %1902
      %1904 = vrot.lane.b32.xlu0 %v1833, 6
      %v1905 = vpop.permute.xlu0 %1904
      %1906 = vrot.lane.b32.xlu0 %v1835, 6
      %v1907 = vpop.permute.xlu0 %1906
      %1908 = vrot.lane.b32.xlu0 %v1837, 6
      %v1909 = vpop.permute.xlu0 %1908
      %1910 = vrot.lane.b32.xlu0 %v1839, 6
      %v1911 = vpop.permute.xlu0 %1910
      %1912 = vrot.lane.b32.xlu0 %v1841, 6
      %v1913 = vpop.permute.xlu0 %1912
      %1914 = vrot.lane.b32.xlu0 %v1843, 6
      %v1915 = vpop.permute.xlu0 %1914
      %1916 = vrot.lane.b32.xlu0 %v1845, 6
      %v1917 = vpop.permute.xlu0 %1916
      %1918 = vrot.lane.b32.xlu0 %v1847, 6
      %v1919 = vpop.permute.xlu0 %1918
      %1920 = vrot.lane.b32.xlu0 %v1849, 6
      %v1921 = vpop.permute.xlu0 %1920
      %1922 = vrot.lane.b32.xlu0 %v1851, 6
      %v1923 = vpop.permute.xlu0 %1922
      %1924 = vrot.lane.b32.xlu0 %v1853, 6
      %v1925 = vpop.permute.xlu0 %1924
      %1926 = vrot.lane.b32.xlu0 %v1855, 6
      %v1927 = vpop.permute.xlu0 %1926
      %v1966 = vrot.slane %v1559, 2
      %v1967 = vsel %vm1782, %v1854, %v1966
      %v1968 = vrot.slane %v1560, 2
      %v1969 = vsel %vm1782, %v1966, %v1968
      %1970 = vrot.lane.b32.xlu0 %v1789, 9
      %v1971 = vpop.permute.xlu0 %1970
      %1972 = vrot.lane.b32.xlu0 %v1791, 9
      %v1973 = vpop.permute.xlu0 %1972
      %1974 = vrot.lane.b32.xlu0 %v1793, 9
      %v1975 = vpop.permute.xlu0 %1974
      %1976 = vrot.lane.b32.xlu0 %v1795, 9
      %v1977 = vpop.permute.xlu0 %1976
      %1978 = vrot.lane.b32.xlu0 %v1797, 9
      %v1979 = vpop.permute.xlu0 %1978
      %1980 = vrot.lane.b32.xlu0 %v1799, 9
      %v1981 = vpop.permute.xlu0 %1980
      %1982 = vrot.lane.b32.xlu0 %v1801, 9
      %v1983 = vpop.permute.xlu0 %1982
      %1984 = vrot.lane.b32.xlu0 %v1803, 9
      %v1985 = vpop.permute.xlu0 %1984
      %1986 = vrot.lane.b32.xlu0 %v1805, 9
      %v1987 = vpop.permute.xlu0 %1986
      %1988 = vrot.lane.b32.xlu0 %v1807, 9
      %v1989 = vpop.permute.xlu0 %1988
      %1990 = vrot.lane.b32.xlu0 %v1809, 9
      %v1991 = vpop.permute.xlu0 %1990
      %1992 = vrot.lane.b32.xlu0 %v1811, 9
      %v1993 = vpop.permute.xlu0 %1992
      %1994 = vrot.lane.b32.xlu0 %v1813, 9
      %v1995 = vpop.permute.xlu0 %1994
      %1996 = vrot.lane.b32.xlu0 %v1815, 9
      %v1997 = vpop.permute.xlu0 %1996
      %1998 = vrot.lane.b32.xlu0 %v1817, 9
      %v1999 = vpop.permute.xlu0 %1998
      %2000 = vrot.lane.b32.xlu0 %v1819, 9
      %v2001 = vpop.permute.xlu0 %2000
      %2002 = vrot.lane.b32.xlu0 %v1821, 9
      %v2003 = vpop.permute.xlu0 %2002
      %2004 = vrot.lane.b32.xlu0 %v1823, 9
      %v2005 = vpop.permute.xlu0 %2004
      %2006 = vrot.lane.b32.xlu0 %v1825, 9
      %v2007 = vpop.permute.xlu0 %2006
      %2008 = vrot.lane.b32.xlu0 %v1827, 9
      %v2009 = vpop.permute.xlu0 %2008
      %2010 = vrot.lane.b32.xlu0 %v1829, 9
      %v2011 = vpop.permute.xlu0 %2010
      %2012 = vrot.lane.b32.xlu0 %v1831, 9
      %v2013 = vpop.permute.xlu0 %2012
      %2014 = vrot.lane.b32.xlu0 %v1833, 9
      %v2015 = vpop.permute.xlu0 %2014
      %2016 = vrot.lane.b32.xlu0 %v1835, 9
      %v2017 = vpop.permute.xlu0 %2016
      %2018 = vrot.lane.b32.xlu0 %v1837, 9
      %v2019 = vpop.permute.xlu0 %2018
      %2020 = vrot.lane.b32.xlu0 %v1839, 9
      %v2021 = vpop.permute.xlu0 %2020
      %2022 = vrot.lane.b32.xlu0 %v1841, 9
      %v2023 = vpop.permute.xlu0 %2022
      %2024 = vrot.lane.b32.xlu0 %v1843, 9
      %v2025 = vpop.permute.xlu0 %2024
      %2026 = vrot.lane.b32.xlu0 %v1845, 9
      %v2027 = vpop.permute.xlu0 %2026
      %2028 = vrot.lane.b32.xlu0 %v1847, 9
      %v2029 = vpop.permute.xlu0 %2028
      %2030 = vrot.lane.b32.xlu0 %v1849, 9
      %v2031 = vpop.permute.xlu0 %2030
      %2032 = vrot.lane.b32.xlu0 %v1851, 9
      %v2033 = vpop.permute.xlu0 %2032
      %2034 = vrot.lane.b32.xlu0 %v1853, 9
      %v2035 = vpop.permute.xlu0 %2034
      %2036 = vrot.lane.b32.xlu0 %v1855, 9
      %v2037 = vpop.permute.xlu0 %2036
      %2038 = vrot.lane.b32.xlu0 %v1967, 9
      %v2039 = vpop.permute.xlu0 %2038
      %2040 = vrot.lane.b32.xlu0 %v1969, 9
      %v2041 = vpop.permute.xlu0 %2040
      %vm2078 = vcmask 1044480
      %v2079 = vrot.slane %v1524, 3
      %v2080 = vrot.slane %v1525, 3
      %v2081 = vsel %vm2078, %v2079, %v2080
      %v2082 = vrot.slane %v1526, 3
      %v2083 = vsel %vm2078, %v2080, %v2082
      %v2084 = vrot.slane %v1527, 3
      %v2085 = vsel %vm2078, %v2082, %v2084
      %v2086 = vrot.slane %v1528, 3
      %v2087 = vsel %vm2078, %v2084, %v2086
      %v2088 = vrot.slane %v1529, 3
      %v2089 = vsel %vm2078, %v2086, %v2088
      %v2090 = vrot.slane %v1530, 3
      %v2091 = vsel %vm2078, %v2088, %v2090
      %v2092 = vrot.slane %v1531, 3
      %v2093 = vsel %vm2078, %v2090, %v2092
      %v2094 = vrot.slane %v1532, 3
      %v2095 = vsel %vm2078, %v2092, %v2094
      %v2096 = vrot.slane %v1533, 3
      %v2097 = vsel %vm2078, %v2094, %v2096
      %v2098 = vrot.slane %v1534, 3
      %v2099 = vsel %vm2078, %v2096, %v2098
      %v2100 = vrot.slane %v1535, 3
      %v2101 = vsel %vm2078, %v2098, %v2100
      %v2102 = vrot.slane %v1536, 3
      %v2103 = vsel %vm2078, %v2100, %v2102
      %v2104 = vrot.slane %v1537, 3
      %v2105 = vsel %vm2078, %v2102, %v2104
      %v2106 = vrot.slane %v1538, 3
      %v2107 = vsel %vm2078, %v2104, %v2106
      %v2108 = vrot.slane %v1539, 3
      %v2109 = vsel %vm2078, %v2106, %v2108
      %v2110 = vrot.slane %v1540, 3
      %v2111 = vsel %vm2078, %v2108, %v2110
      %v2112 = vrot.slane %v1541, 3
      %v2113 = vsel %vm2078, %v2110, %v2112
      %v2114 = vrot.slane %v1542, 3
      %v2115 = vsel %vm2078, %v2112, %v2114
      %v2116 = vrot.slane %v1543, 3
      %v2117 = vsel %vm2078, %v2114, %v2116
      %v2118 = vrot.slane %v1544, 3
      %v2119 = vsel %vm2078, %v2116, %v2118
      %v2120 = vrot.slane %v1545, 3
      %v2121 = vsel %vm2078, %v2118, %v2120
      %v2122 = vrot.slane %v1546, 3
      %v2123 = vsel %vm2078, %v2120, %v2122
      %v2124 = vrot.slane %v1547, 3
      %v2125 = vsel %vm2078, %v2122, %v2124
      %v2126 = vrot.slane %v1548, 3
      %v2127 = vsel %vm2078, %v2124, %v2126
      %v2128 = vrot.slane %v1549, 3
      %v2129 = vsel %vm2078, %v2126, %v2128
      %v2130 = vrot.slane %v1550, 3
      %v2131 = vsel %vm2078, %v2128, %v2130
      %v2132 = vrot.slane %v1551, 3
      %v2133 = vsel %vm2078, %v2130, %v2132
      %v2134 = vrot.slane %v1552, 3
      %v2135 = vsel %vm2078, %v2132, %v2134
      %v2136 = vrot.slane %v1553, 3
      %v2137 = vsel %vm2078, %v2134, %v2136
      %v2138 = vrot.slane %v1554, 3
      %v2139 = vsel %vm2078, %v2136, %v2138
      %v2140 = vrot.slane %v1555, 3
      %v2141 = vsel %vm2078, %v2138, %v2140
      %v2142 = vrot.slane %v1556, 3
      %v2143 = vsel %vm2078, %v2140, %v2142
      %v2144 = vrot.slane %v1557, 3
      %v2145 = vsel %vm2078, %v2142, %v2144
      %v2146 = vrot.slane %v1558, 3
      %v2147 = vsel %vm2078, %v2144, %v2146
      %v2148 = vrot.slane %v1559, 3
      %v2149 = vsel %vm2078, %v2146, %v2148
      %v2150 = vrot.slane %v1560, 3
      %v2151 = vsel %vm2078, %v2148, %v2150
      %2152 = vrot.lane.b32.xlu0 %v2081, 12
      %v2153 = vpop.permute.xlu0 %2152
      %2154 = vrot.lane.b32.xlu0 %v2083, 12
      %v2155 = vpop.permute.xlu0 %2154
      %2156 = vrot.lane.b32.xlu0 %v2085, 12
      %v2157 = vpop.permute.xlu0 %2156
      %2158 = vrot.lane.b32.xlu0 %v2087, 12
      %v2159 = vpop.permute.xlu0 %2158
      %2160 = vrot.lane.b32.xlu0 %v2089, 12
      %v2161 = vpop.permute.xlu0 %2160
      %2162 = vrot.lane.b32.xlu0 %v2091, 12
      %v2163 = vpop.permute.xlu0 %2162
      %2164 = vrot.lane.b32.xlu0 %v2093, 12
      %v2165 = vpop.permute.xlu0 %2164
      %2166 = vrot.lane.b32.xlu0 %v2095, 12
      %v2167 = vpop.permute.xlu0 %2166
      %2168 = vrot.lane.b32.xlu0 %v2097, 12
      %v2169 = vpop.permute.xlu0 %2168
      %2170 = vrot.lane.b32.xlu0 %v2099, 12
      %v2171 = vpop.permute.xlu0 %2170
      %2172 = vrot.lane.b32.xlu0 %v2101, 12
      %v2173 = vpop.permute.xlu0 %2172
      %2174 = vrot.lane.b32.xlu0 %v2103, 12
      %v2175 = vpop.permute.xlu0 %2174
      %2176 = vrot.lane.b32.xlu0 %v2105, 12
      %v2177 = vpop.permute.xlu0 %2176
      %2178 = vrot.lane.b32.xlu0 %v2107, 12
      %v2179 = vpop.permute.xlu0 %2178
      %2180 = vrot.lane.b32.xlu0 %v2109, 12
      %v2181 = vpop.permute.xlu0 %2180
      %2182 = vrot.lane.b32.xlu0 %v2111, 12
      %v2183 = vpop.permute.xlu0 %2182
      %2184 = vrot.lane.b32.xlu0 %v2113, 12
      %v2185 = vpop.permute.xlu0 %2184
      %2186 = vrot.lane.b32.xlu0 %v2115, 12
      %v2187 = vpop.permute.xlu0 %2186
      %2188 = vrot.lane.b32.xlu0 %v2117, 12
      %v2189 = vpop.permute.xlu0 %2188
      %2190 = vrot.lane.b32.xlu0 %v2119, 12
      %v2191 = vpop.permute.xlu0 %2190
      %2192 = vrot.lane.b32.xlu0 %v2121, 12
      %v2193 = vpop.permute.xlu0 %2192
      %2194 = vrot.lane.b32.xlu0 %v2123, 12
      %v2195 = vpop.permute.xlu0 %2194
      %2196 = vrot.lane.b32.xlu0 %v2125, 12
      %v2197 = vpop.permute.xlu0 %2196
      %2198 = vrot.lane.b32.xlu0 %v2127, 12
      %v2199 = vpop.permute.xlu0 %2198
      %2200 = vrot.lane.b32.xlu0 %v2129, 12
      %v2201 = vpop.permute.xlu0 %2200
      %2202 = vrot.lane.b32.xlu0 %v2131, 12
      %v2203 = vpop.permute.xlu0 %2202
      %2204 = vrot.lane.b32.xlu0 %v2133, 12
      %v2205 = vpop.permute.xlu0 %2204
      %2206 = vrot.lane.b32.xlu0 %v2135, 12
      %v2207 = vpop.permute.xlu0 %2206
      %2208 = vrot.lane.b32.xlu0 %v2137, 12
      %v2209 = vpop.permute.xlu0 %2208
      %2210 = vrot.lane.b32.xlu0 %v2139, 12
      %v2211 = vpop.permute.xlu0 %2210
      %2212 = vrot.lane.b32.xlu0 %v2141, 12
      %v2213 = vpop.permute.xlu0 %2212
      %2214 = vrot.lane.b32.xlu0 %v2143, 12
      %v2215 = vpop.permute.xlu0 %2214
      %2216 = vrot.lane.b32.xlu0 %v2145, 12
      %v2217 = vpop.permute.xlu0 %2216
      %2218 = vrot.lane.b32.xlu0 %v2147, 12
      %v2219 = vpop.permute.xlu0 %2218
      %2220 = vrot.lane.b32.xlu0 %v2149, 12
      %v2221 = vpop.permute.xlu0 %2220
      %2222 = vrot.lane.b32.xlu0 %v2151, 12
      %v2223 = vpop.permute.xlu0 %2222
      %vm2260 = vcmask 1043456
      %v2261 = vrot.slane %v1524, 4
      %v2262 = vrot.slane %v1525, 4
      %v2263 = vsel %vm2260, %v2261, %v2262
      %v2264 = vrot.slane %v1526, 4
      %v2265 = vsel %vm2260, %v2262, %v2264
      %v2266 = vrot.slane %v1527, 4
      %v2267 = vsel %vm2260, %v2264, %v2266
      %v2268 = vrot.slane %v1528, 4
      %v2269 = vsel %vm2260, %v2266, %v2268
      %v2270 = vrot.slane %v1529, 4
      %v2271 = vsel %vm2260, %v2268, %v2270
      %v2272 = vrot.slane %v1530, 4
      %v2273 = vsel %vm2260, %v2270, %v2272
      %v2274 = vrot.slane %v1531, 4
      %v2275 = vsel %vm2260, %v2272, %v2274
      %v2276 = vrot.slane %v1532, 4
      %v2277 = vsel %vm2260, %v2274, %v2276
      %v2278 = vrot.slane %v1533, 4
      %v2279 = vsel %vm2260, %v2276, %v2278
      %v2280 = vrot.slane %v1534, 4
      %v2281 = vsel %vm2260, %v2278, %v2280
      %v2282 = vrot.slane %v1535, 4
      %v2283 = vsel %vm2260, %v2280, %v2282
      %v2284 = vrot.slane %v1536, 4
      %v2285 = vsel %vm2260, %v2282, %v2284
      %v2286 = vrot.slane %v1537, 4
      %v2287 = vsel %vm2260, %v2284, %v2286
      %v2288 = vrot.slane %v1538, 4
      %v2289 = vsel %vm2260, %v2286, %v2288
      %v2290 = vrot.slane %v1539, 4
      %v2291 = vsel %vm2260, %v2288, %v2290
      %v2292 = vrot.slane %v1540, 4
      %v2293 = vsel %vm2260, %v2290, %v2292
      %v2294 = vrot.slane %v1541, 4
      %v2295 = vsel %vm2260, %v2292, %v2294
      %v2296 = vrot.slane %v1542, 4
      %v2297 = vsel %vm2260, %v2294, %v2296
      %v2298 = vrot.slane %v1543, 4
      %v2299 = vsel %vm2260, %v2296, %v2298
      %v2300 = vrot.slane %v1544, 4
      %v2301 = vsel %vm2260, %v2298, %v2300
      %v2302 = vrot.slane %v1545, 4
      %v2303 = vsel %vm2260, %v2300, %v2302
      %v2304 = vrot.slane %v1546, 4
      %v2305 = vsel %vm2260, %v2302, %v2304
      %v2306 = vrot.slane %v1547, 4
      %v2307 = vsel %vm2260, %v2304, %v2306
      %v2308 = vrot.slane %v1548, 4
      %v2309 = vsel %vm2260, %v2306, %v2308
      %v2310 = vrot.slane %v1549, 4
      %v2311 = vsel %vm2260, %v2308, %v2310
      %v2312 = vrot.slane %v1550, 4
      %v2313 = vsel %vm2260, %v2310, %v2312
      %v2314 = vrot.slane %v1551, 4
      %v2315 = vsel %vm2260, %v2312, %v2314
      %v2316 = vrot.slane %v1552, 4
      %v2317 = vsel %vm2260, %v2314, %v2316
      %v2318 = vrot.slane %v1553, 4
      %v2319 = vsel %vm2260, %v2316, %v2318
      %v2320 = vrot.slane %v1554, 4
      %v2321 = vsel %vm2260, %v2318, %v2320
      %v2322 = vrot.slane %v1555, 4
      %v2323 = vsel %vm2260, %v2320, %v2322
      %v2324 = vrot.slane %v1556, 4
      %v2325 = vsel %vm2260, %v2322, %v2324
      %v2326 = vrot.slane %v1557, 4
      %v2327 = vsel %vm2260, %v2324, %v2326
      %v2328 = vrot.slane %v1558, 4
      %v2329 = vsel %vm2260, %v2326, %v2328
      %v2330 = vrot.slane %v1559, 4
      %v2331 = vsel %vm2260, %v2328, %v2330
      %v2332 = vrot.slane %v1560, 4
      %v2333 = vsel %vm2260, %v2330, %v2332
      %2334 = vrot.lane.b32.xlu0 %v2263, 15
      %v2335 = vpop.permute.xlu0 %2334
      %2336 = vrot.lane.b32.xlu0 %v2265, 15
      %v2337 = vpop.permute.xlu0 %2336
      %2338 = vrot.lane.b32.xlu0 %v2267, 15
      %v2339 = vpop.permute.xlu0 %2338
      %2340 = vrot.lane.b32.xlu0 %v2269, 15
      %v2341 = vpop.permute.xlu0 %2340
      %2342 = vrot.lane.b32.xlu0 %v2271, 15
      %v2343 = vpop.permute.xlu0 %2342
      %2344 = vrot.lane.b32.xlu0 %v2273, 15
      %v2345 = vpop.permute.xlu0 %2344
      %2346 = vrot.lane.b32.xlu0 %v2275, 15
      %v2347 = vpop.permute.xlu0 %2346
      %2348 = vrot.lane.b32.xlu0 %v2277, 15
      %v2349 = vpop.permute.xlu0 %2348
      %2350 = vrot.lane.b32.xlu0 %v2279, 15
      %v2351 = vpop.permute.xlu0 %2350
      %2352 = vrot.lane.b32.xlu0 %v2281, 15
      %v2353 = vpop.permute.xlu0 %2352
      %2354 = vrot.lane.b32.xlu0 %v2283, 15
      %v2355 = vpop.permute.xlu0 %2354
      %2356 = vrot.lane.b32.xlu0 %v2285, 15
      %v2357 = vpop.permute.xlu0 %2356
      %2358 = vrot.lane.b32.xlu0 %v2287, 15
      %v2359 = vpop.permute.xlu0 %2358
      %2360 = vrot.lane.b32.xlu0 %v2289, 15
      %v2361 = vpop.permute.xlu0 %2360
      %2362 = vrot.lane.b32.xlu0 %v2291, 15
      %v2363 = vpop.permute.xlu0 %2362
      %2364 = vrot.lane.b32.xlu0 %v2293, 15
      %v2365 = vpop.permute.xlu0 %2364
      %2366 = vrot.lane.b32.xlu0 %v2295, 15
      %v2367 = vpop.permute.xlu0 %2366
      %2368 = vrot.lane.b32.xlu0 %v2297, 15
      %v2369 = vpop.permute.xlu0 %2368
      %2370 = vrot.lane.b32.xlu0 %v2299, 15
      %v2371 = vpop.permute.xlu0 %2370
      %2372 = vrot.lane.b32.xlu0 %v2301, 15
      %v2373 = vpop.permute.xlu0 %2372
      %2374 = vrot.lane.b32.xlu0 %v2303, 15
      %v2375 = vpop.permute.xlu0 %2374
      %2376 = vrot.lane.b32.xlu0 %v2305, 15
      %v2377 = vpop.permute.xlu0 %2376
      %2378 = vrot.lane.b32.xlu0 %v2307, 15
      %v2379 = vpop.permute.xlu0 %2378
      %2380 = vrot.lane.b32.xlu0 %v2309, 15
      %v2381 = vpop.permute.xlu0 %2380
      %2382 = vrot.lane.b32.xlu0 %v2311, 15
      %v2383 = vpop.permute.xlu0 %2382
      %2384 = vrot.lane.b32.xlu0 %v2313, 15
      %v2385 = vpop.permute.xlu0 %2384
      %2386 = vrot.lane.b32.xlu0 %v2315, 15
      %v2387 = vpop.permute.xlu0 %2386
      %2388 = vrot.lane.b32.xlu0 %v2317, 15
      %v2389 = vpop.permute.xlu0 %2388
      %2390 = vrot.lane.b32.xlu0 %v2319, 15
      %v2391 = vpop.permute.xlu0 %2390
      %2392 = vrot.lane.b32.xlu0 %v2321, 15
      %v2393 = vpop.permute.xlu0 %2392
      %2394 = vrot.lane.b32.xlu0 %v2323, 15
      %v2395 = vpop.permute.xlu0 %2394
      %2396 = vrot.lane.b32.xlu0 %v2325, 15
      %v2397 = vpop.permute.xlu0 %2396
      %2398 = vrot.lane.b32.xlu0 %v2327, 15
      %v2399 = vpop.permute.xlu0 %2398
      %2400 = vrot.lane.b32.xlu0 %v2329, 15
      %v2401 = vpop.permute.xlu0 %2400
      %2402 = vrot.lane.b32.xlu0 %v2331, 15
      %v2403 = vpop.permute.xlu0 %2402
      %2404 = vrot.lane.b32.xlu0 %v2333, 15
      %v2405 = vpop.permute.xlu0 %2404
      %v2444 = vrot.slane %v1561, 4
      %v2445 = vsel %vm2260, %v2332, %v2444
      %v2446 = vrot.slane %v1562, 4
      %v2447 = vsel %vm2260, %v2444, %v2446
      %2448 = vrot.lane.b32.xlu0 %v2267, 18
      %v2449 = vpop.permute.xlu0 %2448
      %2450 = vrot.lane.b32.xlu0 %v2269, 18
      %v2451 = vpop.permute.xlu0 %2450
      %2452 = vrot.lane.b32.xlu0 %v2271, 18
      %v2453 = vpop.permute.xlu0 %2452
      %2454 = vrot.lane.b32.xlu0 %v2273, 18
      %v2455 = vpop.permute.xlu0 %2454
      %2456 = vrot.lane.b32.xlu0 %v2275, 18
      %v2457 = vpop.permute.xlu0 %2456
      %2458 = vrot.lane.b32.xlu0 %v2277, 18
      %v2459 = vpop.permute.xlu0 %2458
      %2460 = vrot.lane.b32.xlu0 %v2279, 18
      %v2461 = vpop.permute.xlu0 %2460
      %2462 = vrot.lane.b32.xlu0 %v2281, 18
      %v2463 = vpop.permute.xlu0 %2462
      %2464 = vrot.lane.b32.xlu0 %v2283, 18
      %v2465 = vpop.permute.xlu0 %2464
      %2466 = vrot.lane.b32.xlu0 %v2285, 18
      %v2467 = vpop.permute.xlu0 %2466
      %2468 = vrot.lane.b32.xlu0 %v2287, 18
      %v2469 = vpop.permute.xlu0 %2468
      %2470 = vrot.lane.b32.xlu0 %v2289, 18
      %v2471 = vpop.permute.xlu0 %2470
      %2472 = vrot.lane.b32.xlu0 %v2291, 18
      %v2473 = vpop.permute.xlu0 %2472
      %2474 = vrot.lane.b32.xlu0 %v2293, 18
      %v2475 = vpop.permute.xlu0 %2474
      %2476 = vrot.lane.b32.xlu0 %v2295, 18
      %v2477 = vpop.permute.xlu0 %2476
      %2478 = vrot.lane.b32.xlu0 %v2297, 18
      %v2479 = vpop.permute.xlu0 %2478
      %2480 = vrot.lane.b32.xlu0 %v2299, 18
      %v2481 = vpop.permute.xlu0 %2480
      %2482 = vrot.lane.b32.xlu0 %v2301, 18
      %v2483 = vpop.permute.xlu0 %2482
      %2484 = vrot.lane.b32.xlu0 %v2303, 18
      %v2485 = vpop.permute.xlu0 %2484
      %2486 = vrot.lane.b32.xlu0 %v2305, 18
      %v2487 = vpop.permute.xlu0 %2486
      %2488 = vrot.lane.b32.xlu0 %v2307, 18
      %v2489 = vpop.permute.xlu0 %2488
      %2490 = vrot.lane.b32.xlu0 %v2309, 18
      %v2491 = vpop.permute.xlu0 %2490
      %2492 = vrot.lane.b32.xlu0 %v2311, 18
      %v2493 = vpop.permute.xlu0 %2492
      %2494 = vrot.lane.b32.xlu0 %v2313, 18
      %v2495 = vpop.permute.xlu0 %2494
      %2496 = vrot.lane.b32.xlu0 %v2315, 18
      %v2497 = vpop.permute.xlu0 %2496
      %2498 = vrot.lane.b32.xlu0 %v2317, 18
      %v2499 = vpop.permute.xlu0 %2498
      %2500 = vrot.lane.b32.xlu0 %v2319, 18
      %v2501 = vpop.permute.xlu0 %2500
      %2502 = vrot.lane.b32.xlu0 %v2321, 18
      %v2503 = vpop.permute.xlu0 %2502
      %2504 = vrot.lane.b32.xlu0 %v2323, 18
      %v2505 = vpop.permute.xlu0 %2504
      %2506 = vrot.lane.b32.xlu0 %v2325, 18
      %v2507 = vpop.permute.xlu0 %2506
      %2508 = vrot.lane.b32.xlu0 %v2327, 18
      %v2509 = vpop.permute.xlu0 %2508
      %2510 = vrot.lane.b32.xlu0 %v2329, 18
      %v2511 = vpop.permute.xlu0 %2510
      %2512 = vrot.lane.b32.xlu0 %v2331, 18
      %v2513 = vpop.permute.xlu0 %2512
      %2514 = vrot.lane.b32.xlu0 %v2333, 18
      %v2515 = vpop.permute.xlu0 %2514
      %2516 = vrot.lane.b32.xlu0 %v2445, 18
      %v2517 = vpop.permute.xlu0 %2516
      %2518 = vrot.lane.b32.xlu0 %v2447, 18
      %v2519 = vpop.permute.xlu0 %2518
      %vm2556 = vcmask 1042432
      %v2557 = vrot.slane %v1526, 5
      %v2558 = vrot.slane %v1527, 5
      %v2559 = vsel %vm2556, %v2557, %v2558
      %v2560 = vrot.slane %v1528, 5
      %v2561 = vsel %vm2556, %v2558, %v2560
      %v2562 = vrot.slane %v1529, 5
      %v2563 = vsel %vm2556, %v2560, %v2562
      %v2564 = vrot.slane %v1530, 5
      %v2565 = vsel %vm2556, %v2562, %v2564
      %v2566 = vrot.slane %v1531, 5
      %v2567 = vsel %vm2556, %v2564, %v2566
      %v2568 = vrot.slane %v1532, 5
      %v2569 = vsel %vm2556, %v2566, %v2568
      %v2570 = vrot.slane %v1533, 5
      %v2571 = vsel %vm2556, %v2568, %v2570
      %v2572 = vrot.slane %v1534, 5
      %v2573 = vsel %vm2556, %v2570, %v2572
      %v2574 = vrot.slane %v1535, 5
      %v2575 = vsel %vm2556, %v2572, %v2574
      %v2576 = vrot.slane %v1536, 5
      %v2577 = vsel %vm2556, %v2574, %v2576
      %v2578 = vrot.slane %v1537, 5
      %v2579 = vsel %vm2556, %v2576, %v2578
      %v2580 = vrot.slane %v1538, 5
      %v2581 = vsel %vm2556, %v2578, %v2580
      %v2582 = vrot.slane %v1539, 5
      %v2583 = vsel %vm2556, %v2580, %v2582
      %v2584 = vrot.slane %v1540, 5
      %v2585 = vsel %vm2556, %v2582, %v2584
      %v2586 = vrot.slane %v1541, 5
      %v2587 = vsel %vm2556, %v2584, %v2586
      %v2588 = vrot.slane %v1542, 5
      %v2589 = vsel %vm2556, %v2586, %v2588
      %v2590 = vrot.slane %v1543, 5
      %v2591 = vsel %vm2556, %v2588, %v2590
      %v2592 = vrot.slane %v1544, 5
      %v2593 = vsel %vm2556, %v2590, %v2592
      %v2594 = vrot.slane %v1545, 5
      %v2595 = vsel %vm2556, %v2592, %v2594
      %v2596 = vrot.slane %v1546, 5
      %v2597 = vsel %vm2556, %v2594, %v2596
      %v2598 = vrot.slane %v1547, 5
      %v2599 = vsel %vm2556, %v2596, %v2598
      %v2600 = vrot.slane %v1548, 5
      %v2601 = vsel %vm2556, %v2598, %v2600
      %v2602 = vrot.slane %v1549, 5
      %v2603 = vsel %vm2556, %v2600, %v2602
      %v2604 = vrot.slane %v1550, 5
      %v2605 = vsel %vm2556, %v2602, %v2604
      %v2606 = vrot.slane %v1551, 5
      %v2607 = vsel %vm2556, %v2604, %v2606
      %v2608 = vrot.slane %v1552, 5
      %v2609 = vsel %vm2556, %v2606, %v2608
      %v2610 = vrot.slane %v1553, 5
      %v2611 = vsel %vm2556, %v2608, %v2610
      %v2612 = vrot.slane %v1554, 5
      %v2613 = vsel %vm2556, %v2610, %v2612
      %v2614 = vrot.slane %v1555, 5
      %v2615 = vsel %vm2556, %v2612, %v2614
      %v2616 = vrot.slane %v1556, 5
      %v2617 = vsel %vm2556, %v2614, %v2616
      %v2618 = vrot.slane %v1557, 5
      %v2619 = vsel %vm2556, %v2616, %v2618
      %v2620 = vrot.slane %v1558, 5
      %v2621 = vsel %vm2556, %v2618, %v2620
      %v2622 = vrot.slane %v1559, 5
      %v2623 = vsel %vm2556, %v2620, %v2622
      %v2624 = vrot.slane %v1560, 5
      %v2625 = vsel %vm2556, %v2622, %v2624
      %v2626 = vrot.slane %v1561, 5
      %v2627 = vsel %vm2556, %v2624, %v2626
      %v2628 = vrot.slane %v1562, 5
      %v2629 = vsel %vm2556, %v2626, %v2628
      %2630 = vrot.lane.b32.xlu0 %v2559, 21
      %v2631 = vpop.permute.xlu0 %2630
      %2632 = vrot.lane.b32.xlu0 %v2561, 21
      %v2633 = vpop.permute.xlu0 %2632
      %2634 = vrot.lane.b32.xlu0 %v2563, 21
      %v2635 = vpop.permute.xlu0 %2634
      %2636 = vrot.lane.b32.xlu0 %v2565, 21
      %v2637 = vpop.permute.xlu0 %2636
      %2638 = vrot.lane.b32.xlu0 %v2567, 21
      %v2639 = vpop.permute.xlu0 %2638
      %2640 = vrot.lane.b32.xlu0 %v2569, 21
      %v2641 = vpop.permute.xlu0 %2640
      %2642 = vrot.lane.b32.xlu0 %v2571, 21
      %v2643 = vpop.permute.xlu0 %2642
      %2644 = vrot.lane.b32.xlu0 %v2573, 21
      %v2645 = vpop.permute.xlu0 %2644
      %2646 = vrot.lane.b32.xlu0 %v2575, 21
      %v2647 = vpop.permute.xlu0 %2646
      %2648 = vrot.lane.b32.xlu0 %v2577, 21
      %v2649 = vpop.permute.xlu0 %2648
      %2650 = vrot.lane.b32.xlu0 %v2579, 21
      %v2651 = vpop.permute.xlu0 %2650
      %2652 = vrot.lane.b32.xlu0 %v2581, 21
      %v2653 = vpop.permute.xlu0 %2652
      %2654 = vrot.lane.b32.xlu0 %v2583, 21
      %v2655 = vpop.permute.xlu0 %2654
      %2656 = vrot.lane.b32.xlu0 %v2585, 21
      %v2657 = vpop.permute.xlu0 %2656
      %2658 = vrot.lane.b32.xlu0 %v2587, 21
      %v2659 = vpop.permute.xlu0 %2658
      %2660 = vrot.lane.b32.xlu0 %v2589, 21
      %v2661 = vpop.permute.xlu0 %2660
      %2662 = vrot.lane.b32.xlu0 %v2591, 21
      %v2663 = vpop.permute.xlu0 %2662
      %2664 = vrot.lane.b32.xlu0 %v2593, 21
      %v2665 = vpop.permute.xlu0 %2664
      %2666 = vrot.lane.b32.xlu0 %v2595, 21
      %v2667 = vpop.permute.xlu0 %2666
      %2668 = vrot.lane.b32.xlu0 %v2597, 21
      %v2669 = vpop.permute.xlu0 %2668
      %2670 = vrot.lane.b32.xlu0 %v2599, 21
      %v2671 = vpop.permute.xlu0 %2670
      %2672 = vrot.lane.b32.xlu0 %v2601, 21
      %v2673 = vpop.permute.xlu0 %2672
      %2674 = vrot.lane.b32.xlu0 %v2603, 21
      %v2675 = vpop.permute.xlu0 %2674
      %2676 = vrot.lane.b32.xlu0 %v2605, 21
      %v2677 = vpop.permute.xlu0 %2676
      %2678 = vrot.lane.b32.xlu0 %v2607, 21
      %v2679 = vpop.permute.xlu0 %2678
      %2680 = vrot.lane.b32.xlu0 %v2609, 21
      %v2681 = vpop.permute.xlu0 %2680
      %2682 = vrot.lane.b32.xlu0 %v2611, 21
      %v2683 = vpop.permute.xlu0 %2682
      %2684 = vrot.lane.b32.xlu0 %v2613, 21
      %v2685 = vpop.permute.xlu0 %2684
      %2686 = vrot.lane.b32.xlu0 %v2615, 21
      %v2687 = vpop.permute.xlu0 %2686
      %2688 = vrot.lane.b32.xlu0 %v2617, 21
      %v2689 = vpop.permute.xlu0 %2688
      %2690 = vrot.lane.b32.xlu0 %v2619, 21
      %v2691 = vpop.permute.xlu0 %2690
      %2692 = vrot.lane.b32.xlu0 %v2621, 21
      %v2693 = vpop.permute.xlu0 %2692
      %2694 = vrot.lane.b32.xlu0 %v2623, 21
      %v2695 = vpop.permute.xlu0 %2694
      %2696 = vrot.lane.b32.xlu0 %v2625, 21
      %v2697 = vpop.permute.xlu0 %2696
      %2698 = vrot.lane.b32.xlu0 %v2627, 21
      %v2699 = vpop.permute.xlu0 %2698
      %2700 = vrot.lane.b32.xlu0 %v2629, 21
      %v2701 = vpop.permute.xlu0 %2700
      %vm2738 = vcmask 1041408
      %v2739 = vrot.slane %v1526, 6
      %v2740 = vrot.slane %v1527, 6
      %v2741 = vsel %vm2738, %v2739, %v2740
      %v2742 = vrot.slane %v1528, 6
      %v2743 = vsel %vm2738, %v2740, %v2742
      %v2744 = vrot.slane %v1529, 6
      %v2745 = vsel %vm2738, %v2742, %v2744
      %v2746 = vrot.slane %v1530, 6
      %v2747 = vsel %vm2738, %v2744, %v2746
      %v2748 = vrot.slane %v1531, 6
      %v2749 = vsel %vm2738, %v2746, %v2748
      %v2750 = vrot.slane %v1532, 6
      %v2751 = vsel %vm2738, %v2748, %v2750
      %v2752 = vrot.slane %v1533, 6
      %v2753 = vsel %vm2738, %v2750, %v2752
      %v2754 = vrot.slane %v1534, 6
      %v2755 = vsel %vm2738, %v2752, %v2754
      %v2756 = vrot.slane %v1535, 6
      %v2757 = vsel %vm2738, %v2754, %v2756
      %v2758 = vrot.slane %v1536, 6
      %v2759 = vsel %vm2738, %v2756, %v2758
      %v2760 = vrot.slane %v1537, 6
      %v2761 = vsel %vm2738, %v2758, %v2760
      %v2762 = vrot.slane %v1538, 6
      %v2763 = vsel %vm2738, %v2760, %v2762
      %v2764 = vrot.slane %v1539, 6
      %v2765 = vsel %vm2738, %v2762, %v2764
      %v2766 = vrot.slane %v1540, 6
      %v2767 = vsel %vm2738, %v2764, %v2766
      %v2768 = vrot.slane %v1541, 6
      %v2769 = vsel %vm2738, %v2766, %v2768
      %v2770 = vrot.slane %v1542, 6
      %v2771 = vsel %vm2738, %v2768, %v2770
      %v2772 = vrot.slane %v1543, 6
      %v2773 = vsel %vm2738, %v2770, %v2772
      %v2774 = vrot.slane %v1544, 6
      %v2775 = vsel %vm2738, %v2772, %v2774
      %v2776 = vrot.slane %v1545, 6
      %v2777 = vsel %vm2738, %v2774, %v2776
      %v2778 = vrot.slane %v1546, 6
      %v2779 = vsel %vm2738, %v2776, %v2778
      %v2780 = vrot.slane %v1547, 6
      %v2781 = vsel %vm2738, %v2778, %v2780
      %v2782 = vrot.slane %v1548, 6
      %v2783 = vsel %vm2738, %v2780, %v2782
      %v2784 = vrot.slane %v1549, 6
      %v2785 = vsel %vm2738, %v2782, %v2784
      %v2786 = vrot.slane %v1550, 6
      %v2787 = vsel %vm2738, %v2784, %v2786
      %v2788 = vrot.slane %v1551, 6
      %v2789 = vsel %vm2738, %v2786, %v2788
      %v2790 = vrot.slane %v1552, 6
      %v2791 = vsel %vm2738, %v2788, %v2790
      %v2792 = vrot.slane %v1553, 6
      %v2793 = vsel %vm2738, %v2790, %v2792
      %v2794 = vrot.slane %v1554, 6
      %v2795 = vsel %vm2738, %v2792, %v2794
      %v2796 = vrot.slane %v1555, 6
      %v2797 = vsel %vm2738, %v2794, %v2796
      %v2798 = vrot.slane %v1556, 6
      %v2799 = vsel %vm2738, %v2796, %v2798
      %v2800 = vrot.slane %v1557, 6
      %v2801 = vsel %vm2738, %v2798, %v2800
      %v2802 = vrot.slane %v1558, 6
      %v2803 = vsel %vm2738, %v2800, %v2802
      %v2804 = vrot.slane %v1559, 6
      %v2805 = vsel %vm2738, %v2802, %v2804
      %v2806 = vrot.slane %v1560, 6
      %v2807 = vsel %vm2738, %v2804, %v2806
      %v2808 = vrot.slane %v1561, 6
      %v2809 = vsel %vm2738, %v2806, %v2808
      %v2810 = vrot.slane %v1562, 6
      %v2811 = vsel %vm2738, %v2808, %v2810
      %2812 = vrot.lane.b32.xlu0 %v2741, 24
      %v2813 = vpop.permute.xlu0 %2812
      %2814 = vrot.lane.b32.xlu0 %v2743, 24
      %v2815 = vpop.permute.xlu0 %2814
      %2816 = vrot.lane.b32.xlu0 %v2745, 24
      %v2817 = vpop.permute.xlu0 %2816
      %2818 = vrot.lane.b32.xlu0 %v2747, 24
      %v2819 = vpop.permute.xlu0 %2818
      %2820 = vrot.lane.b32.xlu0 %v2749, 24
      %v2821 = vpop.permute.xlu0 %2820
      %2822 = vrot.lane.b32.xlu0 %v2751, 24
      %v2823 = vpop.permute.xlu0 %2822
      %2824 = vrot.lane.b32.xlu0 %v2753, 24
      %v2825 = vpop.permute.xlu0 %2824
      %2826 = vrot.lane.b32.xlu0 %v2755, 24
      %v2827 = vpop.permute.xlu0 %2826
      %2828 = vrot.lane.b32.xlu0 %v2757, 24
      %v2829 = vpop.permute.xlu0 %2828
      %2830 = vrot.lane.b32.xlu0 %v2759, 24
      %v2831 = vpop.permute.xlu0 %2830
      %2832 = vrot.lane.b32.xlu0 %v2761, 24
      %v2833 = vpop.permute.xlu0 %2832
      %2834 = vrot.lane.b32.xlu0 %v2763, 24
      %v2835 = vpop.permute.xlu0 %2834
      %2836 = vrot.lane.b32.xlu0 %v2765, 24
      %v2837 = vpop.permute.xlu0 %2836
      %2838 = vrot.lane.b32.xlu0 %v2767, 24
      %v2839 = vpop.permute.xlu0 %2838
      %2840 = vrot.lane.b32.xlu0 %v2769, 24
      %v2841 = vpop.permute.xlu0 %2840
      %2842 = vrot.lane.b32.xlu0 %v2771, 24
      %v2843 = vpop.permute.xlu0 %2842
      %2844 = vrot.lane.b32.xlu0 %v2773, 24
      %v2845 = vpop.permute.xlu0 %2844
      %2846 = vrot.lane.b32.xlu0 %v2775, 24
      %v2847 = vpop.permute.xlu0 %2846
      %2848 = vrot.lane.b32.xlu0 %v2777, 24
      %v2849 = vpop.permute.xlu0 %2848
      %2850 = vrot.lane.b32.xlu0 %v2779, 24
      %v2851 = vpop.permute.xlu0 %2850
      %2852 = vrot.lane.b32.xlu0 %v2781, 24
      %v2853 = vpop.permute.xlu0 %2852
      %2854 = vrot.lane.b32.xlu0 %v2783, 24
      %v2855 = vpop.permute.xlu0 %2854
      %2856 = vrot.lane.b32.xlu0 %v2785, 24
      %v2857 = vpop.permute.xlu0 %2856
      %2858 = vrot.lane.b32.xlu0 %v2787, 24
      %v2859 = vpop.permute.xlu0 %2858
      %2860 = vrot.lane.b32.xlu0 %v2789, 24
      %v2861 = vpop.permute.xlu0 %2860
      %2862 = vrot.lane.b32.xlu0 %v2791, 24
      %v2863 = vpop.permute.xlu0 %2862
      %2864 = vrot.lane.b32.xlu0 %v2793, 24
      %v2865 = vpop.permute.xlu0 %2864
      %2866 = vrot.lane.b32.xlu0 %v2795, 24
      %v2867 = vpop.permute.xlu0 %2866
      %2868 = vrot.lane.b32.xlu0 %v2797, 24
      %v2869 = vpop.permute.xlu0 %2868
      %2870 = vrot.lane.b32.xlu0 %v2799, 24
      %v2871 = vpop.permute.xlu0 %2870
      %2872 = vrot.lane.b32.xlu0 %v2801, 24
      %v2873 = vpop.permute.xlu0 %2872
      %2874 = vrot.lane.b32.xlu0 %v2803, 24
      %v2875 = vpop.permute.xlu0 %2874
      %2876 = vrot.lane.b32.xlu0 %v2805, 24
      %v2877 = vpop.permute.xlu0 %2876
      %2878 = vrot.lane.b32.xlu0 %v2807, 24
      %v2879 = vpop.permute.xlu0 %2878
      %2880 = vrot.lane.b32.xlu0 %v2809, 24
      %v2881 = vpop.permute.xlu0 %2880
      %2882 = vrot.lane.b32.xlu0 %v2811, 24
      %v2883 = vpop.permute.xlu0 %2882
      %vm2920 = vcmask 23552
      %v2921 = vsel %vm2920, %v1522, %v1675
      %v2922 = vsel %vm2920, %v1523, %v1677
      %v2923 = vsel %vm2920, %v1524, %v1679
      %v2924 = vsel %vm2920, %v1525, %v1681
      %v2925 = vsel %vm2920, %v1526, %v1683
      %v2926 = vsel %vm2920, %v1527, %v1685
      %v2927 = vsel %vm2920, %v1528, %v1687
      %v2928 = vsel %vm2920, %v1529, %v1689
      %v2929 = vsel %vm2920, %v1530, %v1691
      %v2930 = vsel %vm2920, %v1531, %v1693
      %v2931 = vsel %vm2920, %v1532, %v1695
      %v2932 = vsel %vm2920, %v1533, %v1697
      %v2933 = vsel %vm2920, %v1534, %v1699
      %v2934 = vsel %vm2920, %v1535, %v1701
      %v2935 = vsel %vm2920, %v1536, %v1703
      %v2936 = vsel %vm2920, %v1537, %v1705
      %v2937 = vsel %vm2920, %v1538, %v1707
      %v2938 = vsel %vm2920, %v1539, %v1709
      %v2939 = vsel %vm2920, %v1540, %v1711
      %v2940 = vsel %vm2920, %v1541, %v1713
      %v2941 = vsel %vm2920, %v1542, %v1715
      %v2942 = vsel %vm2920, %v1543, %v1717
      %v2943 = vsel %vm2920, %v1544, %v1719
      %v2944 = vsel %vm2920, %v1545, %v1721
      %v2945 = vsel %vm2920, %v1546, %v1723
      %v2946 = vsel %vm2920, %v1547, %v1725
      %v2947 = vsel %vm2920, %v1548, %v1727
      %v2948 = vsel %vm2920, %v1549, %v1729
      %v2949 = vsel %vm2920, %v1550, %v1731
      %v2950 = vsel %vm2920, %v1551, %v1733
      %v2951 = vsel %vm2920, %v1552, %v1735
      %v2952 = vsel %vm2920, %v1553, %v1737
      %v2953 = vsel %vm2920, %v1554, %v1739
      %v2954 = vsel %vm2920, %v1555, %v1741
      %v2955 = vsel %vm2920, %v1556, %v1743
      %v2956 = vsel %vm2920, %v1557, %v1745
      %vm2957 = vcmask 48128
      %v2958 = vsel %vm2957, %v2921, %v1857
      %v2959 = vsel %vm2957, %v2922, %v1859
      %v2960 = vsel %vm2957, %v2923, %v1861
      %v2961 = vsel %vm2957, %v2924, %v1863
      %v2962 = vsel %vm2957, %v2925, %v1865
      %v2963 = vsel %vm2957, %v2926, %v1867
      %v2964 = vsel %vm2957, %v2927, %v1869
      %v2965 = vsel %vm2957, %v2928, %v1871
      %v2966 = vsel %vm2957, %v2929, %v1873
      %v2967 = vsel %vm2957, %v2930, %v1875
      %v2968 = vsel %vm2957, %v2931, %v1877
      %v2969 = vsel %vm2957, %v2932, %v1879
      %v2970 = vsel %vm2957, %v2933, %v1881
      %v2971 = vsel %vm2957, %v2934, %v1883
      %v2972 = vsel %vm2957, %v2935, %v1885
      %v2973 = vsel %vm2957, %v2936, %v1887
      %v2974 = vsel %vm2957, %v2937, %v1889
      %v2975 = vsel %vm2957, %v2938, %v1891
      %v2976 = vsel %vm2957, %v2939, %v1893
      %v2977 = vsel %vm2957, %v2940, %v1895
      %v2978 = vsel %vm2957, %v2941, %v1897
      %v2979 = vsel %vm2957, %v2942, %v1899
      %v2980 = vsel %vm2957, %v2943, %v1901
      %v2981 = vsel %vm2957, %v2944, %v1903
      %v2982 = vsel %vm2957, %v2945, %v1905
      %v2983 = vsel %vm2957, %v2946, %v1907
      %v2984 = vsel %vm2957, %v2947, %v1909
      %v2985 = vsel %vm2957, %v2948, %v1911
      %v2986 = vsel %vm2957, %v2949, %v1913
      %v2987 = vsel %vm2957, %v2950, %v1915
      %v2988 = vsel %vm2957, %v2951, %v1917
      %v2989 = vsel %vm2957, %v2952, %v1919
      %v2990 = vsel %vm2957, %v2953, %v1921
      %v2991 = vsel %vm2957, %v2954, %v1923
      %v2992 = vsel %vm2957, %v2955, %v1925
      %v2993 = vsel %vm2957, %v2956, %v1927
      %vm2994 = vcmask 72704
      %v2995 = vsel %vm2994, %v2958, %v1971
      %v2996 = vsel %vm2994, %v2959, %v1973
      %v2997 = vsel %vm2994, %v2960, %v1975
      %v2998 = vsel %vm2994, %v2961, %v1977
      %v2999 = vsel %vm2994, %v2962, %v1979
      %v3000 = vsel %vm2994, %v2963, %v1981
      %v3001 = vsel %vm2994, %v2964, %v1983
      %v3002 = vsel %vm2994, %v2965, %v1985
      %v3003 = vsel %vm2994, %v2966, %v1987
      %v3004 = vsel %vm2994, %v2967, %v1989
      %v3005 = vsel %vm2994, %v2968, %v1991
      %v3006 = vsel %vm2994, %v2969, %v1993
      %v3007 = vsel %vm2994, %v2970, %v1995
      %v3008 = vsel %vm2994, %v2971, %v1997
      %v3009 = vsel %vm2994, %v2972, %v1999
      %v3010 = vsel %vm2994, %v2973, %v2001
      %v3011 = vsel %vm2994, %v2974, %v2003
      %v3012 = vsel %vm2994, %v2975, %v2005
      %v3013 = vsel %vm2994, %v2976, %v2007
      %v3014 = vsel %vm2994, %v2977, %v2009
      %v3015 = vsel %vm2994, %v2978, %v2011
      %v3016 = vsel %vm2994, %v2979, %v2013
      %v3017 = vsel %vm2994, %v2980, %v2015
      %v3018 = vsel %vm2994, %v2981, %v2017
      %v3019 = vsel %vm2994, %v2982, %v2019
      %v3020 = vsel %vm2994, %v2983, %v2021
      %v3021 = vsel %vm2994, %v2984, %v2023
      %v3022 = vsel %vm2994, %v2985, %v2025
      %v3023 = vsel %vm2994, %v2986, %v2027
      %v3024 = vsel %vm2994, %v2987, %v2029
      %v3025 = vsel %vm2994, %v2988, %v2031
      %v3026 = vsel %vm2994, %v2989, %v2033
      %v3027 = vsel %vm2994, %v2990, %v2035
      %v3028 = vsel %vm2994, %v2991, %v2037
      %v3029 = vsel %vm2994, %v2992, %v2039
      %v3030 = vsel %vm2994, %v2993, %v2041
      %vm3031 = vcmask 97280
      %v3032 = vsel %vm3031, %v2995, %v2153
      %v3033 = vsel %vm3031, %v2996, %v2155
      %v3034 = vsel %vm3031, %v2997, %v2157
      %v3035 = vsel %vm3031, %v2998, %v2159
      %v3036 = vsel %vm3031, %v2999, %v2161
      %v3037 = vsel %vm3031, %v3000, %v2163
      %v3038 = vsel %vm3031, %v3001, %v2165
      %v3039 = vsel %vm3031, %v3002, %v2167
      %v3040 = vsel %vm3031, %v3003, %v2169
      %v3041 = vsel %vm3031, %v3004, %v2171
      %v3042 = vsel %vm3031, %v3005, %v2173
      %v3043 = vsel %vm3031, %v3006, %v2175
      %v3044 = vsel %vm3031, %v3007, %v2177
      %v3045 = vsel %vm3031, %v3008, %v2179
      %v3046 = vsel %vm3031, %v3009, %v2181
      %v3047 = vsel %vm3031, %v3010, %v2183
      %v3048 = vsel %vm3031, %v3011, %v2185
      %v3049 = vsel %vm3031, %v3012, %v2187
      %v3050 = vsel %vm3031, %v3013, %v2189
      %v3051 = vsel %vm3031, %v3014, %v2191
      %v3052 = vsel %vm3031, %v3015, %v2193
      %v3053 = vsel %vm3031, %v3016, %v2195
      %v3054 = vsel %vm3031, %v3017, %v2197
      %v3055 = vsel %vm3031, %v3018, %v2199
      %v3056 = vsel %vm3031, %v3019, %v2201
      %v3057 = vsel %vm3031, %v3020, %v2203
      %v3058 = vsel %vm3031, %v3021, %v2205
      %v3059 = vsel %vm3031, %v3022, %v2207
      %v3060 = vsel %vm3031, %v3023, %v2209
      %v3061 = vsel %vm3031, %v3024, %v2211
      %v3062 = vsel %vm3031, %v3025, %v2213
      %v3063 = vsel %vm3031, %v3026, %v2215
      %v3064 = vsel %vm3031, %v3027, %v2217
      %v3065 = vsel %vm3031, %v3028, %v2219
      %v3066 = vsel %vm3031, %v3029, %v2221
      %v3067 = vsel %vm3031, %v3030, %v2223
      %vm3068 = vcmask 121856
      %v3069 = vsel %vm3068, %v3032, %v2335
      %v3070 = vsel %vm3068, %v3033, %v2337
      %v3071 = vsel %vm3068, %v3034, %v2339
      %v3072 = vsel %vm3068, %v3035, %v2341
      %v3073 = vsel %vm3068, %v3036, %v2343
      %v3074 = vsel %vm3068, %v3037, %v2345
      %v3075 = vsel %vm3068, %v3038, %v2347
      %v3076 = vsel %vm3068, %v3039, %v2349
      %v3077 = vsel %vm3068, %v3040, %v2351
      %v3078 = vsel %vm3068, %v3041, %v2353
      %v3079 = vsel %vm3068, %v3042, %v2355
      %v3080 = vsel %vm3068, %v3043, %v2357
      %v3081 = vsel %vm3068, %v3044, %v2359
      %v3082 = vsel %vm3068, %v3045, %v2361
      %v3083 = vsel %vm3068, %v3046, %v2363
      %v3084 = vsel %vm3068, %v3047, %v2365
      %v3085 = vsel %vm3068, %v3048, %v2367
      %v3086 = vsel %vm3068, %v3049, %v2369
      %v3087 = vsel %vm3068, %v3050, %v2371
      %v3088 = vsel %vm3068, %v3051, %v2373
      %v3089 = vsel %vm3068, %v3052, %v2375
      %v3090 = vsel %vm3068, %v3053, %v2377
      %v3091 = vsel %vm3068, %v3054, %v2379
      %v3092 = vsel %vm3068, %v3055, %v2381
      %v3093 = vsel %vm3068, %v3056, %v2383
      %v3094 = vsel %vm3068, %v3057, %v2385
      %v3095 = vsel %vm3068, %v3058, %v2387
      %v3096 = vsel %vm3068, %v3059, %v2389
      %v3097 = vsel %vm3068, %v3060, %v2391
      %v3098 = vsel %vm3068, %v3061, %v2393
      %v3099 = vsel %vm3068, %v3062, %v2395
      %v3100 = vsel %vm3068, %v3063, %v2397
      %v3101 = vsel %vm3068, %v3064, %v2399
      %v3102 = vsel %vm3068, %v3065, %v2401
      %v3103 = vsel %vm3068, %v3066, %v2403
      %v3104 = vsel %vm3068, %v3067, %v2405
      %vm3105 = vcmask 146432
      %v3106 = vsel %vm3105, %v3069, %v2449
      %v3107 = vsel %vm3105, %v3070, %v2451
      %v3108 = vsel %vm3105, %v3071, %v2453
      %v3109 = vsel %vm3105, %v3072, %v2455
      %v3110 = vsel %vm3105, %v3073, %v2457
      %v3111 = vsel %vm3105, %v3074, %v2459
      %v3112 = vsel %vm3105, %v3075, %v2461
      %v3113 = vsel %vm3105, %v3076, %v2463
      %v3114 = vsel %vm3105, %v3077, %v2465
      %v3115 = vsel %vm3105, %v3078, %v2467
      %v3116 = vsel %vm3105, %v3079, %v2469
      %v3117 = vsel %vm3105, %v3080, %v2471
      %v3118 = vsel %vm3105, %v3081, %v2473
      %v3119 = vsel %vm3105, %v3082, %v2475
      %v3120 = vsel %vm3105, %v3083, %v2477
      %v3121 = vsel %vm3105, %v3084, %v2479
      %v3122 = vsel %vm3105, %v3085, %v2481
      %v3123 = vsel %vm3105, %v3086, %v2483
      %v3124 = vsel %vm3105, %v3087, %v2485
      %v3125 = vsel %vm3105, %v3088, %v2487
      %v3126 = vsel %vm3105, %v3089, %v2489
      %v3127 = vsel %vm3105, %v3090, %v2491
      %v3128 = vsel %vm3105, %v3091, %v2493
      %v3129 = vsel %vm3105, %v3092, %v2495
      %v3130 = vsel %vm3105, %v3093, %v2497
      %v3131 = vsel %vm3105, %v3094, %v2499
      %v3132 = vsel %vm3105, %v3095, %v2501
      %v3133 = vsel %vm3105, %v3096, %v2503
      %v3134 = vsel %vm3105, %v3097, %v2505
      %v3135 = vsel %vm3105, %v3098, %v2507
      %v3136 = vsel %vm3105, %v3099, %v2509
      %v3137 = vsel %vm3105, %v3100, %v2511
      %v3138 = vsel %vm3105, %v3101, %v2513
      %v3139 = vsel %vm3105, %v3102, %v2515
      %v3140 = vsel %vm3105, %v3103, %v2517
      %v3141 = vsel %vm3105, %v3104, %v2519
      %vm3142 = vcmask 171008
      %v3143 = vsel %vm3142, %v3106, %v2631
      %v3144 = vsel %vm3142, %v3107, %v2633
      %v3145 = vsel %vm3142, %v3108, %v2635
      %v3146 = vsel %vm3142, %v3109, %v2637
      %v3147 = vsel %vm3142, %v3110, %v2639
      %v3148 = vsel %vm3142, %v3111, %v2641
      %v3149 = vsel %vm3142, %v3112, %v2643
      %v3150 = vsel %vm3142, %v3113, %v2645
      %v3151 = vsel %vm3142, %v3114, %v2647
      %v3152 = vsel %vm3142, %v3115, %v2649
      %v3153 = vsel %vm3142, %v3116, %v2651
      %v3154 = vsel %vm3142, %v3117, %v2653
      %v3155 = vsel %vm3142, %v3118, %v2655
      %v3156 = vsel %vm3142, %v3119, %v2657
      %v3157 = vsel %vm3142, %v3120, %v2659
      %v3158 = vsel %vm3142, %v3121, %v2661
      %v3159 = vsel %vm3142, %v3122, %v2663
      %v3160 = vsel %vm3142, %v3123, %v2665
      %v3161 = vsel %vm3142, %v3124, %v2667
      %v3162 = vsel %vm3142, %v3125, %v2669
      %v3163 = vsel %vm3142, %v3126, %v2671
      %v3164 = vsel %vm3142, %v3127, %v2673
      %v3165 = vsel %vm3142, %v3128, %v2675
      %v3166 = vsel %vm3142, %v3129, %v2677
      %v3167 = vsel %vm3142, %v3130, %v2679
      %v3168 = vsel %vm3142, %v3131, %v2681
      %v3169 = vsel %vm3142, %v3132, %v2683
      %v3170 = vsel %vm3142, %v3133, %v2685
      %v3171 = vsel %vm3142, %v3134, %v2687
      %v3172 = vsel %vm3142, %v3135, %v2689
      %v3173 = vsel %vm3142, %v3136, %v2691
      %v3174 = vsel %vm3142, %v3137, %v2693
      %v3175 = vsel %vm3142, %v3138, %v2695
      %v3176 = vsel %vm3142, %v3139, %v2697
      %v3177 = vsel %vm3142, %v3140, %v2699
      %v3178 = vsel %vm3142, %v3141, %v2701
      %vm3179 = vcmask 195584
      %v3180 = vsel %vm3179, %v3143, %v2813
      %v3181 = vsel %vm3179, %v3144, %v2815
      %v3182 = vsel %vm3179, %v3145, %v2817
      %v3183 = vsel %vm3179, %v3146, %v2819
      %v3184 = vsel %vm3179, %v3147, %v2821
      %v3185 = vsel %vm3179, %v3148, %v2823
      %v3186 = vsel %vm3179, %v3149, %v2825
      %v3187 = vsel %vm3179, %v3150, %v2827
      %v3188 = vsel %vm3179, %v3151, %v2829
      %v3189 = vsel %vm3179, %v3152, %v2831
      %v3190 = vsel %vm3179, %v3153, %v2833
      %v3191 = vsel %vm3179, %v3154, %v2835
      %v3192 = vsel %vm3179, %v3155, %v2837
      %v3193 = vsel %vm3179, %v3156, %v2839
      %v3194 = vsel %vm3179, %v3157, %v2841
      %v3195 = vsel %vm3179, %v3158, %v2843
      %v3196 = vsel %vm3179, %v3159, %v2845
      %v3197 = vsel %vm3179, %v3160, %v2847
      %v3198 = vsel %vm3179, %v3161, %v2849
      %v3199 = vsel %vm3179, %v3162, %v2851
      %v3200 = vsel %vm3179, %v3163, %v2853
      %v3201 = vsel %vm3179, %v3164, %v2855
      %v3202 = vsel %vm3179, %v3165, %v2857
      %v3203 = vsel %vm3179, %v3166, %v2859
      %v3204 = vsel %vm3179, %v3167, %v2861
      %v3205 = vsel %vm3179, %v3168, %v2863
      %v3206 = vsel %vm3179, %v3169, %v2865
      %v3207 = vsel %vm3179, %v3170, %v2867
      %v3208 = vsel %vm3179, %v3171, %v2869
      %v3209 = vsel %vm3179, %v3172, %v2871
      %v3210 = vsel %vm3179, %v3173, %v2873
      %v3211 = vsel %vm3179, %v3174, %v2875
      %v3212 = vsel %vm3179, %v3175, %v2877
      %v3213 = vsel %vm3179, %v3176, %v2879
      %v3214 = vsel %vm3179, %v3177, %v2881
      %v3215 = vsel %vm3179, %v3178, %v2883
      %v3216 = vld [vmem:[%s1] sm:$0xff]
      %v3217 = vld [vmem:[%s1 + $0x8] sm:$0xff]
      %v3218 = vld [vmem:[%s1 + $0x10] sm:$0xff]
      %v3219 = vld [vmem:[%s1 + $0x18] sm:$0x7]
      %v3220 = vld [vmem:[%s2] sm:$0x1]
      %v3222 = vperm.slane %v3220, 0
      %vm3224 = vcmask 220160
      %v3226 = vsel %vm3224, %v3180, 0
      %v3229 = vsel %vm3224, %v3181, 0
      %v3232 = vsel %vm3224, %v3182, 0
      %v3235 = vsel %vm3224, %v3183, 0
      %v3238 = vsel %vm3224, %v3184, 0
      %v3241 = vsel %vm3224, %v3185, 0
      %v3244 = vsel %vm3224, %v3186, 0
      %v3247 = vsel %vm3224, %v3187, 0
      %v3250 = vsel %vm3224, %v3188, 0
      %v3253 = vsel %vm3224, %v3189, 0
      %v3256 = vsel %vm3224, %v3190, 0
      %v3259 = vsel %vm3224, %v3191, 0
      %v3262 = vsel %vm3224, %v3192, 0
      %v3265 = vsel %vm3224, %v3193, 0
      %v3268 = vsel %vm3224, %v3194, 0
      %v3271 = vsel %vm3224, %v3195, 0
      %v3274 = vsel %vm3224, %v3196, 0
      %v3277 = vsel %vm3224, %v3197, 0
      %v3280 = vsel %vm3224, %v3198, 0
      %v3283 = vsel %vm3224, %v3199, 0
      %v3286 = vsel %vm3224, %v3200, 0
      %v3289 = vsel %vm3224, %v3201, 0
      %v3292 = vsel %vm3224, %v3202, 0
      %v3295 = vsel %vm3224, %v3203, 0
      %v3298 = vsel %vm3224, %v3204, 0
      %v3301 = vsel %vm3224, %v3205, 0
      %v3304 = vsel %vm3224, %v3206, 0
      %v3307 = vsel %vm3224, %v3207, 0
      %v3310 = vsel %vm3224, %v3208, 0
      %v3313 = vsel %vm3224, %v3209, 0
      %v3316 = vsel %vm3224, %v3210, 0
      %v3319 = vsel %vm3224, %v3211, 0
      %v3322 = vsel %vm3224, %v3212, 0
      %v3325 = vsel %vm3224, %v3213, 0
      %v3328 = vsel %vm3224, %v3214, 0
      %v3331 = vsel %vm3224, %v3215, 0
      %v3334 = vsel %vm2556, %v3219, 0
      %3336 = vmatpush.msra.mxu0 0.0
      %3337 = vmatpush.msra.mxu0 0.0
      %3338 = vmatpush.msra.mxu0 0.0
      %3339 = vmatpush.msra.mxu0 0.0
      %3340 = vmatpush.msra.mxu0 0.0
      %3341 = vmatpush.msra.mxu0 0.0
      %3342 = vmatpush.msra.mxu0 0.0
      %3343 = vmatpush.msra.mxu0 0.0
      %3344 = vmatpush.msra.mxu0 0.0
      %3345 = vmatpush.msra.mxu0 0.0
      %3346 = vmatpush.msra.mxu0 0.0
      %3347 = vmatpush.msra.mxu0 0.0
      %3348 = vmatpush.msra.mxu0 %v3334
      %3349 = vmatpush.msra.mxu0 %v3218
      %3350 = vmatpush.msra.mxu0 %v3217
      %3351 = vmatpush.msra.mxu0 %v3216
      %3352 = vmatmul.f32.gmra.mxu0 %v3226
      %v3353 = vpop.f32.mrf.mxu0
      %v3354 = vadd.f32 %v3222, %v3353
      %3355 = vmatmul.f32.gmra.mxu0 %v3229
      %v3356 = vpop.f32.mrf.mxu0
      %v3357 = vadd.f32 %v3222, %v3356
      %3358 = vmatmul.f32.gmra.mxu0 %v3232
      %v3359 = vpop.f32.mrf.mxu0
      %v3360 = vadd.f32 %v3222, %v3359
      %3361 = vmatmul.f32.gmra.mxu0 %v3235
      %v3362 = vpop.f32.mrf.mxu0
      %v3363 = vadd.f32 %v3222, %v3362
      %3364 = vmatmul.f32.gmra.mxu0 %v3238
      %v3365 = vpop.f32.mrf.mxu0
      %v3366 = vadd.f32 %v3222, %v3365
      %3367 = vmatmul.f32.gmra.mxu0 %v3241
      %v3368 = vpop.f32.mrf.mxu0
      %v3369 = vadd.f32 %v3222, %v3368
      %3370 = vmatmul.f32.gmra.mxu0 %v3244
      %v3371 = vpop.f32.mrf.mxu0
      %v3372 = vadd.f32 %v3222, %v3371
      %3373 = vmatmul.f32.gmra.mxu0 %v3247
      %v3374 = vpop.f32.mrf.mxu0
      %v3375 = vadd.f32 %v3222, %v3374
      %3376 = vmatmul.f32.gmra.mxu0 %v3250
      %v3377 = vpop.f32.mrf.mxu0
      %v3378 = vadd.f32 %v3222, %v3377
      %3379 = vmatmul.f32.gmra.mxu0 %v3253
      %v3380 = vpop.f32.mrf.mxu0
      %v3381 = vadd.f32 %v3222, %v3380
      %3382 = vmatmul.f32.gmra.mxu0 %v3256
      %v3383 = vpop.f32.mrf.mxu0
      %v3384 = vadd.f32 %v3222, %v3383
      %3385 = vmatmul.f32.gmra.mxu0 %v3259
      %v3386 = vpop.f32.mrf.mxu0
      %v3387 = vadd.f32 %v3222, %v3386
      %3388 = vmatmul.f32.gmra.mxu0 %v3262
      %v3389 = vpop.f32.mrf.mxu0
      %v3390 = vadd.f32 %v3222, %v3389
      %3391 = vmatmul.f32.gmra.mxu0 %v3265
      %v3392 = vpop.f32.mrf.mxu0
      %v3393 = vadd.f32 %v3222, %v3392
      %3394 = vmatmul.f32.gmra.mxu0 %v3268
      %v3395 = vpop.f32.mrf.mxu0
      %v3396 = vadd.f32 %v3222, %v3395
      %3397 = vmatmul.f32.gmra.mxu0 %v3271
      %v3398 = vpop.f32.mrf.mxu0
      %v3399 = vadd.f32 %v3222, %v3398
      %3400 = vmatmul.f32.gmra.mxu0 %v3274
      %v3401 = vpop.f32.mrf.mxu0
      %v3402 = vadd.f32 %v3222, %v3401
      %3403 = vmatmul.f32.gmra.mxu0 %v3277
      %v3404 = vpop.f32.mrf.mxu0
      %v3405 = vadd.f32 %v3222, %v3404
      %3406 = vmatmul.f32.gmra.mxu0 %v3280
      %v3407 = vpop.f32.mrf.mxu0
      %v3408 = vadd.f32 %v3222, %v3407
      %3409 = vmatmul.f32.gmra.mxu0 %v3283
      %v3410 = vpop.f32.mrf.mxu0
      %v3411 = vadd.f32 %v3222, %v3410
      %3412 = vmatmul.f32.gmra.mxu0 %v3286
      %v3413 = vpop.f32.mrf.mxu0
      %v3414 = vadd.f32 %v3222, %v3413
      %3415 = vmatmul.f32.gmra.mxu0 %v3289
      %v3416 = vpop.f32.mrf.mxu0
      %v3417 = vadd.f32 %v3222, %v3416
      %3418 = vmatmul.f32.gmra.mxu0 %v3292
      %v3419 = vpop.f32.mrf.mxu0
      %v3420 = vadd.f32 %v3222, %v3419
      %3421 = vmatmul.f32.gmra.mxu0 %v3295
      %v3422 = vpop.f32.mrf.mxu0
      %v3423 = vadd.f32 %v3222, %v3422
      %3424 = vmatmul.f32.gmra.mxu0 %v3298
      %v3425 = vpop.f32.mrf.mxu0
      %v3426 = vadd.f32 %v3222, %v3425
      %3427 = vmatmul.f32.gmra.mxu0 %v3301
      %v3428 = vpop.f32.mrf.mxu0
      %v3429 = vadd.f32 %v3222, %v3428
      %3430 = vmatmul.f32.gmra.mxu0 %v3304
      %v3431 = vpop.f32.mrf.mxu0
      %v3432 = vadd.f32 %v3222, %v3431
      %3433 = vmatmul.f32.gmra.mxu0 %v3307
      %v3434 = vpop.f32.mrf.mxu0
      %v3435 = vadd.f32 %v3222, %v3434
      %3436 = vmatmul.f32.gmra.mxu0 %v3310
      %v3437 = vpop.f32.mrf.mxu0
      %v3438 = vadd.f32 %v3222, %v3437
      %3439 = vmatmul.f32.gmra.mxu0 %v3313
      %v3440 = vpop.f32.mrf.mxu0
      %v3441 = vadd.f32 %v3222, %v3440
      %3442 = vmatmul.f32.gmra.mxu0 %v3316
      %v3443 = vpop.f32.mrf.mxu0
      %v3444 = vadd.f32 %v3222, %v3443
      %3445 = vmatmul.f32.gmra.mxu0 %v3319
      %v3446 = vpop.f32.mrf.mxu0
      %v3447 = vadd.f32 %v3222, %v3446
      %3448 = vmatmul.f32.gmra.mxu0 %v3322
      %v3449 = vpop.f32.mrf.mxu0
      %v3450 = vadd.f32 %v3222, %v3449
      %3451 = vmatmul.f32.gmra.mxu0 %v3325
      %v3452 = vpop.f32.mrf.mxu0
      %v3453 = vadd.f32 %v3222, %v3452
      %3454 = vmatmul.f32.gmra.mxu0 %v3328
      %v3455 = vpop.f32.mrf.mxu0
      %v3456 = vadd.f32 %v3222, %v3455
      %3457 = vmatmul.f32.gmra.mxu0 %v3331
      %v3458 = vpop.f32.mrf.mxu0
      %v3459 = vadd.f32 %v3222, %v3458
      %3460 = vdwg.mxu0
      %v3461 = vmax.f32 %v3354, 0.0
      %v3462 = vmax.f32 %v3357, 0.0
      %v3463 = vmax.f32 %v3360, 0.0
      %v3464 = vmax.f32 %v3363, 0.0
      %v3465 = vmax.f32 %v3366, 0.0
      %v3466 = vmax.f32 %v3369, 0.0
      %v3467 = vmax.f32 %v3372, 0.0
      %v3468 = vmax.f32 %v3375, 0.0
      %v3469 = vmax.f32 %v3378, 0.0
      %v3470 = vmax.f32 %v3381, 0.0
      %v3471 = vmax.f32 %v3384, 0.0
      %v3472 = vmax.f32 %v3387, 0.0
      %v3473 = vmax.f32 %v3390, 0.0
      %v3474 = vmax.f32 %v3393, 0.0
      %v3475 = vmax.f32 %v3396, 0.0
      %v3476 = vmax.f32 %v3399, 0.0
      %v3477 = vmax.f32 %v3402, 0.0
      %v3478 = vmax.f32 %v3405, 0.0
      %v3479 = vmax.f32 %v3408, 0.0
      %v3480 = vmax.f32 %v3411, 0.0
      %v3481 = vmax.f32 %v3414, 0.0
      %v3482 = vmax.f32 %v3417, 0.0
      %v3483 = vmax.f32 %v3420, 0.0
      %v3484 = vmax.f32 %v3423, 0.0
      %v3485 = vmax.f32 %v3426, 0.0
      %v3486 = vmax.f32 %v3429, 0.0
      %v3487 = vmax.f32 %v3432, 0.0
      %v3488 = vmax.f32 %v3435, 0.0
      %v3489 = vmax.f32 %v3438, 0.0
      %v3490 = vmax.f32 %v3441, 0.0
      %v3491 = vmax.f32 %v3444, 0.0
      %v3492 = vmax.f32 %v3447, 0.0
      %v3493 = vmax.f32 %v3450, 0.0
      %v3494 = vmax.f32 %v3453, 0.0
      %v3495 = vmax.f32 %v3456, 0.0
      %v3496 = vmax.f32 %v3459, 0.0
      %v3497 = vsel %vm1486, 1, 0
      %v3498 = vsel %vm1487, 1, 0
      %v3499 = vsel %vm1488, 1, 0
      %v3500 = vsel %vm1489, 1, 0
      %v3501 = vsel %vm1490, 1, 0
      %v3502 = vsel %vm1491, 1, 0
      %v3503 = vsel %vm1492, 1, 0
      %v3504 = vsel %vm1493, 1, 0
      %v3505 = vsel %vm1494, 1, 0
      %v3506 = vsel %vm1495, 1, 0
      %v3507 = vsel %vm1496, 1, 0
      %v3508 = vsel %vm1497, 1, 0
      %v3509 = vsel %vm1498, 1, 0
      %v3510 = vsel %vm1499, 1, 0
      %v3511 = vsel %vm1500, 1, 0
      %v3512 = vsel %vm1501, 1, 0
      %v3513 = vsel %vm1502, 1, 0
      %v3514 = vsel %vm1503, 1, 0
      %v3515 = vsel %vm1504, 1, 0
      %v3516 = vsel %vm1505, 1, 0
      %v3517 = vsel %vm1506, 1, 0
      %v3518 = vsel %vm1507, 1, 0
      %v3519 = vsel %vm1508, 1, 0
      %v3520 = vsel %vm1509, 1, 0
      %v3521 = vsel %vm1510, 1, 0
      %v3522 = vsel %vm1511, 1, 0
      %v3523 = vsel %vm1512, 1, 0
      %v3524 = vsel %vm1513, 1, 0
      %v3525 = vsel %vm1514, 1, 0
      %v3526 = vsel %vm1515, 1, 0
      %v3527 = vsel %vm1516, 1, 0
      %v3528 = vsel %vm1517, 1, 0
      %v3529 = vsel %vm1518, 1, 0
      %v3530 = vsel %vm1519, 1, 0
      %v3531 = vsel %vm1520, 1, 0
      %v3532 = vsel %vm1521, 1, 0
      %vm3533 = vcmp.eq.s32.totalorder %v3497, 1
      %vm3534 = vcmp.eq.s32.totalorder %v3498, 1
      %vm3535 = vcmp.eq.s32.totalorder %v3499, 1
      %vm3536 = vcmp.eq.s32.totalorder %v3500, 1
      %vm3537 = vcmp.eq.s32.totalorder %v3501, 1
      %vm3538 = vcmp.eq.s32.totalorder %v3502, 1
      %vm3539 = vcmp.eq.s32.totalorder %v3503, 1
      %vm3540 = vcmp.eq.s32.totalorder %v3504, 1
      %vm3541 = vcmp.eq.s32.totalorder %v3505, 1
      %vm3542 = vcmp.eq.s32.totalorder %v3506, 1
      %vm3543 = vcmp.eq.s32.totalorder %v3507, 1
      %vm3544 = vcmp.eq.s32.totalorder %v3508, 1
      %vm3545 = vcmp.eq.s32.totalorder %v3509, 1
      %vm3546 = vcmp.eq.s32.totalorder %v3510, 1
      %vm3547 = vcmp.eq.s32.totalorder %v3511, 1
      %vm3548 = vcmp.eq.s32.totalorder %v3512, 1
      %vm3549 = vcmp.eq.s32.totalorder %v3513, 1
      %vm3550 = vcmp.eq.s32.totalorder %v3514, 1
      %vm3551 = vcmp.eq.s32.totalorder %v3515, 1
      %vm3552 = vcmp.eq.s32.totalorder %v3516, 1
      %vm3553 = vcmp.eq.s32.totalorder %v3517, 1
      %vm3554 = vcmp.eq.s32.totalorder %v3518, 1
      %vm3555 = vcmp.eq.s32.totalorder %v3519, 1
      %vm3556 = vcmp.eq.s32.totalorder %v3520, 1
      %vm3557 = vcmp.eq.s32.totalorder %v3521, 1
      %vm3558 = vcmp.eq.s32.totalorder %v3522, 1
      %vm3559 = vcmp.eq.s32.totalorder %v3523, 1
      %vm3560 = vcmp.eq.s32.totalorder %v3524, 1
      %vm3561 = vcmp.eq.s32.totalorder %v3525, 1
      %vm3562 = vcmp.eq.s32.totalorder %v3526, 1
      %vm3563 = vcmp.eq.s32.totalorder %v3527, 1
      %vm3564 = vcmp.eq.s32.totalorder %v3528, 1
      %vm3565 = vcmp.eq.s32.totalorder %v3529, 1
      %vm3566 = vcmp.eq.s32.totalorder %v3530, 1
      %vm3567 = vcmp.eq.s32.totalorder %v3531, 1
      %vm3568 = vcmp.eq.s32.totalorder %v3532, 1
      %v3569 = vsel %vm3533, %v3461, 0.0
      %v3570 = vsel %vm3534, %v3462, 0.0
      %v3571 = vsel %vm3535, %v3463, 0.0
      %v3572 = vsel %vm3536, %v3464, 0.0
      %v3573 = vsel %vm3537, %v3465, 0.0
      %v3574 = vsel %vm3538, %v3466, 0.0
      %v3575 = vsel %vm3539, %v3467, 0.0
      %v3576 = vsel %vm3540, %v3468, 0.0
      %v3577 = vsel %vm3541, %v3469, 0.0
      %v3578 = vsel %vm3542, %v3470, 0.0
      %v3579 = vsel %vm3543, %v3471, 0.0
      %v3580 = vsel %vm3544, %v3472, 0.0
      %v3581 = vsel %vm3545, %v3473, 0.0
      %v3582 = vsel %vm3546, %v3474, 0.0
      %v3583 = vsel %vm3547, %v3475, 0.0
      %v3584 = vsel %vm3548, %v3476, 0.0
      %v3585 = vsel %vm3549, %v3477, 0.0
      %v3586 = vsel %vm3550, %v3478, 0.0
      %v3587 = vsel %vm3551, %v3479, 0.0
      %v3588 = vsel %vm3552, %v3480, 0.0
      %v3589 = vsel %vm3553, %v3481, 0.0
      %v3590 = vsel %vm3554, %v3482, 0.0
      %v3591 = vsel %vm3555, %v3483, 0.0
      %v3592 = vsel %vm3556, %v3484, 0.0
      %v3593 = vsel %vm3557, %v3485, 0.0
      %v3594 = vsel %vm3558, %v3486, 0.0
      %v3595 = vsel %vm3559, %v3487, 0.0
      %v3596 = vsel %vm3560, %v3488, 0.0
      %v3597 = vsel %vm3561, %v3489, 0.0
      %v3598 = vsel %vm3562, %v3490, 0.0
      %v3599 = vsel %vm3563, %v3491, 0.0
      %v3600 = vsel %vm3564, %v3492, 0.0
      %v3601 = vsel %vm3565, %v3493, 0.0
      %v3602 = vsel %vm3566, %v3494, 0.0
      %v3603 = vsel %vm3567, %v3495, 0.0
      %v3604 = vsel %vm3568, %v3496, 0.0
      %vm3605 = vcmask 531456
      %3606 = vst.msk [vmem:[#allocation2] sm:$0xff] %vm3605, 0.0
      %3607 = vst.msk [vmem:[#allocation2 + $0x8] sm:$0xff] %vm3605, 0.0
      %3608 = vst.msk [vmem:[#allocation2 + $0x10] sm:$0xff] %vm3605, 0.0
      %3609 = vst.msk [vmem:[#allocation2 + $0x18] sm:$0xff] %vm3605, 0.0
      %3610 = vst.msk [vmem:[#allocation2 + $0x20] sm:$0xff] %vm3605, 0.0
      %3611 = vst.msk [vmem:[#allocation2 + $0x28] sm:$0xff] %vm3605, 0.0
      %3612 = vst.msk [vmem:[#allocation2 + $0x30] sm:$0xff] %vm3605, 0.0
      %3613 = vst.msk [vmem:[#allocation2 + $0x38] sm:$0xff] %vm3605, 0.0
      %3614 = vst.msk [vmem:[#allocation2 + $0x40] sm:$0xff] %vm3605, 0.0
      %3615 = vst.msk [vmem:[#allocation2 + $0x48] sm:$0xff] %vm3605, 0.0
      %3616 = vst.msk [vmem:[#allocation2 + $0x50] sm:$0xff] %vm3605, 0.0
      %3617 = vst.msk [vmem:[#allocation2 + $0x58] sm:$0xff] %vm3605, 0.0
      %3618 = vst.msk [vmem:[#allocation2 + $0x60] sm:$0xff] %vm3605, 0.0
      %3619 = vst.msk [vmem:[#allocation2 + $0x68] sm:$0xff] %vm3605, 0.0
      %3620 = vst.msk [vmem:[#allocation2 + $0x70] sm:$0xff] %vm3605, 0.0
      %3621 = vst.msk [vmem:[#allocation2 + $0x78] sm:$0xff] %vm3605, 0.0
      %3622 = vst.msk [vmem:[#allocation2 + $0x80] sm:$0xff] %vm3605, 0.0
      %3623 = vst.msk [vmem:[#allocation2 + $0x88] sm:$0xff] %vm3605, 0.0
      %3624 = vst.msk [vmem:[#allocation2 + $0x90] sm:$0xff] %vm3605, 0.0
      %3625 = vst.msk [vmem:[#allocation2 + $0x98] sm:$0xff] %vm3605, 0.0
      %3626 = vst.msk [vmem:[#allocation2 + $0xa0] sm:$0xff] %vm3605, 0.0
      %3627 = vst.msk [vmem:[#allocation2 + $0xa8] sm:$0xff] %vm3605, 0.0
      %3628 = vst.msk [vmem:[#allocation2 + $0xb0] sm:$0xff] %vm3605, 0.0
      %3629 = vst.msk [vmem:[#allocation2 + $0xb8] sm:$0xff] %vm3605, 0.0
      %3630 = vst.msk [vmem:[#allocation2 + $0xc0] sm:$0xff] %vm3605, 0.0
      %3631 = vst.msk [vmem:[#allocation2 + $0xc8] sm:$0xff] %vm3605, 0.0
      %3632 = vst.msk [vmem:[#allocation2 + $0xd0] sm:$0xff] %vm3605, 0.0
      %3633 = vst.msk [vmem:[#allocation2 + $0xd8] sm:$0xff] %vm3605, 0.0
      %3634 = vst.msk [vmem:[#allocation2 + $0xe0] sm:$0xff] %vm3605, 0.0
      %3635 = vst.msk [vmem:[#allocation2 + $0xe8] sm:$0xff] %vm3605, 0.0
      %3636 = vst.msk [vmem:[#allocation2 + $0xf0] sm:$0xff] %vm3605, 0.0
      %3637 = vst.msk [vmem:[#allocation2 + $0xf8] sm:$0xff] %vm3605, 0.0
      %3638 = vst.msk [vmem:[#allocation2 + $0x100] sm:$0xff] %vm3605, 0.0
      %3639 = vst.msk [vmem:[#allocation2 + $0x108] sm:$0xff] %vm3605, 0.0
      %3640 = vst.msk [vmem:[#allocation2 + $0x110] sm:$0xff] %vm3605, 0.0
      %3641 = vst.msk [vmem:[#allocation2 + $0x118] sm:$0xff] %vm3605, 0.0
      %3642 = vst.msk [vmem:[#allocation2 + $0x120] sm:$0xff] %vm3605, 0.0
      %3643 = vst.msk [vmem:[#allocation2 + $0x128] sm:$0xff] %vm3605, 0.0
      %3644 = vst.msk [vmem:[#allocation2 + $0x130] sm:$0xff] %vm3605, 0.0
      %3645 = vst.msk [vmem:[#allocation2 + $0x138] sm:$0xff] %vm3605, 0.0
      %3646 = vst.msk [vmem:[#allocation2 + $0x140] sm:$0xff] %vm3605, 0.0
      %3647 = vst.msk [vmem:[#allocation2 + $0x148] sm:$0xff] %vm3605, 0.0
      %vm3648 = vcmask 529408
      %3649 = vst.msk [vmem:[#allocation2 + $0x150] sm:$0x3f] %vm3648, 0.0
      %3650 = vst.msk [vmem:[#allocation2 + $0x13] sm:$0xff] %vm3605, %v3569
      %3651 = vst.msk [vmem:[#allocation2 + $0x1b] sm:$0xff] %vm3605, %v3570
      %3652 = vst.msk [vmem:[#allocation2 + $0x23] sm:$0xff] %vm3605, %v3571
      %3653 = vst.msk [vmem:[#allocation2 + $0x2b] sm:$0xff] %vm3605, %v3572
      %3654 = vst.msk [vmem:[#allocation2 + $0x33] sm:$0xff] %vm3605, %v3573
      %3655 = vst.msk [vmem:[#allocation2 + $0x3b] sm:$0xff] %vm3605, %v3574
      %3656 = vst.msk [vmem:[#allocation2 + $0x43] sm:$0xff] %vm3605, %v3575
      %3657 = vst.msk [vmem:[#allocation2 + $0x4b] sm:$0xff] %vm3605, %v3576
      %3658 = vst.msk [vmem:[#allocation2 + $0x53] sm:$0xff] %vm3605, %v3577
      %3659 = vst.msk [vmem:[#allocation2 + $0x5b] sm:$0xff] %vm3605, %v3578
      %3660 = vst.msk [vmem:[#allocation2 + $0x63] sm:$0xff] %vm3605, %v3579
      %3661 = vst.msk [vmem:[#allocation2 + $0x6b] sm:$0xff] %vm3605, %v3580
      %3662 = vst.msk [vmem:[#allocation2 + $0x73] sm:$0xff] %vm3605, %v3581
      %3663 = vst.msk [vmem:[#allocation2 + $0x7b] sm:$0xff] %vm3605, %v3582
      %3664 = vst.msk [vmem:[#allocation2 + $0x83] sm:$0xff] %vm3605, %v3583
      %3665 = vst.msk [vmem:[#allocation2 + $0x8b] sm:$0xff] %vm3605, %v3584
      %3666 = vst.msk [vmem:[#allocation2 + $0x93] sm:$0xff] %vm3605, %v3585
      %3667 = vst.msk [vmem:[#allocation2 + $0x9b] sm:$0xff] %vm3605, %v3586
      %3668 = vst.msk [vmem:[#allocation2 + $0xa3] sm:$0xff] %vm3605, %v3587
      %3669 = vst.msk [vmem:[#allocation2 + $0xab] sm:$0xff] %vm3605, %v3588
      %3670 = vst.msk [vmem:[#allocation2 + $0xb3] sm:$0xff] %vm3605, %v3589
      %3671 = vst.msk [vmem:[#allocation2 + $0xbb] sm:$0xff] %vm3605, %v3590
      %3672 = vst.msk [vmem:[#allocation2 + $0xc3] sm:$0xff] %vm3605, %v3591
      %3673 = vst.msk [vmem:[#allocation2 + $0xcb] sm:$0xff] %vm3605, %v3592
      %3674 = vst.msk [vmem:[#allocation2 + $0xd3] sm:$0xff] %vm3605, %v3593
      %3675 = vst.msk [vmem:[#allocation2 + $0xdb] sm:$0xff] %vm3605, %v3594
      %3676 = vst.msk [vmem:[#allocation2 + $0xe3] sm:$0xff] %vm3605, %v3595
      %3677 = vst.msk [vmem:[#allocation2 + $0xeb] sm:$0xff] %vm3605, %v3596
      %3678 = vst.msk [vmem:[#allocation2 + $0xf3] sm:$0xff] %vm3605, %v3597
      %3679 = vst.msk [vmem:[#allocation2 + $0xfb] sm:$0xff] %vm3605, %v3598
      %3680 = vst.msk [vmem:[#allocation2 + $0x103] sm:$0xff] %vm3605, %v3599
      %3681 = vst.msk [vmem:[#allocation2 + $0x10b] sm:$0xff] %vm3605, %v3600
      %3682 = vst.msk [vmem:[#allocation2 + $0x113] sm:$0xff] %vm3605, %v3601
      %3683 = vst.msk [vmem:[#allocation2 + $0x11b] sm:$0xff] %vm3605, %v3602
      %3684 = vst.msk [vmem:[#allocation2 + $0x123] sm:$0xff] %vm3605, %v3603
      %3685 = vst.msk [vmem:[#allocation2 + $0x12b] sm:$0xff] %vm3605, %v3604
      %v3686 = vld [vmem:[#allocation2] sm:$0xff]
      %v3687 = vld [vmem:[#allocation2 + $0x8] sm:$0xff]
      %v3688 = vld [vmem:[#allocation2 + $0x10] sm:$0xff]
      %v3689 = vld [vmem:[#allocation2 + $0x18] sm:$0xff]
      %v3690 = vld [vmem:[#allocation2 + $0x20] sm:$0xff]
      %v3691 = vld [vmem:[#allocation2 + $0x28] sm:$0xff]
      %v3692 = vld [vmem:[#allocation2 + $0x30] sm:$0xff]
      %v3693 = vld [vmem:[#allocation2 + $0x38] sm:$0xff]
      %v3694 = vld [vmem:[#allocation2 + $0x40] sm:$0xff]
      %v3695 = vld [vmem:[#allocation2 + $0x48] sm:$0xff]
      %v3696 = vld [vmem:[#allocation2 + $0x50] sm:$0xff]
      %v3697 = vld [vmem:[#allocation2 + $0x58] sm:$0xff]
      %v3698 = vld [vmem:[#allocation2 + $0x60] sm:$0xff]
      %v3699 = vld [vmem:[#allocation2 + $0x68] sm:$0xff]
      %v3700 = vld [vmem:[#allocation2 + $0x70] sm:$0xff]
      %v3701 = vld [vmem:[#allocation2 + $0x78] sm:$0xff]
      %v3702 = vld [vmem:[#allocation2 + $0x80] sm:$0xff]
      %v3703 = vld [vmem:[#allocation2 + $0x88] sm:$0xff]
      %v3704 = vld [vmem:[#allocation2 + $0x90] sm:$0xff]
      %v3705 = vld [vmem:[#allocation2 + $0x98] sm:$0xff]
      %v3706 = vld [vmem:[#allocation2 + $0xa0] sm:$0xff]
      %v3707 = vld [vmem:[#allocation2 + $0xa8] sm:$0xff]
      %v3708 = vld [vmem:[#allocation2 + $0xb0] sm:$0xff]
      %v3709 = vld [vmem:[#allocation2 + $0xb8] sm:$0xff]
      %v3710 = vld [vmem:[#allocation2 + $0xc0] sm:$0xff]
      %v3711 = vld [vmem:[#allocation2 + $0xc8] sm:$0xff]
      %v3712 = vld [vmem:[#allocation2 + $0xd0] sm:$0xff]
      %v3713 = vld [vmem:[#allocation2 + $0xd8] sm:$0xff]
      %v3714 = vld [vmem:[#allocation2 + $0xe0] sm:$0xff]
      %v3715 = vld [vmem:[#allocation2 + $0xe8] sm:$0xff]
      %v3716 = vld [vmem:[#allocation2 + $0xf0] sm:$0xff]
      %v3717 = vld [vmem:[#allocation2 + $0xf8] sm:$0xff]
      %v3718 = vld [vmem:[#allocation2 + $0x100] sm:$0xff]
      %v3719 = vld [vmem:[#allocation2 + $0x108] sm:$0xff]
      %v3720 = vld [vmem:[#allocation2 + $0x110] sm:$0xff]
      %v3721 = vld [vmem:[#allocation2 + $0x118] sm:$0xff]
      %v3722 = vld [vmem:[#allocation2 + $0x120] sm:$0xff]
      %v3723 = vld [vmem:[#allocation2 + $0x128] sm:$0xff]
      %v3724 = vld [vmem:[#allocation2 + $0x130] sm:$0xff]
      %v3725 = vld [vmem:[#allocation2 + $0x138] sm:$0xff]
      %v3726 = vld [vmem:[#allocation2 + $0x140] sm:$0xff]
      %v3764 = vrot.slane %v3686, 1
      %v3765 = vrot.slane %v3687, 1
      %v3766 = vsel %vm1600, %v3764, %v3765
      %v3767 = vrot.slane %v3688, 1
      %v3768 = vsel %vm1600, %v3765, %v3767
      %v3769 = vrot.slane %v3689, 1
      %v3770 = vsel %vm1600, %v3767, %v3769
      %v3771 = vrot.slane %v3690, 1
      %v3772 = vsel %vm1600, %v3769, %v3771
      %v3773 = vrot.slane %v3691, 1
      %v3774 = vsel %vm1600, %v3771, %v3773
      %v3775 = vrot.slane %v3692, 1
      %v3776 = vsel %vm1600, %v3773, %v3775
      %v3777 = vrot.slane %v3693, 1
      %v3778 = vsel %vm1600, %v3775, %v3777
      %v3779 = vrot.slane %v3694, 1
      %v3780 = vsel %vm1600, %v3777, %v3779
      %v3781 = vrot.slane %v3695, 1
      %v3782 = vsel %vm1600, %v3779, %v3781
      %v3783 = vrot.slane %v3696, 1
      %v3784 = vsel %vm1600, %v3781, %v3783
      %v3785 = vrot.slane %v3697, 1
      %v3786 = vsel %vm1600, %v3783, %v3785
      %v3787 = vrot.slane %v3698, 1
      %v3788 = vsel %vm1600, %v3785, %v3787
      %v3789 = vrot.slane %v3699, 1
      %v3790 = vsel %vm1600, %v3787, %v3789
      %v3791 = vrot.slane %v3700, 1
      %v3792 = vsel %vm1600, %v3789, %v3791
      %v3793 = vrot.slane %v3701, 1
      %v3794 = vsel %vm1600, %v3791, %v3793
      %v3795 = vrot.slane %v3702, 1
      %v3796 = vsel %vm1600, %v3793, %v3795
      %v3797 = vrot.slane %v3703, 1
      %v3798 = vsel %vm1600, %v3795, %v3797
      %v3799 = vrot.slane %v3704, 1
      %v3800 = vsel %vm1600, %v3797, %v3799
      %v3801 = vrot.slane %v3705, 1
      %v3802 = vsel %vm1600, %v3799, %v3801
      %v3803 = vrot.slane %v3706, 1
      %v3804 = vsel %vm1600, %v3801, %v3803
      %v3805 = vrot.slane %v3707, 1
      %v3806 = vsel %vm1600, %v3803, %v3805
      %v3807 = vrot.slane %v3708, 1
      %v3808 = vsel %vm1600, %v3805, %v3807
      %v3809 = vrot.slane %v3709, 1
      %v3810 = vsel %vm1600, %v3807, %v3809
      %v3811 = vrot.slane %v3710, 1
      %v3812 = vsel %vm1600, %v3809, %v3811
      %v3813 = vrot.slane %v3711, 1
      %v3814 = vsel %vm1600, %v3811, %v3813
      %v3815 = vrot.slane %v3712, 1
      %v3816 = vsel %vm1600, %v3813, %v3815
      %v3817 = vrot.slane %v3713, 1
      %v3818 = vsel %vm1600, %v3815, %v3817
      %v3819 = vrot.slane %v3714, 1
      %v3820 = vsel %vm1600, %v3817, %v3819
      %v3821 = vrot.slane %v3715, 1
      %v3822 = vsel %vm1600, %v3819, %v3821
      %v3823 = vrot.slane %v3716, 1
      %v3824 = vsel %vm1600, %v3821, %v3823
      %v3825 = vrot.slane %v3717, 1
      %v3826 = vsel %vm1600, %v3823, %v3825
      %v3827 = vrot.slane %v3718, 1
      %v3828 = vsel %vm1600, %v3825, %v3827
      %v3829 = vrot.slane %v3719, 1
      %v3830 = vsel %vm1600, %v3827, %v3829
      %v3831 = vrot.slane %v3720, 1
      %v3832 = vsel %vm1600, %v3829, %v3831
      %v3833 = vrot.slane %v3721, 1
      %v3834 = vsel %vm1600, %v3831, %v3833
      %v3835 = vrot.slane %v3722, 1
      %v3836 = vsel %vm1600, %v3833, %v3835
      %3837 = vrot.lane.b32.xlu0 %v3766, 65
      %v3838 = vpop.permute.xlu0 %3837
      %3839 = vrot.lane.b32.xlu0 %v3768, 65
      %v3840 = vpop.permute.xlu0 %3839
      %3841 = vrot.lane.b32.xlu0 %v3770, 65
      %v3842 = vpop.permute.xlu0 %3841
      %3843 = vrot.lane.b32.xlu0 %v3772, 65
      %v3844 = vpop.permute.xlu0 %3843
      %3845 = vrot.lane.b32.xlu0 %v3774, 65
      %v3846 = vpop.permute.xlu0 %3845
      %3847 = vrot.lane.b32.xlu0 %v3776, 65
      %v3848 = vpop.permute.xlu0 %3847
      %3849 = vrot.lane.b32.xlu0 %v3778, 65
      %v3850 = vpop.permute.xlu0 %3849
      %3851 = vrot.lane.b32.xlu0 %v3780, 65
      %v3852 = vpop.permute.xlu0 %3851
      %3853 = vrot.lane.b32.xlu0 %v3782, 65
      %v3854 = vpop.permute.xlu0 %3853
      %3855 = vrot.lane.b32.xlu0 %v3784, 65
      %v3856 = vpop.permute.xlu0 %3855
      %3857 = vrot.lane.b32.xlu0 %v3786, 65
      %v3858 = vpop.permute.xlu0 %3857
      %3859 = vrot.lane.b32.xlu0 %v3788, 65
      %v3860 = vpop.permute.xlu0 %3859
      %3861 = vrot.lane.b32.xlu0 %v3790, 65
      %v3862 = vpop.permute.xlu0 %3861
      %3863 = vrot.lane.b32.xlu0 %v3792, 65
      %v3864 = vpop.permute.xlu0 %3863
      %3865 = vrot.lane.b32.xlu0 %v3794, 65
      %v3866 = vpop.permute.xlu0 %3865
      %3867 = vrot.lane.b32.xlu0 %v3796, 65
      %v3868 = vpop.permute.xlu0 %3867
      %3869 = vrot.lane.b32.xlu0 %v3798, 65
      %v3870 = vpop.permute.xlu0 %3869
      %3871 = vrot.lane.b32.xlu0 %v3800, 65
      %v3872 = vpop.permute.xlu0 %3871
      %3873 = vrot.lane.b32.xlu0 %v3802, 65
      %v3874 = vpop.permute.xlu0 %3873
      %3875 = vrot.lane.b32.xlu0 %v3804, 65
      %v3876 = vpop.permute.xlu0 %3875
      %3877 = vrot.lane.b32.xlu0 %v3806, 65
      %v3878 = vpop.permute.xlu0 %3877
      %3879 = vrot.lane.b32.xlu0 %v3808, 65
      %v3880 = vpop.permute.xlu0 %3879
      %3881 = vrot.lane.b32.xlu0 %v3810, 65
      %v3882 = vpop.permute.xlu0 %3881
      %3883 = vrot.lane.b32.xlu0 %v3812, 65
      %v3884 = vpop.permute.xlu0 %3883
      %3885 = vrot.lane.b32.xlu0 %v3814, 65
      %v3886 = vpop.permute.xlu0 %3885
      %3887 = vrot.lane.b32.xlu0 %v3816, 65
      %v3888 = vpop.permute.xlu0 %3887
      %3889 = vrot.lane.b32.xlu0 %v3818, 65
      %v3890 = vpop.permute.xlu0 %3889
      %3891 = vrot.lane.b32.xlu0 %v3820, 65
      %v3892 = vpop.permute.xlu0 %3891
      %3893 = vrot.lane.b32.xlu0 %v3822, 65
      %v3894 = vpop.permute.xlu0 %3893
      %3895 = vrot.lane.b32.xlu0 %v3824, 65
      %v3896 = vpop.permute.xlu0 %3895
      %3897 = vrot.lane.b32.xlu0 %v3826, 65
      %v3898 = vpop.permute.xlu0 %3897
      %3899 = vrot.lane.b32.xlu0 %v3828, 65
      %v3900 = vpop.permute.xlu0 %3899
      %3901 = vrot.lane.b32.xlu0 %v3830, 65
      %v3902 = vpop.permute.xlu0 %3901
      %3903 = vrot.lane.b32.xlu0 %v3832, 65
      %v3904 = vpop.permute.xlu0 %3903
      %3905 = vrot.lane.b32.xlu0 %v3834, 65
      %v3906 = vpop.permute.xlu0 %3905
      %3907 = vrot.lane.b32.xlu0 %v3836, 65
      %v3908 = vpop.permute.xlu0 %3907
      %v3945 = vrot.slane %v3686, 2
      %v3946 = vrot.slane %v3687, 2
      %v3947 = vsel %vm1782, %v3945, %v3946
      %v3948 = vrot.slane %v3688, 2
      %v3949 = vsel %vm1782, %v3946, %v3948
      %v3950 = vrot.slane %v3689, 2
      %v3951 = vsel %vm1782, %v3948, %v3950
      %v3952 = vrot.slane %v3690, 2
      %v3953 = vsel %vm1782, %v3950, %v3952
      %v3954 = vrot.slane %v3691, 2
      %v3955 = vsel %vm1782, %v3952, %v3954
      %v3956 = vrot.slane %v3692, 2
      %v3957 = vsel %vm1782, %v3954, %v3956
      %v3958 = vrot.slane %v3693, 2
      %v3959 = vsel %vm1782, %v3956, %v3958
      %v3960 = vrot.slane %v3694, 2
      %v3961 = vsel %vm1782, %v3958, %v3960
      %v3962 = vrot.slane %v3695, 2
      %v3963 = vsel %vm1782, %v3960, %v3962
      %v3964 = vrot.slane %v3696, 2
      %v3965 = vsel %vm1782, %v3962, %v3964
      %v3966 = vrot.slane %v3697, 2
      %v3967 = vsel %vm1782, %v3964, %v3966
      %v3968 = vrot.slane %v3698, 2
      %v3969 = vsel %vm1782, %v3966, %v3968
      %v3970 = vrot.slane %v3699, 2
      %v3971 = vsel %vm1782, %v3968, %v3970
      %v3972 = vrot.slane %v3700, 2
      %v3973 = vsel %vm1782, %v3970, %v3972
      %v3974 = vrot.slane %v3701, 2
      %v3975 = vsel %vm1782, %v3972, %v3974
      %v3976 = vrot.slane %v3702, 2
      %v3977 = vsel %vm1782, %v3974, %v3976
      %v3978 = vrot.slane %v3703, 2
      %v3979 = vsel %vm1782, %v3976, %v3978
      %v3980 = vrot.slane %v3704, 2
      %v3981 = vsel %vm1782, %v3978, %v3980
      %v3982 = vrot.slane %v3705, 2
      %v3983 = vsel %vm1782, %v3980, %v3982
      %v3984 = vrot.slane %v3706, 2
      %v3985 = vsel %vm1782, %v3982, %v3984
      %v3986 = vrot.slane %v3707, 2
      %v3987 = vsel %vm1782, %v3984, %v3986
      %v3988 = vrot.slane %v3708, 2
      %v3989 = vsel %vm1782, %v3986, %v3988
      %v3990 = vrot.slane %v3709, 2
      %v3991 = vsel %vm1782, %v3988, %v3990
      %v3992 = vrot.slane %v3710, 2
      %v3993 = vsel %vm1782, %v3990, %v3992
      %v3994 = vrot.slane %v3711, 2
      %v3995 = vsel %vm1782, %v3992, %v3994
      %v3996 = vrot.slane %v3712, 2
      %v3997 = vsel %vm1782, %v3994, %v3996
      %v3998 = vrot.slane %v3713, 2
      %v3999 = vsel %vm1782, %v3996, %v3998
      %v4000 = vrot.slane %v3714, 2
      %v4001 = vsel %vm1782, %v3998, %v4000
      %v4002 = vrot.slane %v3715, 2
      %v4003 = vsel %vm1782, %v4000, %v4002
      %v4004 = vrot.slane %v3716, 2
      %v4005 = vsel %vm1782, %v4002, %v4004
      %v4006 = vrot.slane %v3717, 2
      %v4007 = vsel %vm1782, %v4004, %v4006
      %v4008 = vrot.slane %v3718, 2
      %v4009 = vsel %vm1782, %v4006, %v4008
      %v4010 = vrot.slane %v3719, 2
      %v4011 = vsel %vm1782, %v4008, %v4010
      %v4012 = vrot.slane %v3720, 2
      %v4013 = vsel %vm1782, %v4010, %v4012
      %v4014 = vrot.slane %v3721, 2
      %v4015 = vsel %vm1782, %v4012, %v4014
      %v4016 = vrot.slane %v3722, 2
      %v4017 = vsel %vm1782, %v4014, %v4016
      %4018 = vrot.lane.b32.xlu0 %v3947, 2
      %v4019 = vpop.permute.xlu0 %4018
      %4020 = vrot.lane.b32.xlu0 %v3949, 2
      %v4021 = vpop.permute.xlu0 %4020
      %4022 = vrot.lane.b32.xlu0 %v3951, 2
      %v4023 = vpop.permute.xlu0 %4022
      %4024 = vrot.lane.b32.xlu0 %v3953, 2
      %v4025 = vpop.permute.xlu0 %4024
      %4026 = vrot.lane.b32.xlu0 %v3955, 2
      %v4027 = vpop.permute.xlu0 %4026
      %4028 = vrot.lane.b32.xlu0 %v3957, 2
      %v4029 = vpop.permute.xlu0 %4028
      %4030 = vrot.lane.b32.xlu0 %v3959, 2
      %v4031 = vpop.permute.xlu0 %4030
      %4032 = vrot.lane.b32.xlu0 %v3961, 2
      %v4033 = vpop.permute.xlu0 %4032
      %4034 = vrot.lane.b32.xlu0 %v3963, 2
      %v4035 = vpop.permute.xlu0 %4034
      %4036 = vrot.lane.b32.xlu0 %v3965, 2
      %v4037 = vpop.permute.xlu0 %4036
      %4038 = vrot.lane.b32.xlu0 %v3967, 2
      %v4039 = vpop.permute.xlu0 %4038
      %4040 = vrot.lane.b32.xlu0 %v3969, 2
      %v4041 = vpop.permute.xlu0 %4040
      %4042 = vrot.lane.b32.xlu0 %v3971, 2
      %v4043 = vpop.permute.xlu0 %4042
      %4044 = vrot.lane.b32.xlu0 %v3973, 2
      %v4045 = vpop.permute.xlu0 %4044
      %4046 = vrot.lane.b32.xlu0 %v3975, 2
      %v4047 = vpop.permute.xlu0 %4046
      %4048 = vrot.lane.b32.xlu0 %v3977, 2
      %v4049 = vpop.permute.xlu0 %4048
      %4050 = vrot.lane.b32.xlu0 %v3979, 2
      %v4051 = vpop.permute.xlu0 %4050
      %4052 = vrot.lane.b32.xlu0 %v3981, 2
      %v4053 = vpop.permute.xlu0 %4052
      %4054 = vrot.lane.b32.xlu0 %v3983, 2
      %v4055 = vpop.permute.xlu0 %4054
      %4056 = vrot.lane.b32.xlu0 %v3985, 2
      %v4057 = vpop.permute.xlu0 %4056
      %4058 = vrot.lane.b32.xlu0 %v3987, 2
      %v4059 = vpop.permute.xlu0 %4058
      %4060 = vrot.lane.b32.xlu0 %v3989, 2
      %v4061 = vpop.permute.xlu0 %4060
      %4062 = vrot.lane.b32.xlu0 %v3991, 2
      %v4063 = vpop.permute.xlu0 %4062
      %4064 = vrot.lane.b32.xlu0 %v3993, 2
      %v4065 = vpop.permute.xlu0 %4064
      %4066 = vrot.lane.b32.xlu0 %v3995, 2
      %v4067 = vpop.permute.xlu0 %4066
      %4068 = vrot.lane.b32.xlu0 %v3997, 2
      %v4069 = vpop.permute.xlu0 %4068
      %4070 = vrot.lane.b32.xlu0 %v3999, 2
      %v4071 = vpop.permute.xlu0 %4070
      %4072 = vrot.lane.b32.xlu0 %v4001, 2
      %v4073 = vpop.permute.xlu0 %4072
      %4074 = vrot.lane.b32.xlu0 %v4003, 2
      %v4075 = vpop.permute.xlu0 %4074
      %4076 = vrot.lane.b32.xlu0 %v4005, 2
      %v4077 = vpop.permute.xlu0 %4076
      %4078 = vrot.lane.b32.xlu0 %v4007, 2
      %v4079 = vpop.permute.xlu0 %4078
      %4080 = vrot.lane.b32.xlu0 %v4009, 2
      %v4081 = vpop.permute.xlu0 %4080
      %4082 = vrot.lane.b32.xlu0 %v4011, 2
      %v4083 = vpop.permute.xlu0 %4082
      %4084 = vrot.lane.b32.xlu0 %v4013, 2
      %v4085 = vpop.permute.xlu0 %4084
      %4086 = vrot.lane.b32.xlu0 %v4015, 2
      %v4087 = vpop.permute.xlu0 %4086
      %4088 = vrot.lane.b32.xlu0 %v4017, 2
      %v4089 = vpop.permute.xlu0 %4088
      %v4128 = vrot.slane %v3723, 2
      %v4129 = vsel %vm1782, %v4016, %v4128
      %v4130 = vrot.slane %v3724, 2
      %v4131 = vsel %vm1782, %v4128, %v4130
      %4132 = vrot.lane.b32.xlu0 %v3951, 67
      %v4133 = vpop.permute.xlu0 %4132
      %4134 = vrot.lane.b32.xlu0 %v3953, 67
      %v4135 = vpop.permute.xlu0 %4134
      %4136 = vrot.lane.b32.xlu0 %v3955, 67
      %v4137 = vpop.permute.xlu0 %4136
      %4138 = vrot.lane.b32.xlu0 %v3957, 67
      %v4139 = vpop.permute.xlu0 %4138
      %4140 = vrot.lane.b32.xlu0 %v3959, 67
      %v4141 = vpop.permute.xlu0 %4140
      %4142 = vrot.lane.b32.xlu0 %v3961, 67
      %v4143 = vpop.permute.xlu0 %4142
      %4144 = vrot.lane.b32.xlu0 %v3963, 67
      %v4145 = vpop.permute.xlu0 %4144
      %4146 = vrot.lane.b32.xlu0 %v3965, 67
      %v4147 = vpop.permute.xlu0 %4146
      %4148 = vrot.lane.b32.xlu0 %v3967, 67
      %v4149 = vpop.permute.xlu0 %4148
      %4150 = vrot.lane.b32.xlu0 %v3969, 67
      %v4151 = vpop.permute.xlu0 %4150
      %4152 = vrot.lane.b32.xlu0 %v3971, 67
      %v4153 = vpop.permute.xlu0 %4152
      %4154 = vrot.lane.b32.xlu0 %v3973, 67
      %v4155 = vpop.permute.xlu0 %4154
      %4156 = vrot.lane.b32.xlu0 %v3975, 67
      %v4157 = vpop.permute.xlu0 %4156
      %4158 = vrot.lane.b32.xlu0 %v3977, 67
      %v4159 = vpop.permute.xlu0 %4158
      %4160 = vrot.lane.b32.xlu0 %v3979, 67
      %v4161 = vpop.permute.xlu0 %4160
      %4162 = vrot.lane.b32.xlu0 %v3981, 67
      %v4163 = vpop.permute.xlu0 %4162
      %4164 = vrot.lane.b32.xlu0 %v3983, 67
      %v4165 = vpop.permute.xlu0 %4164
      %4166 = vrot.lane.b32.xlu0 %v3985, 67
      %v4167 = vpop.permute.xlu0 %4166
      %4168 = vrot.lane.b32.xlu0 %v3987, 67
      %v4169 = vpop.permute.xlu0 %4168
      %4170 = vrot.lane.b32.xlu0 %v3989, 67
      %v4171 = vpop.permute.xlu0 %4170
      %4172 = vrot.lane.b32.xlu0 %v3991, 67
      %v4173 = vpop.permute.xlu0 %4172
      %4174 = vrot.lane.b32.xlu0 %v3993, 67
      %v4175 = vpop.permute.xlu0 %4174
      %4176 = vrot.lane.b32.xlu0 %v3995, 67
      %v4177 = vpop.permute.xlu0 %4176
      %4178 = vrot.lane.b32.xlu0 %v3997, 67
      %v4179 = vpop.permute.xlu0 %4178
      %4180 = vrot.lane.b32.xlu0 %v3999, 67
      %v4181 = vpop.permute.xlu0 %4180
      %4182 = vrot.lane.b32.xlu0 %v4001, 67
      %v4183 = vpop.permute.xlu0 %4182
      %4184 = vrot.lane.b32.xlu0 %v4003, 67
      %v4185 = vpop.permute.xlu0 %4184
      %4186 = vrot.lane.b32.xlu0 %v4005, 67
      %v4187 = vpop.permute.xlu0 %4186
      %4188 = vrot.lane.b32.xlu0 %v4007, 67
      %v4189 = vpop.permute.xlu0 %4188
      %4190 = vrot.lane.b32.xlu0 %v4009, 67
      %v4191 = vpop.permute.xlu0 %4190
      %4192 = vrot.lane.b32.xlu0 %v4011, 67
      %v4193 = vpop.permute.xlu0 %4192
      %4194 = vrot.lane.b32.xlu0 %v4013, 67
      %v4195 = vpop.permute.xlu0 %4194
      %4196 = vrot.lane.b32.xlu0 %v4015, 67
      %v4197 = vpop.permute.xlu0 %4196
      %4198 = vrot.lane.b32.xlu0 %v4017, 67
      %v4199 = vpop.permute.xlu0 %4198
      %4200 = vrot.lane.b32.xlu0 %v4129, 67
      %v4201 = vpop.permute.xlu0 %4200
      %4202 = vrot.lane.b32.xlu0 %v4131, 67
      %v4203 = vpop.permute.xlu0 %4202
      %v4240 = vrot.slane %v3688, 3
      %v4241 = vrot.slane %v3689, 3
      %v4242 = vsel %vm2078, %v4240, %v4241
      %v4243 = vrot.slane %v3690, 3
      %v4244 = vsel %vm2078, %v4241, %v4243
      %v4245 = vrot.slane %v3691, 3
      %v4246 = vsel %vm2078, %v4243, %v4245
      %v4247 = vrot.slane %v3692, 3
      %v4248 = vsel %vm2078, %v4245, %v4247
      %v4249 = vrot.slane %v3693, 3
      %v4250 = vsel %vm2078, %v4247, %v4249
      %v4251 = vrot.slane %v3694, 3
      %v4252 = vsel %vm2078, %v4249, %v4251
      %v4253 = vrot.slane %v3695, 3
      %v4254 = vsel %vm2078, %v4251, %v4253
      %v4255 = vrot.slane %v3696, 3
      %v4256 = vsel %vm2078, %v4253, %v4255
      %v4257 = vrot.slane %v3697, 3
      %v4258 = vsel %vm2078, %v4255, %v4257
      %v4259 = vrot.slane %v3698, 3
      %v4260 = vsel %vm2078, %v4257, %v4259
      %v4261 = vrot.slane %v3699, 3
      %v4262 = vsel %vm2078, %v4259, %v4261
      %v4263 = vrot.slane %v3700, 3
      %v4264 = vsel %vm2078, %v4261, %v4263
      %v4265 = vrot.slane %v3701, 3
      %v4266 = vsel %vm2078, %v4263, %v4265
      %v4267 = vrot.slane %v3702, 3
      %v4268 = vsel %vm2078, %v4265, %v4267
      %v4269 = vrot.slane %v3703, 3
      %v4270 = vsel %vm2078, %v4267, %v4269
      %v4271 = vrot.slane %v3704, 3
      %v4272 = vsel %vm2078, %v4269, %v4271
      %v4273 = vrot.slane %v3705, 3
      %v4274 = vsel %vm2078, %v4271, %v4273
      %v4275 = vrot.slane %v3706, 3
      %v4276 = vsel %vm2078, %v4273, %v4275
      %v4277 = vrot.slane %v3707, 3
      %v4278 = vsel %vm2078, %v4275, %v4277
      %v4279 = vrot.slane %v3708, 3
      %v4280 = vsel %vm2078, %v4277, %v4279
      %v4281 = vrot.slane %v3709, 3
      %v4282 = vsel %vm2078, %v4279, %v4281
      %v4283 = vrot.slane %v3710, 3
      %v4284 = vsel %vm2078, %v4281, %v4283
      %v4285 = vrot.slane %v3711, 3
      %v4286 = vsel %vm2078, %v4283, %v4285
      %v4287 = vrot.slane %v3712, 3
      %v4288 = vsel %vm2078, %v4285, %v4287
      %v4289 = vrot.slane %v3713, 3
      %v4290 = vsel %vm2078, %v4287, %v4289
      %v4291 = vrot.slane %v3714, 3
      %v4292 = vsel %vm2078, %v4289, %v4291
      %v4293 = vrot.slane %v3715, 3
      %v4294 = vsel %vm2078, %v4291, %v4293
      %v4295 = vrot.slane %v3716, 3
      %v4296 = vsel %vm2078, %v4293, %v4295
      %v4297 = vrot.slane %v3717, 3
      %v4298 = vsel %vm2078, %v4295, %v4297
      %v4299 = vrot.slane %v3718, 3
      %v4300 = vsel %vm2078, %v4297, %v4299
      %v4301 = vrot.slane %v3719, 3
      %v4302 = vsel %vm2078, %v4299, %v4301
      %v4303 = vrot.slane %v3720, 3
      %v4304 = vsel %vm2078, %v4301, %v4303
      %v4305 = vrot.slane %v3721, 3
      %v4306 = vsel %vm2078, %v4303, %v4305
      %v4307 = vrot.slane %v3722, 3
      %v4308 = vsel %vm2078, %v4305, %v4307
      %v4309 = vrot.slane %v3723, 3
      %v4310 = vsel %vm2078, %v4307, %v4309
      %v4311 = vrot.slane %v3724, 3
      %v4312 = vsel %vm2078, %v4309, %v4311
      %4313 = vrot.lane.b32.xlu0 %v4242, 4
      %v4314 = vpop.permute.xlu0 %4313
      %4315 = vrot.lane.b32.xlu0 %v4244, 4
      %v4316 = vpop.permute.xlu0 %4315
      %4317 = vrot.lane.b32.xlu0 %v4246, 4
      %v4318 = vpop.permute.xlu0 %4317
      %4319 = vrot.lane.b32.xlu0 %v4248, 4
      %v4320 = vpop.permute.xlu0 %4319
      %4321 = vrot.lane.b32.xlu0 %v4250, 4
      %v4322 = vpop.permute.xlu0 %4321
      %4323 = vrot.lane.b32.xlu0 %v4252, 4
      %v4324 = vpop.permute.xlu0 %4323
      %4325 = vrot.lane.b32.xlu0 %v4254, 4
      %v4326 = vpop.permute.xlu0 %4325
      %4327 = vrot.lane.b32.xlu0 %v4256, 4
      %v4328 = vpop.permute.xlu0 %4327
      %4329 = vrot.lane.b32.xlu0 %v4258, 4
      %v4330 = vpop.permute.xlu0 %4329
      %4331 = vrot.lane.b32.xlu0 %v4260, 4
      %v4332 = vpop.permute.xlu0 %4331
      %4333 = vrot.lane.b32.xlu0 %v4262, 4
      %v4334 = vpop.permute.xlu0 %4333
      %4335 = vrot.lane.b32.xlu0 %v4264, 4
      %v4336 = vpop.permute.xlu0 %4335
      %4337 = vrot.lane.b32.xlu0 %v4266, 4
      %v4338 = vpop.permute.xlu0 %4337
      %4339 = vrot.lane.b32.xlu0 %v4268, 4
      %v4340 = vpop.permute.xlu0 %4339
      %4341 = vrot.lane.b32.xlu0 %v4270, 4
      %v4342 = vpop.permute.xlu0 %4341
      %4343 = vrot.lane.b32.xlu0 %v4272, 4
      %v4344 = vpop.permute.xlu0 %4343
      %4345 = vrot.lane.b32.xlu0 %v4274, 4
      %v4346 = vpop.permute.xlu0 %4345
      %4347 = vrot.lane.b32.xlu0 %v4276, 4
      %v4348 = vpop.permute.xlu0 %4347
      %4349 = vrot.lane.b32.xlu0 %v4278, 4
      %v4350 = vpop.permute.xlu0 %4349
      %4351 = vrot.lane.b32.xlu0 %v4280, 4
      %v4352 = vpop.permute.xlu0 %4351
      %4353 = vrot.lane.b32.xlu0 %v4282, 4
      %v4354 = vpop.permute.xlu0 %4353
      %4355 = vrot.lane.b32.xlu0 %v4284, 4
      %v4356 = vpop.permute.xlu0 %4355
      %4357 = vrot.lane.b32.xlu0 %v4286, 4
      %v4358 = vpop.permute.xlu0 %4357
      %4359 = vrot.lane.b32.xlu0 %v4288, 4
      %v4360 = vpop.permute.xlu0 %4359
      %4361 = vrot.lane.b32.xlu0 %v4290, 4
      %v4362 = vpop.permute.xlu0 %4361
      %4363 = vrot.lane.b32.xlu0 %v4292, 4
      %v4364 = vpop.permute.xlu0 %4363
      %4365 = vrot.lane.b32.xlu0 %v4294, 4
      %v4366 = vpop.permute.xlu0 %4365
      %4367 = vrot.lane.b32.xlu0 %v4296, 4
      %v4368 = vpop.permute.xlu0 %4367
      %4369 = vrot.lane.b32.xlu0 %v4298, 4
      %v4370 = vpop.permute.xlu0 %4369
      %4371 = vrot.lane.b32.xlu0 %v4300, 4
      %v4372 = vpop.permute.xlu0 %4371
      %4373 = vrot.lane.b32.xlu0 %v4302, 4
      %v4374 = vpop.permute.xlu0 %4373
      %4375 = vrot.lane.b32.xlu0 %v4304, 4
      %v4376 = vpop.permute.xlu0 %4375
      %4377 = vrot.lane.b32.xlu0 %v4306, 4
      %v4378 = vpop.permute.xlu0 %4377
      %4379 = vrot.lane.b32.xlu0 %v4308, 4
      %v4380 = vpop.permute.xlu0 %4379
      %4381 = vrot.lane.b32.xlu0 %v4310, 4
      %v4382 = vpop.permute.xlu0 %4381
      %4383 = vrot.lane.b32.xlu0 %v4312, 4
      %v4384 = vpop.permute.xlu0 %4383
      %v4421 = vrot.slane %v3688, 4
      %v4422 = vrot.slane %v3689, 4
      %v4423 = vsel %vm2260, %v4421, %v4422
      %v4424 = vrot.slane %v3690, 4
      %v4425 = vsel %vm2260, %v4422, %v4424
      %v4426 = vrot.slane %v3691, 4
      %v4427 = vsel %vm2260, %v4424, %v4426
      %v4428 = vrot.slane %v3692, 4
      %v4429 = vsel %vm2260, %v4426, %v4428
      %v4430 = vrot.slane %v3693, 4
      %v4431 = vsel %vm2260, %v4428, %v4430
      %v4432 = vrot.slane %v3694, 4
      %v4433 = vsel %vm2260, %v4430, %v4432
      %v4434 = vrot.slane %v3695, 4
      %v4435 = vsel %vm2260, %v4432, %v4434
      %v4436 = vrot.slane %v3696, 4
      %v4437 = vsel %vm2260, %v4434, %v4436
      %v4438 = vrot.slane %v3697, 4
      %v4439 = vsel %vm2260, %v4436, %v4438
      %v4440 = vrot.slane %v3698, 4
      %v4441 = vsel %vm2260, %v4438, %v4440
      %v4442 = vrot.slane %v3699, 4
      %v4443 = vsel %vm2260, %v4440, %v4442
      %v4444 = vrot.slane %v3700, 4
      %v4445 = vsel %vm2260, %v4442, %v4444
      %v4446 = vrot.slane %v3701, 4
      %v4447 = vsel %vm2260, %v4444, %v4446
      %v4448 = vrot.slane %v3702, 4
      %v4449 = vsel %vm2260, %v4446, %v4448
      %v4450 = vrot.slane %v3703, 4
      %v4451 = vsel %vm2260, %v4448, %v4450
      %v4452 = vrot.slane %v3704, 4
      %v4453 = vsel %vm2260, %v4450, %v4452
      %v4454 = vrot.slane %v3705, 4
      %v4455 = vsel %vm2260, %v4452, %v4454
      %v4456 = vrot.slane %v3706, 4
      %v4457 = vsel %vm2260, %v4454, %v4456
      %v4458 = vrot.slane %v3707, 4
      %v4459 = vsel %vm2260, %v4456, %v4458
      %v4460 = vrot.slane %v3708, 4
      %v4461 = vsel %vm2260, %v4458, %v4460
      %v4462 = vrot.slane %v3709, 4
      %v4463 = vsel %vm2260, %v4460, %v4462
      %v4464 = vrot.slane %v3710, 4
      %v4465 = vsel %vm2260, %v4462, %v4464
      %v4466 = vrot.slane %v3711, 4
      %v4467 = vsel %vm2260, %v4464, %v4466
      %v4468 = vrot.slane %v3712, 4
      %v4469 = vsel %vm2260, %v4466, %v4468
      %v4470 = vrot.slane %v3713, 4
      %v4471 = vsel %vm2260, %v4468, %v4470
      %v4472 = vrot.slane %v3714, 4
      %v4473 = vsel %vm2260, %v4470, %v4472
      %v4474 = vrot.slane %v3715, 4
      %v4475 = vsel %vm2260, %v4472, %v4474
      %v4476 = vrot.slane %v3716, 4
      %v4477 = vsel %vm2260, %v4474, %v4476
      %v4478 = vrot.slane %v3717, 4
      %v4479 = vsel %vm2260, %v4476, %v4478
      %v4480 = vrot.slane %v3718, 4
      %v4481 = vsel %vm2260, %v4478, %v4480
      %v4482 = vrot.slane %v3719, 4
      %v4483 = vsel %vm2260, %v4480, %v4482
      %v4484 = vrot.slane %v3720, 4
      %v4485 = vsel %vm2260, %v4482, %v4484
      %v4486 = vrot.slane %v3721, 4
      %v4487 = vsel %vm2260, %v4484, %v4486
      %v4488 = vrot.slane %v3722, 4
      %v4489 = vsel %vm2260, %v4486, %v4488
      %v4490 = vrot.slane %v3723, 4
      %v4491 = vsel %vm2260, %v4488, %v4490
      %v4492 = vrot.slane %v3724, 4
      %v4493 = vsel %vm2260, %v4490, %v4492
      %4494 = vrot.lane.b32.xlu0 %v4423, 69
      %v4495 = vpop.permute.xlu0 %4494
      %4496 = vrot.lane.b32.xlu0 %v4425, 69
      %v4497 = vpop.permute.xlu0 %4496
      %4498 = vrot.lane.b32.xlu0 %v4427, 69
      %v4499 = vpop.permute.xlu0 %4498
      %4500 = vrot.lane.b32.xlu0 %v4429, 69
      %v4501 = vpop.permute.xlu0 %4500
      %4502 = vrot.lane.b32.xlu0 %v4431, 69
      %v4503 = vpop.permute.xlu0 %4502
      %4504 = vrot.lane.b32.xlu0 %v4433, 69
      %v4505 = vpop.permute.xlu0 %4504
      %4506 = vrot.lane.b32.xlu0 %v4435, 69
      %v4507 = vpop.permute.xlu0 %4506
      %4508 = vrot.lane.b32.xlu0 %v4437, 69
      %v4509 = vpop.permute.xlu0 %4508
      %4510 = vrot.lane.b32.xlu0 %v4439, 69
      %v4511 = vpop.permute.xlu0 %4510
      %4512 = vrot.lane.b32.xlu0 %v4441, 69
      %v4513 = vpop.permute.xlu0 %4512
      %4514 = vrot.lane.b32.xlu0 %v4443, 69
      %v4515 = vpop.permute.xlu0 %4514
      %4516 = vrot.lane.b32.xlu0 %v4445, 69
      %v4517 = vpop.permute.xlu0 %4516
      %4518 = vrot.lane.b32.xlu0 %v4447, 69
      %v4519 = vpop.permute.xlu0 %4518
      %4520 = vrot.lane.b32.xlu0 %v4449, 69
      %v4521 = vpop.permute.xlu0 %4520
      %4522 = vrot.lane.b32.xlu0 %v4451, 69
      %v4523 = vpop.permute.xlu0 %4522
      %4524 = vrot.lane.b32.xlu0 %v4453, 69
      %v4525 = vpop.permute.xlu0 %4524
      %4526 = vrot.lane.b32.xlu0 %v4455, 69
      %v4527 = vpop.permute.xlu0 %4526
      %4528 = vrot.lane.b32.xlu0 %v4457, 69
      %v4529 = vpop.permute.xlu0 %4528
      %4530 = vrot.lane.b32.xlu0 %v4459, 69
      %v4531 = vpop.permute.xlu0 %4530
      %4532 = vrot.lane.b32.xlu0 %v4461, 69
      %v4533 = vpop.permute.xlu0 %4532
      %4534 = vrot.lane.b32.xlu0 %v4463, 69
      %v4535 = vpop.permute.xlu0 %4534
      %4536 = vrot.lane.b32.xlu0 %v4465, 69
      %v4537 = vpop.permute.xlu0 %4536
      %4538 = vrot.lane.b32.xlu0 %v4467, 69
      %v4539 = vpop.permute.xlu0 %4538
      %4540 = vrot.lane.b32.xlu0 %v4469, 69
      %v4541 = vpop.permute.xlu0 %4540
      %4542 = vrot.lane.b32.xlu0 %v4471, 69
      %v4543 = vpop.permute.xlu0 %4542
      %4544 = vrot.lane.b32.xlu0 %v4473, 69
      %v4545 = vpop.permute.xlu0 %4544
      %4546 = vrot.lane.b32.xlu0 %v4475, 69
      %v4547 = vpop.permute.xlu0 %4546
      %4548 = vrot.lane.b32.xlu0 %v4477, 69
      %v4549 = vpop.permute.xlu0 %4548
      %4550 = vrot.lane.b32.xlu0 %v4479, 69
      %v4551 = vpop.permute.xlu0 %4550
      %4552 = vrot.lane.b32.xlu0 %v4481, 69
      %v4553 = vpop.permute.xlu0 %4552
      %4554 = vrot.lane.b32.xlu0 %v4483, 69
      %v4555 = vpop.permute.xlu0 %4554
      %4556 = vrot.lane.b32.xlu0 %v4485, 69
      %v4557 = vpop.permute.xlu0 %4556
      %4558 = vrot.lane.b32.xlu0 %v4487, 69
      %v4559 = vpop.permute.xlu0 %4558
      %4560 = vrot.lane.b32.xlu0 %v4489, 69
      %v4561 = vpop.permute.xlu0 %4560
      %4562 = vrot.lane.b32.xlu0 %v4491, 69
      %v4563 = vpop.permute.xlu0 %4562
      %4564 = vrot.lane.b32.xlu0 %v4493, 69
      %v4565 = vpop.permute.xlu0 %4564
      %v4604 = vrot.slane %v3725, 4
      %v4605 = vsel %vm2260, %v4492, %v4604
      %v4606 = vrot.slane %v3726, 4
      %v4607 = vsel %vm2260, %v4604, %v4606
      %4608 = vrot.lane.b32.xlu0 %v4427, 6
      %v4609 = vpop.permute.xlu0 %4608
      %4610 = vrot.lane.b32.xlu0 %v4429, 6
      %v4611 = vpop.permute.xlu0 %4610
      %4612 = vrot.lane.b32.xlu0 %v4431, 6
      %v4613 = vpop.permute.xlu0 %4612
      %4614 = vrot.lane.b32.xlu0 %v4433, 6
      %v4615 = vpop.permute.xlu0 %4614
      %4616 = vrot.lane.b32.xlu0 %v4435, 6
      %v4617 = vpop.permute.xlu0 %4616
      %4618 = vrot.lane.b32.xlu0 %v4437, 6
      %v4619 = vpop.permute.xlu0 %4618
      %4620 = vrot.lane.b32.xlu0 %v4439, 6
      %v4621 = vpop.permute.xlu0 %4620
      %4622 = vrot.lane.b32.xlu0 %v4441, 6
      %v4623 = vpop.permute.xlu0 %4622
      %4624 = vrot.lane.b32.xlu0 %v4443, 6
      %v4625 = vpop.permute.xlu0 %4624
      %4626 = vrot.lane.b32.xlu0 %v4445, 6
      %v4627 = vpop.permute.xlu0 %4626
      %4628 = vrot.lane.b32.xlu0 %v4447, 6
      %v4629 = vpop.permute.xlu0 %4628
      %4630 = vrot.lane.b32.xlu0 %v4449, 6
      %v4631 = vpop.permute.xlu0 %4630
      %4632 = vrot.lane.b32.xlu0 %v4451, 6
      %v4633 = vpop.permute.xlu0 %4632
      %4634 = vrot.lane.b32.xlu0 %v4453, 6
      %v4635 = vpop.permute.xlu0 %4634
      %4636 = vrot.lane.b32.xlu0 %v4455, 6
      %v4637 = vpop.permute.xlu0 %4636
      %4638 = vrot.lane.b32.xlu0 %v4457, 6
      %v4639 = vpop.permute.xlu0 %4638
      %4640 = vrot.lane.b32.xlu0 %v4459, 6
      %v4641 = vpop.permute.xlu0 %4640
      %4642 = vrot.lane.b32.xlu0 %v4461, 6
      %v4643 = vpop.permute.xlu0 %4642
      %4644 = vrot.lane.b32.xlu0 %v4463, 6
      %v4645 = vpop.permute.xlu0 %4644
      %4646 = vrot.lane.b32.xlu0 %v4465, 6
      %v4647 = vpop.permute.xlu0 %4646
      %4648 = vrot.lane.b32.xlu0 %v4467, 6
      %v4649 = vpop.permute.xlu0 %4648
      %4650 = vrot.lane.b32.xlu0 %v4469, 6
      %v4651 = vpop.permute.xlu0 %4650
      %4652 = vrot.lane.b32.xlu0 %v4471, 6
      %v4653 = vpop.permute.xlu0 %4652
      %4654 = vrot.lane.b32.xlu0 %v4473, 6
      %v4655 = vpop.permute.xlu0 %4654
      %4656 = vrot.lane.b32.xlu0 %v4475, 6
      %v4657 = vpop.permute.xlu0 %4656
      %4658 = vrot.lane.b32.xlu0 %v4477, 6
      %v4659 = vpop.permute.xlu0 %4658
      %4660 = vrot.lane.b32.xlu0 %v4479, 6
      %v4661 = vpop.permute.xlu0 %4660
      %4662 = vrot.lane.b32.xlu0 %v4481, 6
      %v4663 = vpop.permute.xlu0 %4662
      %4664 = vrot.lane.b32.xlu0 %v4483, 6
      %v4665 = vpop.permute.xlu0 %4664
      %4666 = vrot.lane.b32.xlu0 %v4485, 6
      %v4667 = vpop.permute.xlu0 %4666
      %4668 = vrot.lane.b32.xlu0 %v4487, 6
      %v4669 = vpop.permute.xlu0 %4668
      %4670 = vrot.lane.b32.xlu0 %v4489, 6
      %v4671 = vpop.permute.xlu0 %4670
      %4672 = vrot.lane.b32.xlu0 %v4491, 6
      %v4673 = vpop.permute.xlu0 %4672
      %4674 = vrot.lane.b32.xlu0 %v4493, 6
      %v4675 = vpop.permute.xlu0 %4674
      %4676 = vrot.lane.b32.xlu0 %v4605, 6
      %v4677 = vpop.permute.xlu0 %4676
      %4678 = vrot.lane.b32.xlu0 %v4607, 6
      %v4679 = vpop.permute.xlu0 %4678
      %v4716 = vrot.slane %v3690, 5
      %v4717 = vrot.slane %v3691, 5
      %v4718 = vsel %vm2556, %v4716, %v4717
      %v4719 = vrot.slane %v3692, 5
      %v4720 = vsel %vm2556, %v4717, %v4719
      %v4721 = vrot.slane %v3693, 5
      %v4722 = vsel %vm2556, %v4719, %v4721
      %v4723 = vrot.slane %v3694, 5
      %v4724 = vsel %vm2556, %v4721, %v4723
      %v4725 = vrot.slane %v3695, 5
      %v4726 = vsel %vm2556, %v4723, %v4725
      %v4727 = vrot.slane %v3696, 5
      %v4728 = vsel %vm2556, %v4725, %v4727
      %v4729 = vrot.slane %v3697, 5
      %v4730 = vsel %vm2556, %v4727, %v4729
      %v4731 = vrot.slane %v3698, 5
      %v4732 = vsel %vm2556, %v4729, %v4731
      %v4733 = vrot.slane %v3699, 5
      %v4734 = vsel %vm2556, %v4731, %v4733
      %v4735 = vrot.slane %v3700, 5
      %v4736 = vsel %vm2556, %v4733, %v4735
      %v4737 = vrot.slane %v3701, 5
      %v4738 = vsel %vm2556, %v4735, %v4737
      %v4739 = vrot.slane %v3702, 5
      %v4740 = vsel %vm2556, %v4737, %v4739
      %v4741 = vrot.slane %v3703, 5
      %v4742 = vsel %vm2556, %v4739, %v4741
      %v4743 = vrot.slane %v3704, 5
      %v4744 = vsel %vm2556, %v4741, %v4743
      %v4745 = vrot.slane %v3705, 5
      %v4746 = vsel %vm2556, %v4743, %v4745
      %v4747 = vrot.slane %v3706, 5
      %v4748 = vsel %vm2556, %v4745, %v4747
      %v4749 = vrot.slane %v3707, 5
      %v4750 = vsel %vm2556, %v4747, %v4749
      %v4751 = vrot.slane %v3708, 5
      %v4752 = vsel %vm2556, %v4749, %v4751
      %v4753 = vrot.slane %v3709, 5
      %v4754 = vsel %vm2556, %v4751, %v4753
      %v4755 = vrot.slane %v3710, 5
      %v4756 = vsel %vm2556, %v4753, %v4755
      %v4757 = vrot.slane %v3711, 5
      %v4758 = vsel %vm2556, %v4755, %v4757
      %v4759 = vrot.slane %v3712, 5
      %v4760 = vsel %vm2556, %v4757, %v4759
      %v4761 = vrot.slane %v3713, 5
      %v4762 = vsel %vm2556, %v4759, %v4761
      %v4763 = vrot.slane %v3714, 5
      %v4764 = vsel %vm2556, %v4761, %v4763
      %v4765 = vrot.slane %v3715, 5
      %v4766 = vsel %vm2556, %v4763, %v4765
      %v4767 = vrot.slane %v3716, 5
      %v4768 = vsel %vm2556, %v4765, %v4767
      %v4769 = vrot.slane %v3717, 5
      %v4770 = vsel %vm2556, %v4767, %v4769
      %v4771 = vrot.slane %v3718, 5
      %v4772 = vsel %vm2556, %v4769, %v4771
      %v4773 = vrot.slane %v3719, 5
      %v4774 = vsel %vm2556, %v4771, %v4773
      %v4775 = vrot.slane %v3720, 5
      %v4776 = vsel %vm2556, %v4773, %v4775
      %v4777 = vrot.slane %v3721, 5
      %v4778 = vsel %vm2556, %v4775, %v4777
      %v4779 = vrot.slane %v3722, 5
      %v4780 = vsel %vm2556, %v4777, %v4779
      %v4781 = vrot.slane %v3723, 5
      %v4782 = vsel %vm2556, %v4779, %v4781
      %v4783 = vrot.slane %v3724, 5
      %v4784 = vsel %vm2556, %v4781, %v4783
      %v4785 = vrot.slane %v3725, 5
      %v4786 = vsel %vm2556, %v4783, %v4785
      %v4787 = vrot.slane %v3726, 5
      %v4788 = vsel %vm2556, %v4785, %v4787
      %4789 = vrot.lane.b32.xlu0 %v4718, 71
      %v4790 = vpop.permute.xlu0 %4789
      %4791 = vrot.lane.b32.xlu0 %v4720, 71
      %v4792 = vpop.permute.xlu0 %4791
      %4793 = vrot.lane.b32.xlu0 %v4722, 71
      %v4794 = vpop.permute.xlu0 %4793
      %4795 = vrot.lane.b32.xlu0 %v4724, 71
      %v4796 = vpop.permute.xlu0 %4795
      %4797 = vrot.lane.b32.xlu0 %v4726, 71
      %v4798 = vpop.permute.xlu0 %4797
      %4799 = vrot.lane.b32.xlu0 %v4728, 71
      %v4800 = vpop.permute.xlu0 %4799
      %4801 = vrot.lane.b32.xlu0 %v4730, 71
      %v4802 = vpop.permute.xlu0 %4801
      %4803 = vrot.lane.b32.xlu0 %v4732, 71
      %v4804 = vpop.permute.xlu0 %4803
      %4805 = vrot.lane.b32.xlu0 %v4734, 71
      %v4806 = vpop.permute.xlu0 %4805
      %4807 = vrot.lane.b32.xlu0 %v4736, 71
      %v4808 = vpop.permute.xlu0 %4807
      %4809 = vrot.lane.b32.xlu0 %v4738, 71
      %v4810 = vpop.permute.xlu0 %4809
      %4811 = vrot.lane.b32.xlu0 %v4740, 71
      %v4812 = vpop.permute.xlu0 %4811
      %4813 = vrot.lane.b32.xlu0 %v4742, 71
      %v4814 = vpop.permute.xlu0 %4813
      %4815 = vrot.lane.b32.xlu0 %v4744, 71
      %v4816 = vpop.permute.xlu0 %4815
      %4817 = vrot.lane.b32.xlu0 %v4746, 71
      %v4818 = vpop.permute.xlu0 %4817
      %4819 = vrot.lane.b32.xlu0 %v4748, 71
      %v4820 = vpop.permute.xlu0 %4819
      %4821 = vrot.lane.b32.xlu0 %v4750, 71
      %v4822 = vpop.permute.xlu0 %4821
      %4823 = vrot.lane.b32.xlu0 %v4752, 71
      %v4824 = vpop.permute.xlu0 %4823
      %4825 = vrot.lane.b32.xlu0 %v4754, 71
      %v4826 = vpop.permute.xlu0 %4825
      %4827 = vrot.lane.b32.xlu0 %v4756, 71
      %v4828 = vpop.permute.xlu0 %4827
      %4829 = vrot.lane.b32.xlu0 %v4758, 71
      %v4830 = vpop.permute.xlu0 %4829
      %4831 = vrot.lane.b32.xlu0 %v4760, 71
      %v4832 = vpop.permute.xlu0 %4831
      %4833 = vrot.lane.b32.xlu0 %v4762, 71
      %v4834 = vpop.permute.xlu0 %4833
      %4835 = vrot.lane.b32.xlu0 %v4764, 71
      %v4836 = vpop.permute.xlu0 %4835
      %4837 = vrot.lane.b32.xlu0 %v4766, 71
      %v4838 = vpop.permute.xlu0 %4837
      %4839 = vrot.lane.b32.xlu0 %v4768, 71
      %v4840 = vpop.permute.xlu0 %4839
      %4841 = vrot.lane.b32.xlu0 %v4770, 71
      %v4842 = vpop.permute.xlu0 %4841
      %4843 = vrot.lane.b32.xlu0 %v4772, 71
      %v4844 = vpop.permute.xlu0 %4843
      %4845 = vrot.lane.b32.xlu0 %v4774, 71
      %v4846 = vpop.permute.xlu0 %4845
      %4847 = vrot.lane.b32.xlu0 %v4776, 71
      %v4848 = vpop.permute.xlu0 %4847
      %4849 = vrot.lane.b32.xlu0 %v4778, 71
      %v4850 = vpop.permute.xlu0 %4849
      %4851 = vrot.lane.b32.xlu0 %v4780, 71
      %v4852 = vpop.permute.xlu0 %4851
      %4853 = vrot.lane.b32.xlu0 %v4782, 71
      %v4854 = vpop.permute.xlu0 %4853
      %4855 = vrot.lane.b32.xlu0 %v4784, 71
      %v4856 = vpop.permute.xlu0 %4855
      %4857 = vrot.lane.b32.xlu0 %v4786, 71
      %v4858 = vpop.permute.xlu0 %4857
      %4859 = vrot.lane.b32.xlu0 %v4788, 71
      %v4860 = vpop.permute.xlu0 %4859
      %v4897 = vrot.slane %v3690, 6
      %v4898 = vrot.slane %v3691, 6
      %v4899 = vsel %vm2738, %v4897, %v4898
      %v4900 = vrot.slane %v3692, 6
      %v4901 = vsel %vm2738, %v4898, %v4900
      %v4902 = vrot.slane %v3693, 6
      %v4903 = vsel %vm2738, %v4900, %v4902
      %v4904 = vrot.slane %v3694, 6
      %v4905 = vsel %vm2738, %v4902, %v4904
      %v4906 = vrot.slane %v3695, 6
      %v4907 = vsel %vm2738, %v4904, %v4906
      %v4908 = vrot.slane %v3696, 6
      %v4909 = vsel %vm2738, %v4906, %v4908
      %v4910 = vrot.slane %v3697, 6
      %v4911 = vsel %vm2738, %v4908, %v4910
      %v4912 = vrot.slane %v3698, 6
      %v4913 = vsel %vm2738, %v4910, %v4912
      %v4914 = vrot.slane %v3699, 6
      %v4915 = vsel %vm2738, %v4912, %v4914
      %v4916 = vrot.slane %v3700, 6
      %v4917 = vsel %vm2738, %v4914, %v4916
      %v4918 = vrot.slane %v3701, 6
      %v4919 = vsel %vm2738, %v4916, %v4918
      %v4920 = vrot.slane %v3702, 6
      %v4921 = vsel %vm2738, %v4918, %v4920
      %v4922 = vrot.slane %v3703, 6
      %v4923 = vsel %vm2738, %v4920, %v4922
      %v4924 = vrot.slane %v3704, 6
      %v4925 = vsel %vm2738, %v4922, %v4924
      %v4926 = vrot.slane %v3705, 6
      %v4927 = vsel %vm2738, %v4924, %v4926
      %v4928 = vrot.slane %v3706, 6
      %v4929 = vsel %vm2738, %v4926, %v4928
      %v4930 = vrot.slane %v3707, 6
      %v4931 = vsel %vm2738, %v4928, %v4930
      %v4932 = vrot.slane %v3708, 6
      %v4933 = vsel %vm2738, %v4930, %v4932
      %v4934 = vrot.slane %v3709, 6
      %v4935 = vsel %vm2738, %v4932, %v4934
      %v4936 = vrot.slane %v3710, 6
      %v4937 = vsel %vm2738, %v4934, %v4936
      %v4938 = vrot.slane %v3711, 6
      %v4939 = vsel %vm2738, %v4936, %v4938
      %v4940 = vrot.slane %v3712, 6
      %v4941 = vsel %vm2738, %v4938, %v4940
      %v4942 = vrot.slane %v3713, 6
      %v4943 = vsel %vm2738, %v4940, %v4942
      %v4944 = vrot.slane %v3714, 6
      %v4945 = vsel %vm2738, %v4942, %v4944
      %v4946 = vrot.slane %v3715, 6
      %v4947 = vsel %vm2738, %v4944, %v4946
      %v4948 = vrot.slane %v3716, 6
      %v4949 = vsel %vm2738, %v4946, %v4948
      %v4950 = vrot.slane %v3717, 6
      %v4951 = vsel %vm2738, %v4948, %v4950
      %v4952 = vrot.slane %v3718, 6
      %v4953 = vsel %vm2738, %v4950, %v4952
      %v4954 = vrot.slane %v3719, 6
      %v4955 = vsel %vm2738, %v4952, %v4954
      %v4956 = vrot.slane %v3720, 6
      %v4957 = vsel %vm2738, %v4954, %v4956
      %v4958 = vrot.slane %v3721, 6
      %v4959 = vsel %vm2738, %v4956, %v4958
      %v4960 = vrot.slane %v3722, 6
      %v4961 = vsel %vm2738, %v4958, %v4960
      %v4962 = vrot.slane %v3723, 6
      %v4963 = vsel %vm2738, %v4960, %v4962
      %v4964 = vrot.slane %v3724, 6
      %v4965 = vsel %vm2738, %v4962, %v4964
      %v4966 = vrot.slane %v3725, 6
      %v4967 = vsel %vm2738, %v4964, %v4966
      %v4968 = vrot.slane %v3726, 6
      %v4969 = vsel %vm2738, %v4966, %v4968
      %4970 = vrot.lane.b32.xlu0 %v4899, 8
      %v4971 = vpop.permute.xlu0 %4970
      %4972 = vrot.lane.b32.xlu0 %v4901, 8
      %v4973 = vpop.permute.xlu0 %4972
      %4974 = vrot.lane.b32.xlu0 %v4903, 8
      %v4975 = vpop.permute.xlu0 %4974
      %4976 = vrot.lane.b32.xlu0 %v4905, 8
      %v4977 = vpop.permute.xlu0 %4976
      %4978 = vrot.lane.b32.xlu0 %v4907, 8
      %v4979 = vpop.permute.xlu0 %4978
      %4980 = vrot.lane.b32.xlu0 %v4909, 8
      %v4981 = vpop.permute.xlu0 %4980
      %4982 = vrot.lane.b32.xlu0 %v4911, 8
      %v4983 = vpop.permute.xlu0 %4982
      %4984 = vrot.lane.b32.xlu0 %v4913, 8
      %v4985 = vpop.permute.xlu0 %4984
      %4986 = vrot.lane.b32.xlu0 %v4915, 8
      %v4987 = vpop.permute.xlu0 %4986
      %4988 = vrot.lane.b32.xlu0 %v4917, 8
      %v4989 = vpop.permute.xlu0 %4988
      %4990 = vrot.lane.b32.xlu0 %v4919, 8
      %v4991 = vpop.permute.xlu0 %4990
      %4992 = vrot.lane.b32.xlu0 %v4921, 8
      %v4993 = vpop.permute.xlu0 %4992
      %4994 = vrot.lane.b32.xlu0 %v4923, 8
      %v4995 = vpop.permute.xlu0 %4994
      %4996 = vrot.lane.b32.xlu0 %v4925, 8
      %v4997 = vpop.permute.xlu0 %4996
      %4998 = vrot.lane.b32.xlu0 %v4927, 8
      %v4999 = vpop.permute.xlu0 %4998
      %5000 = vrot.lane.b32.xlu0 %v4929, 8
      %v5001 = vpop.permute.xlu0 %5000
      %5002 = vrot.lane.b32.xlu0 %v4931, 8
      %v5003 = vpop.permute.xlu0 %5002
      %5004 = vrot.lane.b32.xlu0 %v4933, 8
      %v5005 = vpop.permute.xlu0 %5004
      %5006 = vrot.lane.b32.xlu0 %v4935, 8
      %v5007 = vpop.permute.xlu0 %5006
      %5008 = vrot.lane.b32.xlu0 %v4937, 8
      %v5009 = vpop.permute.xlu0 %5008
      %5010 = vrot.lane.b32.xlu0 %v4939, 8
      %v5011 = vpop.permute.xlu0 %5010
      %5012 = vrot.lane.b32.xlu0 %v4941, 8
      %v5013 = vpop.permute.xlu0 %5012
      %5014 = vrot.lane.b32.xlu0 %v4943, 8
      %v5015 = vpop.permute.xlu0 %5014
      %5016 = vrot.lane.b32.xlu0 %v4945, 8
      %v5017 = vpop.permute.xlu0 %5016
      %5018 = vrot.lane.b32.xlu0 %v4947, 8
      %v5019 = vpop.permute.xlu0 %5018
      %5020 = vrot.lane.b32.xlu0 %v4949, 8
      %v5021 = vpop.permute.xlu0 %5020
      %5022 = vrot.lane.b32.xlu0 %v4951, 8
      %v5023 = vpop.permute.xlu0 %5022
      %5024 = vrot.lane.b32.xlu0 %v4953, 8
      %v5025 = vpop.permute.xlu0 %5024
      %5026 = vrot.lane.b32.xlu0 %v4955, 8
      %v5027 = vpop.permute.xlu0 %5026
      %5028 = vrot.lane.b32.xlu0 %v4957, 8
      %v5029 = vpop.permute.xlu0 %5028
      %5030 = vrot.lane.b32.xlu0 %v4959, 8
      %v5031 = vpop.permute.xlu0 %5030
      %5032 = vrot.lane.b32.xlu0 %v4961, 8
      %v5033 = vpop.permute.xlu0 %5032
      %5034 = vrot.lane.b32.xlu0 %v4963, 8
      %v5035 = vpop.permute.xlu0 %5034
      %5036 = vrot.lane.b32.xlu0 %v4965, 8
      %v5037 = vpop.permute.xlu0 %5036
      %5038 = vrot.lane.b32.xlu0 %v4967, 8
      %v5039 = vpop.permute.xlu0 %5038
      %5040 = vrot.lane.b32.xlu0 %v4969, 8
      %v5041 = vpop.permute.xlu0 %5040
      %v5078 = vsel %vm3605, %v3686, %v3838
      %v5079 = vsel %vm3605, %v3687, %v3840
      %v5080 = vsel %vm3605, %v3688, %v3842
      %v5081 = vsel %vm3605, %v3689, %v3844
      %v5082 = vsel %vm3605, %v3690, %v3846
      %v5083 = vsel %vm3605, %v3691, %v3848
      %v5084 = vsel %vm3605, %v3692, %v3850
      %v5085 = vsel %vm3605, %v3693, %v3852
      %v5086 = vsel %vm3605, %v3694, %v3854
      %v5087 = vsel %vm3605, %v3695, %v3856
      %v5088 = vsel %vm3605, %v3696, %v3858
      %v5089 = vsel %vm3605, %v3697, %v3860
      %v5090 = vsel %vm3605, %v3698, %v3862
      %v5091 = vsel %vm3605, %v3699, %v3864
      %v5092 = vsel %vm3605, %v3700, %v3866
      %v5093 = vsel %vm3605, %v3701, %v3868
      %v5094 = vsel %vm3605, %v3702, %v3870
      %v5095 = vsel %vm3605, %v3703, %v3872
      %v5096 = vsel %vm3605, %v3704, %v3874
      %v5097 = vsel %vm3605, %v3705, %v3876
      %v5098 = vsel %vm3605, %v3706, %v3878
      %v5099 = vsel %vm3605, %v3707, %v3880
      %v5100 = vsel %vm3605, %v3708, %v3882
      %v5101 = vsel %vm3605, %v3709, %v3884
      %v5102 = vsel %vm3605, %v3710, %v3886
      %v5103 = vsel %vm3605, %v3711, %v3888
      %v5104 = vsel %vm3605, %v3712, %v3890
      %v5105 = vsel %vm3605, %v3713, %v3892
      %v5106 = vsel %vm3605, %v3714, %v3894
      %v5107 = vsel %vm3605, %v3715, %v3896
      %v5108 = vsel %vm3605, %v3716, %v3898
      %v5109 = vsel %vm3605, %v3717, %v3900
      %v5110 = vsel %vm3605, %v3718, %v3902
      %v5111 = vsel %vm3605, %v3719, %v3904
      %v5112 = vsel %vm3605, %v3720, %v3906
      %v5113 = vsel %vm3605, %v3721, %v3908
      %vm5114 = vcmask 15360
      %v5115 = vsel %vm5114, %v3838, %v4019
      %v5116 = vsel %vm5114, %v3840, %v4021
      %v5117 = vsel %vm5114, %v3842, %v4023
      %v5118 = vsel %vm5114, %v3844, %v4025
      %v5119 = vsel %vm5114, %v3846, %v4027
      %v5120 = vsel %vm5114, %v3848, %v4029
      %v5121 = vsel %vm5114, %v3850, %v4031
      %v5122 = vsel %vm5114, %v3852, %v4033
      %v5123 = vsel %vm5114, %v3854, %v4035
      %v5124 = vsel %vm5114, %v3856, %v4037
      %v5125 = vsel %vm5114, %v3858, %v4039
      %v5126 = vsel %vm5114, %v3860, %v4041
      %v5127 = vsel %vm5114, %v3862, %v4043
      %v5128 = vsel %vm5114, %v3864, %v4045
      %v5129 = vsel %vm5114, %v3866, %v4047
      %v5130 = vsel %vm5114, %v3868, %v4049
      %v5131 = vsel %vm5114, %v3870, %v4051
      %v5132 = vsel %vm5114, %v3872, %v4053
      %v5133 = vsel %vm5114, %v3874, %v4055
      %v5134 = vsel %vm5114, %v3876, %v4057
      %v5135 = vsel %vm5114, %v3878, %v4059
      %v5136 = vsel %vm5114, %v3880, %v4061
      %v5137 = vsel %vm5114, %v3882, %v4063
      %v5138 = vsel %vm5114, %v3884, %v4065
      %v5139 = vsel %vm5114, %v3886, %v4067
      %v5140 = vsel %vm5114, %v3888, %v4069
      %v5141 = vsel %vm5114, %v3890, %v4071
      %v5142 = vsel %vm5114, %v3892, %v4073
      %v5143 = vsel %vm5114, %v3894, %v4075
      %v5144 = vsel %vm5114, %v3896, %v4077
      %v5145 = vsel %vm5114, %v3898, %v4079
      %v5146 = vsel %vm5114, %v3900, %v4081
      %v5147 = vsel %vm5114, %v3902, %v4083
      %v5148 = vsel %vm5114, %v3904, %v4085
      %v5149 = vsel %vm5114, %v3906, %v4087
      %v5150 = vsel %vm5114, %v3908, %v4089
      %vm5151 = vcmask 547840
      %v5152 = vsel %vm5151, %v5115, %v4133
      %v5153 = vsel %vm5151, %v5116, %v4135
      %v5154 = vsel %vm5151, %v5117, %v4137
      %v5155 = vsel %vm5151, %v5118, %v4139
      %v5156 = vsel %vm5151, %v5119, %v4141
      %v5157 = vsel %vm5151, %v5120, %v4143
      %v5158 = vsel %vm5151, %v5121, %v4145
      %v5159 = vsel %vm5151, %v5122, %v4147
      %v5160 = vsel %vm5151, %v5123, %v4149
      %v5161 = vsel %vm5151, %v5124, %v4151
      %v5162 = vsel %vm5151, %v5125, %v4153
      %v5163 = vsel %vm5151, %v5126, %v4155
      %v5164 = vsel %vm5151, %v5127, %v4157
      %v5165 = vsel %vm5151, %v5128, %v4159
      %v5166 = vsel %vm5151, %v5129, %v4161
      %v5167 = vsel %vm5151, %v5130, %v4163
      %v5168 = vsel %vm5151, %v5131, %v4165
      %v5169 = vsel %vm5151, %v5132, %v4167
      %v5170 = vsel %vm5151, %v5133, %v4169
      %v5171 = vsel %vm5151, %v5134, %v4171
      %v5172 = vsel %vm5151, %v5135, %v4173
      %v5173 = vsel %vm5151, %v5136, %v4175
      %v5174 = vsel %vm5151, %v5137, %v4177
      %v5175 = vsel %vm5151, %v5138, %v4179
      %v5176 = vsel %vm5151, %v5139, %v4181
      %v5177 = vsel %vm5151, %v5140, %v4183
      %v5178 = vsel %vm5151, %v5141, %v4185
      %v5179 = vsel %vm5151, %v5142, %v4187
      %v5180 = vsel %vm5151, %v5143, %v4189
      %v5181 = vsel %vm5151, %v5144, %v4191
      %v5182 = vsel %vm5151, %v5145, %v4193
      %v5183 = vsel %vm5151, %v5146, %v4195
      %v5184 = vsel %vm5151, %v5147, %v4197
      %v5185 = vsel %vm5151, %v5148, %v4199
      %v5186 = vsel %vm5151, %v5149, %v4201
      %v5187 = vsel %vm5151, %v5150, %v4203
      %vm5188 = vcmask 31744
      %v5189 = vsel %vm5188, %v4133, %v4314
      %v5190 = vsel %vm5188, %v4135, %v4316
      %v5191 = vsel %vm5188, %v4137, %v4318
      %v5192 = vsel %vm5188, %v4139, %v4320
      %v5193 = vsel %vm5188, %v4141, %v4322
      %v5194 = vsel %vm5188, %v4143, %v4324
      %v5195 = vsel %vm5188, %v4145, %v4326
      %v5196 = vsel %vm5188, %v4147, %v4328
      %v5197 = vsel %vm5188, %v4149, %v4330
      %v5198 = vsel %vm5188, %v4151, %v4332
      %v5199 = vsel %vm5188, %v4153, %v4334
      %v5200 = vsel %vm5188, %v4155, %v4336
      %v5201 = vsel %vm5188, %v4157, %v4338
      %v5202 = vsel %vm5188, %v4159, %v4340
      %v5203 = vsel %vm5188, %v4161, %v4342
      %v5204 = vsel %vm5188, %v4163, %v4344
      %v5205 = vsel %vm5188, %v4165, %v4346
      %v5206 = vsel %vm5188, %v4167, %v4348
      %v5207 = vsel %vm5188, %v4169, %v4350
      %v5208 = vsel %vm5188, %v4171, %v4352
      %v5209 = vsel %vm5188, %v4173, %v4354
      %v5210 = vsel %vm5188, %v4175, %v4356
      %v5211 = vsel %vm5188, %v4177, %v4358
      %v5212 = vsel %vm5188, %v4179, %v4360
      %v5213 = vsel %vm5188, %v4181, %v4362
      %v5214 = vsel %vm5188, %v4183, %v4364
      %v5215 = vsel %vm5188, %v4185, %v4366
      %v5216 = vsel %vm5188, %v4187, %v4368
      %v5217 = vsel %vm5188, %v4189, %v4370
      %v5218 = vsel %vm5188, %v4191, %v4372
      %v5219 = vsel %vm5188, %v4193, %v4374
      %v5220 = vsel %vm5188, %v4195, %v4376
      %v5221 = vsel %vm5188, %v4197, %v4378
      %v5222 = vsel %vm5188, %v4199, %v4380
      %v5223 = vsel %vm5188, %v4201, %v4382
      %v5224 = vsel %vm5188, %v4203, %v4384
      %vm5225 = vcmask 564224
      %v5226 = vsel %vm5225, %v5189, %v4495
      %v5227 = vsel %vm5225, %v5190, %v4497
      %v5228 = vsel %vm5225, %v5191, %v4499
      %v5229 = vsel %vm5225, %v5192, %v4501
      %v5230 = vsel %vm5225, %v5193, %v4503
      %v5231 = vsel %vm5225, %v5194, %v4505
      %v5232 = vsel %vm5225, %v5195, %v4507
      %v5233 = vsel %vm5225, %v5196, %v4509
      %v5234 = vsel %vm5225, %v5197, %v4511
      %v5235 = vsel %vm5225, %v5198, %v4513
      %v5236 = vsel %vm5225, %v5199, %v4515
      %v5237 = vsel %vm5225, %v5200, %v4517
      %v5238 = vsel %vm5225, %v5201, %v4519
      %v5239 = vsel %vm5225, %v5202, %v4521
      %v5240 = vsel %vm5225, %v5203, %v4523
      %v5241 = vsel %vm5225, %v5204, %v4525
      %v5242 = vsel %vm5225, %v5205, %v4527
      %v5243 = vsel %vm5225, %v5206, %v4529
      %v5244 = vsel %vm5225, %v5207, %v4531
      %v5245 = vsel %vm5225, %v5208, %v4533
      %v5246 = vsel %vm5225, %v5209, %v4535
      %v5247 = vsel %vm5225, %v5210, %v4537
      %v5248 = vsel %vm5225, %v5211, %v4539
      %v5249 = vsel %vm5225, %v5212, %v4541
      %v5250 = vsel %vm5225, %v5213, %v4543
      %v5251 = vsel %vm5225, %v5214, %v4545
      %v5252 = vsel %vm5225, %v5215, %v4547
      %v5253 = vsel %vm5225, %v5216, %v4549
      %v5254 = vsel %vm5225, %v5217, %v4551
      %v5255 = vsel %vm5225, %v5218, %v4553
      %v5256 = vsel %vm5225, %v5219, %v4555
      %v5257 = vsel %vm5225, %v5220, %v4557
      %v5258 = vsel %vm5225, %v5221, %v4559
      %v5259 = vsel %vm5225, %v5222, %v4561
      %v5260 = vsel %vm5225, %v5223, %v4563
      %v5261 = vsel %vm5225, %v5224, %v4565
      %v5262 = vsel %vm2957, %v4495, %v4609
      %v5263 = vsel %vm2957, %v4497, %v4611
      %v5264 = vsel %vm2957, %v4499, %v4613
      %v5265 = vsel %vm2957, %v4501, %v4615
      %v5266 = vsel %vm2957, %v4503, %v4617
      %v5267 = vsel %vm2957, %v4505, %v4619
      %v5268 = vsel %vm2957, %v4507, %v4621
      %v5269 = vsel %vm2957, %v4509, %v4623
      %v5270 = vsel %vm2957, %v4511, %v4625
      %v5271 = vsel %vm2957, %v4513, %v4627
      %v5272 = vsel %vm2957, %v4515, %v4629
      %v5273 = vsel %vm2957, %v4517, %v4631
      %v5274 = vsel %vm2957, %v4519, %v4633
      %v5275 = vsel %vm2957, %v4521, %v4635
      %v5276 = vsel %vm2957, %v4523, %v4637
      %v5277 = vsel %vm2957, %v4525, %v4639
      %v5278 = vsel %vm2957, %v4527, %v4641
      %v5279 = vsel %vm2957, %v4529, %v4643
      %v5280 = vsel %vm2957, %v4531, %v4645
      %v5281 = vsel %vm2957, %v4533, %v4647
      %v5282 = vsel %vm2957, %v4535, %v4649
      %v5283 = vsel %vm2957, %v4537, %v4651
      %v5284 = vsel %vm2957, %v4539, %v4653
      %v5285 = vsel %vm2957, %v4541, %v4655
      %v5286 = vsel %vm2957, %v4543, %v4657
      %v5287 = vsel %vm2957, %v4545, %v4659
      %v5288 = vsel %vm2957, %v4547, %v4661
      %v5289 = vsel %vm2957, %v4549, %v4663
      %v5290 = vsel %vm2957, %v4551, %v4665
      %v5291 = vsel %vm2957, %v4553, %v4667
      %v5292 = vsel %vm2957, %v4555, %v4669
      %v5293 = vsel %vm2957, %v4557, %v4671
      %v5294 = vsel %vm2957, %v4559, %v4673
      %v5295 = vsel %vm2957, %v4561, %v4675
      %v5296 = vsel %vm2957, %v4563, %v4677
      %v5297 = vsel %vm2957, %v4565, %v4679
      %vm5298 = vcmask 580608
      %v5299 = vsel %vm5298, %v5262, %v4790
      %v5300 = vsel %vm5298, %v5263, %v4792
      %v5301 = vsel %vm5298, %v5264, %v4794
      %v5302 = vsel %vm5298, %v5265, %v4796
      %v5303 = vsel %vm5298, %v5266, %v4798
      %v5304 = vsel %vm5298, %v5267, %v4800
      %v5305 = vsel %vm5298, %v5268, %v4802
      %v5306 = vsel %vm5298, %v5269, %v4804
      %v5307 = vsel %vm5298, %v5270, %v4806
      %v5308 = vsel %vm5298, %v5271, %v4808
      %v5309 = vsel %vm5298, %v5272, %v4810
      %v5310 = vsel %vm5298, %v5273, %v4812
      %v5311 = vsel %vm5298, %v5274, %v4814
      %v5312 = vsel %vm5298, %v5275, %v4816
      %v5313 = vsel %vm5298, %v5276, %v4818
      %v5314 = vsel %vm5298, %v5277, %v4820
      %v5315 = vsel %vm5298, %v5278, %v4822
      %v5316 = vsel %vm5298, %v5279, %v4824
      %v5317 = vsel %vm5298, %v5280, %v4826
      %v5318 = vsel %vm5298, %v5281, %v4828
      %v5319 = vsel %vm5298, %v5282, %v4830
      %v5320 = vsel %vm5298, %v5283, %v4832
      %v5321 = vsel %vm5298, %v5284, %v4834
      %v5322 = vsel %vm5298, %v5285, %v4836
      %v5323 = vsel %vm5298, %v5286, %v4838
      %v5324 = vsel %vm5298, %v5287, %v4840
      %v5325 = vsel %vm5298, %v5288, %v4842
      %v5326 = vsel %vm5298, %v5289, %v4844
      %v5327 = vsel %vm5298, %v5290, %v4846
      %v5328 = vsel %vm5298, %v5291, %v4848
      %v5329 = vsel %vm5298, %v5292, %v4850
      %v5330 = vsel %vm5298, %v5293, %v4852
      %v5331 = vsel %vm5298, %v5294, %v4854
      %v5332 = vsel %vm5298, %v5295, %v4856
      %v5333 = vsel %vm5298, %v5296, %v4858
      %v5334 = vsel %vm5298, %v5297, %v4860
      %vm5335 = vcmask 64512
      %v5336 = vsel %vm5335, %v4790, %v4971
      %v5337 = vsel %vm5335, %v4792, %v4973
      %v5338 = vsel %vm5335, %v4794, %v4975
      %v5339 = vsel %vm5335, %v4796, %v4977
      %v5340 = vsel %vm5335, %v4798, %v4979
      %v5341 = vsel %vm5335, %v4800, %v4981
      %v5342 = vsel %vm5335, %v4802, %v4983
      %v5343 = vsel %vm5335, %v4804, %v4985
      %v5344 = vsel %vm5335, %v4806, %v4987
      %v5345 = vsel %vm5335, %v4808, %v4989
      %v5346 = vsel %vm5335, %v4810, %v4991
      %v5347 = vsel %vm5335, %v4812, %v4993
      %v5348 = vsel %vm5335, %v4814, %v4995
      %v5349 = vsel %vm5335, %v4816, %v4997
      %v5350 = vsel %vm5335, %v4818, %v4999
      %v5351 = vsel %vm5335, %v4820, %v5001
      %v5352 = vsel %vm5335, %v4822, %v5003
      %v5353 = vsel %vm5335, %v4824, %v5005
      %v5354 = vsel %vm5335, %v4826, %v5007
      %v5355 = vsel %vm5335, %v4828, %v5009
      %v5356 = vsel %vm5335, %v4830, %v5011
      %v5357 = vsel %vm5335, %v4832, %v5013
      %v5358 = vsel %vm5335, %v4834, %v5015
      %v5359 = vsel %vm5335, %v4836, %v5017
      %v5360 = vsel %vm5335, %v4838, %v5019
      %v5361 = vsel %vm5335, %v4840, %v5021
      %v5362 = vsel %vm5335, %v4842, %v5023
      %v5363 = vsel %vm5335, %v4844, %v5025
      %v5364 = vsel %vm5335, %v4846, %v5027
      %v5365 = vsel %vm5335, %v4848, %v5029
      %v5366 = vsel %vm5335, %v4850, %v5031
      %v5367 = vsel %vm5335, %v4852, %v5033
      %v5368 = vsel %vm5335, %v4854, %v5035
      %v5369 = vsel %vm5335, %v4856, %v5037
      %v5370 = vsel %vm5335, %v4858, %v5039
      %v5371 = vsel %vm5335, %v4860, %v5041
      %v5372 = vld [vmem:[%s3] sm:$0xff]
      %v5373 = vld [vmem:[%s3 + $0x8] sm:$0xff]
      %v5374 = vld [vmem:[%s3 + $0x10] sm:$0xff]
      %v5375 = vld [vmem:[%s3 + $0x18] sm:$0xff]
      %v5376 = vld [vmem:[%s3 + $0x20] sm:$0xff]
      %v5377 = vld [vmem:[%s3 + $0x28] sm:$0xff]
      %v5378 = vld [vmem:[%s3 + $0x30] sm:$0xff]
      %v5379 = vld [vmem:[%s3 + $0x38] sm:$0xff]
      %v5380 = vld [vmem:[%s3 + $0x40] sm:$0xff]
      %v5381 = vld [vmem:[%s3 + $0x48] sm:$0xff]
      %v5382 = vld [vmem:[%s3 + $0x50] sm:$0xff]
      %v5383 = vld [vmem:[%s3 + $0x58] sm:$0xff]
      %v5384 = vld [vmem:[%s3 + $0x60] sm:$0xff]
      %v5385 = vld [vmem:[%s3 + $0x68] sm:$0xff]
      %v5386 = vld [vmem:[%s3 + $0x70] sm:$0xff]
      %v5387 = vld [vmem:[%s3 + $0x78] sm:$0xff]
      %v5388 = vld [vmem:[%s3 + $0x80] sm:$0xff]
      %v5389 = vld [vmem:[%s3 + $0x88] sm:$0xff]
      %v5390 = vld [vmem:[%s3 + $0x90] sm:$0xff]
      %v5391 = vld [vmem:[%s3 + $0x98] sm:$0xff]
      %v5392 = vld [vmem:[%s3 + $0xa0] sm:$0xff]
      %v5393 = vld [vmem:[%s3 + $0xa8] sm:$0xff]
      %v5394 = vld [vmem:[%s3 + $0xb0] sm:$0xff]
      %v5395 = vld [vmem:[%s3 + $0xb8] sm:$0xff]
      %v5396 = vld [vmem:[%s3 + $0xc0] sm:$0xff]
      %v5397 = vld [vmem:[%s3 + $0xc8] sm:$0xff]
      %v5398 = vld [vmem:[%s3 + $0xd0] sm:$0xff]
      %v5399 = vld [vmem:[%s3 + $0xd8] sm:$0xff]
      %v5400 = vld [vmem:[%s3 + $0xe0] sm:$0xff]
      %v5401 = vld [vmem:[%s3 + $0xe8] sm:$0xff]
      %v5402 = vld [vmem:[%s3 + $0xf0] sm:$0xff]
      %v5403 = vld [vmem:[%s3 + $0xf8] sm:$0xff]
      %v5404 = vld [vmem:[%s3 + $0x100] sm:$0xff]
      %v5405 = vld [vmem:[%s3 + $0x108] sm:$0xff]
      %v5406 = vld [vmem:[%s3 + $0x110] sm:$0xff]
      %v5407 = vld [vmem:[%s3 + $0x118] sm:$0xff]
      %v5408 = vld [vmem:[%s3 + $0x120] sm:$0xff]
      %v5409 = vld [vmem:[%s3 + $0x128] sm:$0xff]
      %v5410 = vld [vmem:[%s3 + $0x130] sm:$0xff]
      %v5411 = vld [vmem:[%s3 + $0x138] sm:$0xff]
      %v5412 = vld [vmem:[%s3 + $0x140] sm:$0xff]
      %v5413 = vld [vmem:[%s3 + $0x148] sm:$0xff]
      %v5414 = vld [vmem:[%s3 + $0x150] sm:$0xff]
      %v5415 = vld [vmem:[%s3 + $0x158] sm:$0xff]
      %v5416 = vld [vmem:[%s3 + $0x160] sm:$0xff]
      %v5417 = vld [vmem:[%s3 + $0x168] sm:$0xff]
      %v5418 = vld [vmem:[%s3 + $0x170] sm:$0xff]
      %v5419 = vld [vmem:[%s3 + $0x178] sm:$0xff]
      %v5420 = vld [vmem:[%s3 + $0x180] sm:$0xff]
      %v5421 = vld [vmem:[%s3 + $0x188] sm:$0xff]
      %v5422 = vld [vmem:[%s3 + $0x190] sm:$0xff]
      %v5423 = vld [vmem:[%s3 + $0x198] sm:$0xff]
      %v5424 = vld [vmem:[%s3 + $0x1a0] sm:$0xff]
      %v5425 = vld [vmem:[%s3 + $0x1a8] sm:$0xff]
      %v5426 = vld [vmem:[%s3 + $0x1b0] sm:$0xff]
      %v5427 = vld [vmem:[%s3 + $0x1b8] sm:$0xff]
      %v5428 = vld [vmem:[%s3 + $0x1c0] sm:$0xff]
      %v5429 = vld [vmem:[%s3 + $0x1c8] sm:$0xff]
      %v5430 = vld [vmem:[%s3 + $0x1d0] sm:$0xff]
      %v5431 = vld [vmem:[%s3 + $0x1d8] sm:$0xff]
      %v5432 = vld [vmem:[%s3 + $0x1e0] sm:$0xff]
      %v5433 = vld [vmem:[%s3 + $0x1e8] sm:$0xff]
      %v5434 = vld [vmem:[%s3 + $0x1f0] sm:$0xff]
      %v5435 = vld [vmem:[%s3 + $0x1f8] sm:$0xff]
      %v5436 = vld [vmem:[%s3 + $0x200] sm:$0xff]
      %v5437 = vld [vmem:[%s3 + $0x208] sm:$0xff]
      %v5438 = vld [vmem:[%s3 + $0x210] sm:$0xff]
      %v5439 = vld [vmem:[%s3 + $0x218] sm:$0xff]
      %v5440 = vld [vmem:[%s3 + $0x220] sm:$0xff]
      %v5441 = vld [vmem:[%s3 + $0x228] sm:$0xff]
      %v5442 = vld [vmem:[%s3 + $0x230] sm:$0xff]
      %v5443 = vld [vmem:[%s3 + $0x238] sm:$0xff]
      %v5444 = vld [vmem:[%s3 + $0x240] sm:$0xff]
      %v5445 = vld [vmem:[%s3 + $0x248] sm:$0x1]
      %v5446 = vld [vmem:[%s4] sm:$0x1]
      %v5448 = vperm.slane %v5446, 0
      %vm5450 = vcmask 596992
      %v5452 = vsel %vm5450, %v5336, 0
      %v5455 = vsel %vm5450, %v5337, 0
      %v5458 = vsel %vm5450, %v5338, 0
      %v5461 = vsel %vm5450, %v5339, 0
      %v5464 = vsel %vm5450, %v5340, 0
      %v5467 = vsel %vm5450, %v5341, 0
      %v5470 = vsel %vm5450, %v5342, 0
      %v5473 = vsel %vm5450, %v5343, 0
      %v5476 = vsel %vm5450, %v5344, 0
      %v5479 = vsel %vm5450, %v5345, 0
      %v5482 = vsel %vm5450, %v5346, 0
      %v5485 = vsel %vm5450, %v5347, 0
      %v5488 = vsel %vm5450, %v5348, 0
      %v5491 = vsel %vm5450, %v5349, 0
      %v5494 = vsel %vm5450, %v5350, 0
      %v5497 = vsel %vm5450, %v5351, 0
      %v5500 = vsel %vm5450, %v5352, 0
      %v5503 = vsel %vm5450, %v5353, 0
      %v5506 = vsel %vm5450, %v5354, 0
      %v5509 = vsel %vm5450, %v5355, 0
      %v5512 = vsel %vm5450, %v5356, 0
      %v5515 = vsel %vm5450, %v5357, 0
      %v5518 = vsel %vm5450, %v5358, 0
      %v5521 = vsel %vm5450, %v5359, 0
      %v5524 = vsel %vm5450, %v5360, 0
      %v5527 = vsel %vm5450, %v5361, 0
      %v5530 = vsel %vm5450, %v5362, 0
      %v5533 = vsel %vm5450, %v5363, 0
      %v5536 = vsel %vm5450, %v5364, 0
      %v5539 = vsel %vm5450, %v5365, 0
      %v5542 = vsel %vm5450, %v5366, 0
      %v5545 = vsel %vm5450, %v5367, 0
      %v5548 = vsel %vm5450, %v5368, 0
      %v5551 = vsel %vm5450, %v5369, 0
      %v5554 = vsel %vm5450, %v5370, 0
      %v5557 = vsel %vm5450, %v5371, 0
      %vm5559 = vcmask 1040384
      %v5561 = vsel %vm5559, %v5445, 0
      %5563 = vmatpush.msra.mxu0 %v5387
      %5564 = vmatpush.msra.mxu0 %v5386
      %5565 = vmatpush.msra.mxu0 %v5385
      %5566 = vmatpush.msra.mxu0 %v5384
      %5567 = vmatpush.msra.mxu0 %v5383
      %5568 = vmatpush.msra.mxu0 %v5382
      %5569 = vmatpush.msra.mxu0 %v5381
      %5570 = vmatpush.msra.mxu0 %v5380
      %5571 = vmatpush.msra.mxu0 %v5379
      %5572 = vmatpush.msra.mxu0 %v5378
      %5573 = vmatpush.msra.mxu0 %v5377
      %5574 = vmatpush.msra.mxu0 %v5376
      %5575 = vmatpush.msra.mxu0 %v5375
      %5576 = vmatpush.msra.mxu0 %v5374
      %5577 = vmatpush.msra.mxu0 %v5373
      %5578 = vmatpush.msra.mxu0 %v5372
      %5579 = vmatmul.f32.gmra.mxu0 %v5078
      %v5580 = vpop.f32.mrf.mxu0
      %v5581 = vadd.f32 %v5448, %v5580
      %5582 = vmatmul.f32.gmra.mxu0 %v5079
      %v5583 = vpop.f32.mrf.mxu0
      %v5584 = vadd.f32 %v5448, %v5583
      %5585 = vmatmul.f32.gmra.mxu0 %v5080
      %v5586 = vpop.f32.mrf.mxu0
      %v5587 = vadd.f32 %v5448, %v5586
      %5588 = vmatmul.f32.gmra.mxu0 %v5081
      %v5589 = vpop.f32.mrf.mxu0
      %v5590 = vadd.f32 %v5448, %v5589
      %5591 = vmatmul.f32.gmra.mxu0 %v5082
      %v5592 = vpop.f32.mrf.mxu0
      %v5593 = vadd.f32 %v5448, %v5592
      %5594 = vmatmul.f32.gmra.mxu0 %v5083
      %v5595 = vpop.f32.mrf.mxu0
      %v5596 = vadd.f32 %v5448, %v5595
      %5597 = vmatmul.f32.gmra.mxu0 %v5084
      %v5598 = vpop.f32.mrf.mxu0
      %v5599 = vadd.f32 %v5448, %v5598
      %5600 = vmatmul.f32.gmra.mxu0 %v5085
      %v5601 = vpop.f32.mrf.mxu0
      %v5602 = vadd.f32 %v5448, %v5601
      %5603 = vmatmul.f32.gmra.mxu0 %v5086
      %v5604 = vpop.f32.mrf.mxu0
      %v5605 = vadd.f32 %v5448, %v5604
      %5606 = vmatmul.f32.gmra.mxu0 %v5087
      %v5607 = vpop.f32.mrf.mxu0
      %v5608 = vadd.f32 %v5448, %v5607
      %5609 = vmatmul.f32.gmra.mxu0 %v5088
      %v5610 = vpop.f32.mrf.mxu0
      %v5611 = vadd.f32 %v5448, %v5610
      %5612 = vmatmul.f32.gmra.mxu0 %v5089
      %v5613 = vpop.f32.mrf.mxu0
      %v5614 = vadd.f32 %v5448, %v5613
      %5615 = vmatmul.f32.gmra.mxu0 %v5090
      %v5616 = vpop.f32.mrf.mxu0
      %v5617 = vadd.f32 %v5448, %v5616
      %5618 = vmatmul.f32.gmra.mxu0 %v5091
      %v5619 = vpop.f32.mrf.mxu0
      %v5620 = vadd.f32 %v5448, %v5619
      %5621 = vmatmul.f32.gmra.mxu0 %v5092
      %v5622 = vpop.f32.mrf.mxu0
      %v5623 = vadd.f32 %v5448, %v5622
      %5624 = vmatmul.f32.gmra.mxu0 %v5093
      %v5625 = vpop.f32.mrf.mxu0
      %v5626 = vadd.f32 %v5448, %v5625
      %5627 = vmatmul.f32.gmra.mxu0 %v5094
      %v5628 = vpop.f32.mrf.mxu0
      %v5629 = vadd.f32 %v5448, %v5628
      %5630 = vmatmul.f32.gmra.mxu0 %v5095
      %v5631 = vpop.f32.mrf.mxu0
      %v5632 = vadd.f32 %v5448, %v5631
      %5633 = vmatmul.f32.gmra.mxu0 %v5096
      %v5634 = vpop.f32.mrf.mxu0
      %v5635 = vadd.f32 %v5448, %v5634
      %5636 = vmatmul.f32.gmra.mxu0 %v5097
      %v5637 = vpop.f32.mrf.mxu0
      %v5638 = vadd.f32 %v5448, %v5637
      %5639 = vmatmul.f32.gmra.mxu0 %v5098
      %v5640 = vpop.f32.mrf.mxu0
      %v5641 = vadd.f32 %v5448, %v5640
      %5642 = vmatmul.f32.gmra.mxu0 %v5099
      %v5643 = vpop.f32.mrf.mxu0
      %v5644 = vadd.f32 %v5448, %v5643
      %5645 = vmatmul.f32.gmra.mxu0 %v5100
      %v5646 = vpop.f32.mrf.mxu0
      %v5647 = vadd.f32 %v5448, %v5646
      %5648 = vmatmul.f32.gmra.mxu0 %v5101
      %v5649 = vpop.f32.mrf.mxu0
      %v5650 = vadd.f32 %v5448, %v5649
      %5651 = vmatmul.f32.gmra.mxu0 %v5102
      %v5652 = vpop.f32.mrf.mxu0
      %v5653 = vadd.f32 %v5448, %v5652
      %5654 = vmatmul.f32.gmra.mxu0 %v5103
      %v5655 = vpop.f32.mrf.mxu0
      %v5656 = vadd.f32 %v5448, %v5655
      %5657 = vmatmul.f32.gmra.mxu0 %v5104
      %v5658 = vpop.f32.mrf.mxu0
      %v5659 = vadd.f32 %v5448, %v5658
      %5660 = vmatmul.f32.gmra.mxu0 %v5105
      %v5661 = vpop.f32.mrf.mxu0
      %v5662 = vadd.f32 %v5448, %v5661
      %5663 = vmatmul.f32.gmra.mxu0 %v5106
      %v5664 = vpop.f32.mrf.mxu0
      %v5665 = vadd.f32 %v5448, %v5664
      %5666 = vmatmul.f32.gmra.mxu0 %v5107
      %v5667 = vpop.f32.mrf.mxu0
      %v5668 = vadd.f32 %v5448, %v5667
      %5669 = vmatmul.f32.gmra.mxu0 %v5108
      %v5670 = vpop.f32.mrf.mxu0
      %v5671 = vadd.f32 %v5448, %v5670
      %5672 = vmatmul.f32.gmra.mxu0 %v5109
      %v5673 = vpop.f32.mrf.mxu0
      %v5674 = vadd.f32 %v5448, %v5673
      %5675 = vmatmul.f32.gmra.mxu0 %v5110
      %v5676 = vpop.f32.mrf.mxu0
      %v5677 = vadd.f32 %v5448, %v5676
      %5678 = vmatmul.f32.gmra.mxu0 %v5111
      %v5679 = vpop.f32.mrf.mxu0
      %v5680 = vadd.f32 %v5448, %v5679
      %5681 = vmatmul.f32.gmra.mxu0 %v5112
      %v5682 = vpop.f32.mrf.mxu0
      %v5683 = vadd.f32 %v5448, %v5682
      %5684 = vmatmul.f32.gmra.mxu0 %v5113
      %v5685 = vpop.f32.mrf.mxu0
      %v5686 = vadd.f32 %v5448, %v5685
      %5687 = vdwg.mxu0
      %5688 = vmatpush.msra.mxu0 %v5403
      %5689 = vmatpush.msra.mxu0 %v5402
      %5690 = vmatpush.msra.mxu0 %v5401
      %5691 = vmatpush.msra.mxu0 %v5400
      %5692 = vmatpush.msra.mxu0 %v5399
      %5693 = vmatpush.msra.mxu0 %v5398
      %5694 = vmatpush.msra.mxu0 %v5397
      %5695 = vmatpush.msra.mxu0 %v5396
      %5696 = vmatpush.msra.mxu0 %v5395
      %5697 = vmatpush.msra.mxu0 %v5394
      %5698 = vmatpush.msra.mxu0 %v5393
      %5699 = vmatpush.msra.mxu0 %v5392
      %5700 = vmatpush.msra.mxu0 %v5391
      %5701 = vmatpush.msra.mxu0 %v5390
      %5702 = vmatpush.msra.mxu0 %v5389
      %5703 = vmatpush.msra.mxu0 %v5388
      %5704 = vmatmul.f32.gmra.mxu0 %v5152
      %v5705 = vpop.f32.mrf.mxu0
      %v5706 = vadd.f32 %v5581, %v5705
      %5707 = vmatmul.f32.gmra.mxu0 %v5153
      %v5708 = vpop.f32.mrf.mxu0
      %v5709 = vadd.f32 %v5584, %v5708
      %5710 = vmatmul.f32.gmra.mxu0 %v5154
      %v5711 = vpop.f32.mrf.mxu0
      %v5712 = vadd.f32 %v5587, %v5711
      %5713 = vmatmul.f32.gmra.mxu0 %v5155
      %v5714 = vpop.f32.mrf.mxu0
      %v5715 = vadd.f32 %v5590, %v5714
      %5716 = vmatmul.f32.gmra.mxu0 %v5156
      %v5717 = vpop.f32.mrf.mxu0
      %v5718 = vadd.f32 %v5593, %v5717
      %5719 = vmatmul.f32.gmra.mxu0 %v5157
      %v5720 = vpop.f32.mrf.mxu0
      %v5721 = vadd.f32 %v5596, %v5720
      %5722 = vmatmul.f32.gmra.mxu0 %v5158
      %v5723 = vpop.f32.mrf.mxu0
      %v5724 = vadd.f32 %v5599, %v5723
      %5725 = vmatmul.f32.gmra.mxu0 %v5159
      %v5726 = vpop.f32.mrf.mxu0
      %v5727 = vadd.f32 %v5602, %v5726
      %5728 = vmatmul.f32.gmra.mxu0 %v5160
      %v5729 = vpop.f32.mrf.mxu0
      %v5730 = vadd.f32 %v5605, %v5729
      %5731 = vmatmul.f32.gmra.mxu0 %v5161
      %v5732 = vpop.f32.mrf.mxu0
      %v5733 = vadd.f32 %v5608, %v5732
      %5734 = vmatmul.f32.gmra.mxu0 %v5162
      %v5735 = vpop.f32.mrf.mxu0
      %v5736 = vadd.f32 %v5611, %v5735
      %5737 = vmatmul.f32.gmra.mxu0 %v5163
      %v5738 = vpop.f32.mrf.mxu0
      %v5739 = vadd.f32 %v5614, %v5738
      %5740 = vmatmul.f32.gmra.mxu0 %v5164
      %v5741 = vpop.f32.mrf.mxu0
      %v5742 = vadd.f32 %v5617, %v5741
      %5743 = vmatmul.f32.gmra.mxu0 %v5165
      %v5744 = vpop.f32.mrf.mxu0
      %v5745 = vadd.f32 %v5620, %v5744
      %5746 = vmatmul.f32.gmra.mxu0 %v5166
      %v5747 = vpop.f32.mrf.mxu0
      %v5748 = vadd.f32 %v5623, %v5747
      %5749 = vmatmul.f32.gmra.mxu0 %v5167
      %v5750 = vpop.f32.mrf.mxu0
      %v5751 = vadd.f32 %v5626, %v5750
      %5752 = vmatmul.f32.gmra.mxu0 %v5168
      %v5753 = vpop.f32.mrf.mxu0
      %v5754 = vadd.f32 %v5629, %v5753
      %5755 = vmatmul.f32.gmra.mxu0 %v5169
      %v5756 = vpop.f32.mrf.mxu0
      %v5757 = vadd.f32 %v5632, %v5756
      %5758 = vmatmul.f32.gmra.mxu0 %v5170
      %v5759 = vpop.f32.mrf.mxu0
      %v5760 = vadd.f32 %v5635, %v5759
      %5761 = vmatmul.f32.gmra.mxu0 %v5171
      %v5762 = vpop.f32.mrf.mxu0
      %v5763 = vadd.f32 %v5638, %v5762
      %5764 = vmatmul.f32.gmra.mxu0 %v5172
      %v5765 = vpop.f32.mrf.mxu0
      %v5766 = vadd.f32 %v5641, %v5765
      %5767 = vmatmul.f32.gmra.mxu0 %v5173
      %v5768 = vpop.f32.mrf.mxu0
      %v5769 = vadd.f32 %v5644, %v5768
      %5770 = vmatmul.f32.gmra.mxu0 %v5174
      %v5771 = vpop.f32.mrf.mxu0
      %v5772 = vadd.f32 %v5647, %v5771
      %5773 = vmatmul.f32.gmra.mxu0 %v5175
      %v5774 = vpop.f32.mrf.mxu0
      %v5775 = vadd.f32 %v5650, %v5774
      %5776 = vmatmul.f32.gmra.mxu0 %v5176
      %v5777 = vpop.f32.mrf.mxu0
      %v5778 = vadd.f32 %v5653, %v5777
      %5779 = vmatmul.f32.gmra.mxu0 %v5177
      %v5780 = vpop.f32.mrf.mxu0
      %v5781 = vadd.f32 %v5656, %v5780
      %5782 = vmatmul.f32.gmra.mxu0 %v5178
      %v5783 = vpop.f32.mrf.mxu0
      %v5784 = vadd.f32 %v5659, %v5783
      %5785 = vmatmul.f32.gmra.mxu0 %v5179
      %v5786 = vpop.f32.mrf.mxu0
      %v5787 = vadd.f32 %v5662, %v5786
      %5788 = vmatmul.f32.gmra.mxu0 %v5180
      %v5789 = vpop.f32.mrf.mxu0
      %v5790 = vadd.f32 %v5665, %v5789
      %5791 = vmatmul.f32.gmra.mxu0 %v5181
      %v5792 = vpop.f32.mrf.mxu0
      %v5793 = vadd.f32 %v5668, %v5792
      %5794 = vmatmul.f32.gmra.mxu0 %v5182
      %v5795 = vpop.f32.mrf.mxu0
      %v5796 = vadd.f32 %v5671, %v5795
      %5797 = vmatmul.f32.gmra.mxu0 %v5183
      %v5798 = vpop.f32.mrf.mxu0
      %v5799 = vadd.f32 %v5674, %v5798
      %5800 = vmatmul.f32.gmra.mxu0 %v5184
      %v5801 = vpop.f32.mrf.mxu0
      %v5802 = vadd.f32 %v5677, %v5801
      %5803 = vmatmul.f32.gmra.mxu0 %v5185
      %v5804 = vpop.f32.mrf.mxu0
      %v5805 = vadd.f32 %v5680, %v5804
      %5806 = vmatmul.f32.gmra.mxu0 %v5186
      %v5807 = vpop.f32.mrf.mxu0
      %v5808 = vadd.f32 %v5683, %v5807
      %5809 = vmatmul.f32.gmra.mxu0 %v5187
      %v5810 = vpop.f32.mrf.mxu0
      %v5811 = vadd.f32 %v5686, %v5810
      %5812 = vdwg.mxu0
      %5813 = vmatpush.msra.mxu0 %v5419
      %5814 = vmatpush.msra.mxu0 %v5418
      %5815 = vmatpush.msra.mxu0 %v5417
      %5816 = vmatpush.msra.mxu0 %v5416
      %5817 = vmatpush.msra.mxu0 %v5415
      %5818 = vmatpush.msra.mxu0 %v5414
      %5819 = vmatpush.msra.mxu0 %v5413
      %5820 = vmatpush.msra.mxu0 %v5412
      %5821 = vmatpush.msra.mxu0 %v5411
      %5822 = vmatpush.msra.mxu0 %v5410
      %5823 = vmatpush.msra.mxu0 %v5409
      %5824 = vmatpush.msra.mxu0 %v5408
      %5825 = vmatpush.msra.mxu0 %v5407
      %5826 = vmatpush.msra.mxu0 %v5406
      %5827 = vmatpush.msra.mxu0 %v5405
      %5828 = vmatpush.msra.mxu0 %v5404
      %5829 = vmatmul.f32.gmra.mxu0 %v5226
      %v5830 = vpop.f32.mrf.mxu0
      %v5831 = vadd.f32 %v5706, %v5830
      %5832 = vmatmul.f32.gmra.mxu0 %v5227
      %v5833 = vpop.f32.mrf.mxu0
      %v5834 = vadd.f32 %v5709, %v5833
      %5835 = vmatmul.f32.gmra.mxu0 %v5228
      %v5836 = vpop.f32.mrf.mxu0
      %v5837 = vadd.f32 %v5712, %v5836
      %5838 = vmatmul.f32.gmra.mxu0 %v5229
      %v5839 = vpop.f32.mrf.mxu0
      %v5840 = vadd.f32 %v5715, %v5839
      %5841 = vmatmul.f32.gmra.mxu0 %v5230
      %v5842 = vpop.f32.mrf.mxu0
      %v5843 = vadd.f32 %v5718, %v5842
      %5844 = vmatmul.f32.gmra.mxu0 %v5231
      %v5845 = vpop.f32.mrf.mxu0
      %v5846 = vadd.f32 %v5721, %v5845
      %5847 = vmatmul.f32.gmra.mxu0 %v5232
      %v5848 = vpop.f32.mrf.mxu0
      %v5849 = vadd.f32 %v5724, %v5848
      %5850 = vmatmul.f32.gmra.mxu0 %v5233
      %v5851 = vpop.f32.mrf.mxu0
      %v5852 = vadd.f32 %v5727, %v5851
      %5853 = vmatmul.f32.gmra.mxu0 %v5234
      %v5854 = vpop.f32.mrf.mxu0
      %v5855 = vadd.f32 %v5730, %v5854
      %5856 = vmatmul.f32.gmra.mxu0 %v5235
      %v5857 = vpop.f32.mrf.mxu0
      %v5858 = vadd.f32 %v5733, %v5857
      %5859 = vmatmul.f32.gmra.mxu0 %v5236
      %v5860 = vpop.f32.mrf.mxu0
      %v5861 = vadd.f32 %v5736, %v5860
      %5862 = vmatmul.f32.gmra.mxu0 %v5237
      %v5863 = vpop.f32.mrf.mxu0
      %v5864 = vadd.f32 %v5739, %v5863
      %5865 = vmatmul.f32.gmra.mxu0 %v5238
      %v5866 = vpop.f32.mrf.mxu0
      %v5867 = vadd.f32 %v5742, %v5866
      %5868 = vmatmul.f32.gmra.mxu0 %v5239
      %v5869 = vpop.f32.mrf.mxu0
      %v5870 = vadd.f32 %v5745, %v5869
      %5871 = vmatmul.f32.gmra.mxu0 %v5240
      %v5872 = vpop.f32.mrf.mxu0
      %v5873 = vadd.f32 %v5748, %v5872
      %5874 = vmatmul.f32.gmra.mxu0 %v5241
      %v5875 = vpop.f32.mrf.mxu0
      %v5876 = vadd.f32 %v5751, %v5875
      %5877 = vmatmul.f32.gmra.mxu0 %v5242
      %v5878 = vpop.f32.mrf.mxu0
      %v5879 = vadd.f32 %v5754, %v5878
      %5880 = vmatmul.f32.gmra.mxu0 %v5243
      %v5881 = vpop.f32.mrf.mxu0
      %v5882 = vadd.f32 %v5757, %v5881
      %5883 = vmatmul.f32.gmra.mxu0 %v5244
      %v5884 = vpop.f32.mrf.mxu0
      %v5885 = vadd.f32 %v5760, %v5884
      %5886 = vmatmul.f32.gmra.mxu0 %v5245
      %v5887 = vpop.f32.mrf.mxu0
      %v5888 = vadd.f32 %v5763, %v5887
      %5889 = vmatmul.f32.gmra.mxu0 %v5246
      %v5890 = vpop.f32.mrf.mxu0
      %v5891 = vadd.f32 %v5766, %v5890
      %5892 = vmatmul.f32.gmra.mxu0 %v5247
      %v5893 = vpop.f32.mrf.mxu0
      %v5894 = vadd.f32 %v5769, %v5893
      %5895 = vmatmul.f32.gmra.mxu0 %v5248
      %v5896 = vpop.f32.mrf.mxu0
      %v5897 = vadd.f32 %v5772, %v5896
      %5898 = vmatmul.f32.gmra.mxu0 %v5249
      %v5899 = vpop.f32.mrf.mxu0
      %v5900 = vadd.f32 %v5775, %v5899
      %5901 = vmatmul.f32.gmra.mxu0 %v5250
      %v5902 = vpop.f32.mrf.mxu0
      %v5903 = vadd.f32 %v5778, %v5902
      %5904 = vmatmul.f32.gmra.mxu0 %v5251
      %v5905 = vpop.f32.mrf.mxu0
      %v5906 = vadd.f32 %v5781, %v5905
      %5907 = vmatmul.f32.gmra.mxu0 %v5252
      %v5908 = vpop.f32.mrf.mxu0
      %v5909 = vadd.f32 %v5784, %v5908
      %5910 = vmatmul.f32.gmra.mxu0 %v5253
      %v5911 = vpop.f32.mrf.mxu0
      %v5912 = vadd.f32 %v5787, %v5911
      %5913 = vmatmul.f32.gmra.mxu0 %v5254
      %v5914 = vpop.f32.mrf.mxu0
      %v5915 = vadd.f32 %v5790, %v5914
      %5916 = vmatmul.f32.gmra.mxu0 %v5255
      %v5917 = vpop.f32.mrf.mxu0
      %v5918 = vadd.f32 %v5793, %v5917
      %5919 = vmatmul.f32.gmra.mxu0 %v5256
      %v5920 = vpop.f32.mrf.mxu0
      %v5921 = vadd.f32 %v5796, %v5920
      %5922 = vmatmul.f32.gmra.mxu0 %v5257
      %v5923 = vpop.f32.mrf.mxu0
      %v5924 = vadd.f32 %v5799, %v5923
      %5925 = vmatmul.f32.gmra.mxu0 %v5258
      %v5926 = vpop.f32.mrf.mxu0
      %v5927 = vadd.f32 %v5802, %v5926
      %5928 = vmatmul.f32.gmra.mxu0 %v5259
      %v5929 = vpop.f32.mrf.mxu0
      %v5930 = vadd.f32 %v5805, %v5929
      %5931 = vmatmul.f32.gmra.mxu0 %v5260
      %v5932 = vpop.f32.mrf.mxu0
      %v5933 = vadd.f32 %v5808, %v5932
      %5934 = vmatmul.f32.gmra.mxu0 %v5261
      %v5935 = vpop.f32.mrf.mxu0
      %v5936 = vadd.f32 %v5811, %v5935
      %5937 = vdwg.mxu0
      %5938 = vmatpush.msra.mxu0 %v5435
      %5939 = vmatpush.msra.mxu0 %v5434
      %5940 = vmatpush.msra.mxu0 %v5433
      %5941 = vmatpush.msra.mxu0 %v5432
      %5942 = vmatpush.msra.mxu0 %v5431
      %5943 = vmatpush.msra.mxu0 %v5430
      %5944 = vmatpush.msra.mxu0 %v5429
      %5945 = vmatpush.msra.mxu0 %v5428
      %5946 = vmatpush.msra.mxu0 %v5427
      %5947 = vmatpush.msra.mxu0 %v5426
      %5948 = vmatpush.msra.mxu0 %v5425
      %5949 = vmatpush.msra.mxu0 %v5424
      %5950 = vmatpush.msra.mxu0 %v5423
      %5951 = vmatpush.msra.mxu0 %v5422
      %5952 = vmatpush.msra.mxu0 %v5421
      %5953 = vmatpush.msra.mxu0 %v5420
      %5954 = vmatmul.f32.gmra.mxu0 %v5299
      %v5955 = vpop.f32.mrf.mxu0
      %v5956 = vadd.f32 %v5831, %v5955
      %5957 = vmatmul.f32.gmra.mxu0 %v5300
      %v5958 = vpop.f32.mrf.mxu0
      %v5959 = vadd.f32 %v5834, %v5958
      %5960 = vmatmul.f32.gmra.mxu0 %v5301
      %v5961 = vpop.f32.mrf.mxu0
      %v5962 = vadd.f32 %v5837, %v5961
      %5963 = vmatmul.f32.gmra.mxu0 %v5302
      %v5964 = vpop.f32.mrf.mxu0
      %v5965 = vadd.f32 %v5840, %v5964
      %5966 = vmatmul.f32.gmra.mxu0 %v5303
      %v5967 = vpop.f32.mrf.mxu0
      %v5968 = vadd.f32 %v5843, %v5967
      %5969 = vmatmul.f32.gmra.mxu0 %v5304
      %v5970 = vpop.f32.mrf.mxu0
      %v5971 = vadd.f32 %v5846, %v5970
      %5972 = vmatmul.f32.gmra.mxu0 %v5305
      %v5973 = vpop.f32.mrf.mxu0
      %v5974 = vadd.f32 %v5849, %v5973
      %5975 = vmatmul.f32.gmra.mxu0 %v5306
      %v5976 = vpop.f32.mrf.mxu0
      %v5977 = vadd.f32 %v5852, %v5976
      %5978 = vmatmul.f32.gmra.mxu0 %v5307
      %v5979 = vpop.f32.mrf.mxu0
      %v5980 = vadd.f32 %v5855, %v5979
      %5981 = vmatmul.f32.gmra.mxu0 %v5308
      %v5982 = vpop.f32.mrf.mxu0
      %v5983 = vadd.f32 %v5858, %v5982
      %5984 = vmatmul.f32.gmra.mxu0 %v5309
      %v5985 = vpop.f32.mrf.mxu0
      %v5986 = vadd.f32 %v5861, %v5985
      %5987 = vmatmul.f32.gmra.mxu0 %v5310
      %v5988 = vpop.f32.mrf.mxu0
      %v5989 = vadd.f32 %v5864, %v5988
      %5990 = vmatmul.f32.gmra.mxu0 %v5311
      %v5991 = vpop.f32.mrf.mxu0
      %v5992 = vadd.f32 %v5867, %v5991
      %5993 = vmatmul.f32.gmra.mxu0 %v5312
      %v5994 = vpop.f32.mrf.mxu0
      %v5995 = vadd.f32 %v5870, %v5994
      %5996 = vmatmul.f32.gmra.mxu0 %v5313
      %v5997 = vpop.f32.mrf.mxu0
      %v5998 = vadd.f32 %v5873, %v5997
      %5999 = vmatmul.f32.gmra.mxu0 %v5314
      %v6000 = vpop.f32.mrf.mxu0
      %v6001 = vadd.f32 %v5876, %v6000
      %6002 = vmatmul.f32.gmra.mxu0 %v5315
      %v6003 = vpop.f32.mrf.mxu0
      %v6004 = vadd.f32 %v5879, %v6003
      %6005 = vmatmul.f32.gmra.mxu0 %v5316
      %v6006 = vpop.f32.mrf.mxu0
      %v6007 = vadd.f32 %v5882, %v6006
      %6008 = vmatmul.f32.gmra.mxu0 %v5317
      %v6009 = vpop.f32.mrf.mxu0
      %v6010 = vadd.f32 %v5885, %v6009
      %6011 = vmatmul.f32.gmra.mxu0 %v5318
      %v6012 = vpop.f32.mrf.mxu0
      %v6013 = vadd.f32 %v5888, %v6012
      %6014 = vmatmul.f32.gmra.mxu0 %v5319
      %v6015 = vpop.f32.mrf.mxu0
      %v6016 = vadd.f32 %v5891, %v6015
      %6017 = vmatmul.f32.gmra.mxu0 %v5320
      %v6018 = vpop.f32.mrf.mxu0
      %v6019 = vadd.f32 %v5894, %v6018
      %6020 = vmatmul.f32.gmra.mxu0 %v5321
      %v6021 = vpop.f32.mrf.mxu0
      %v6022 = vadd.f32 %v5897, %v6021
      %6023 = vmatmul.f32.gmra.mxu0 %v5322
      %v6024 = vpop.f32.mrf.mxu0
      %v6025 = vadd.f32 %v5900, %v6024
      %6026 = vmatmul.f32.gmra.mxu0 %v5323
      %v6027 = vpop.f32.mrf.mxu0
      %v6028 = vadd.f32 %v5903, %v6027
      %6029 = vmatmul.f32.gmra.mxu0 %v5324
      %v6030 = vpop.f32.mrf.mxu0
      %v6031 = vadd.f32 %v5906, %v6030
      %6032 = vmatmul.f32.gmra.mxu0 %v5325
      %v6033 = vpop.f32.mrf.mxu0
      %v6034 = vadd.f32 %v5909, %v6033
      %6035 = vmatmul.f32.gmra.mxu0 %v5326
      %v6036 = vpop.f32.mrf.mxu0
      %v6037 = vadd.f32 %v5912, %v6036
      %6038 = vmatmul.f32.gmra.mxu0 %v5327
      %v6039 = vpop.f32.mrf.mxu0
      %v6040 = vadd.f32 %v5915, %v6039
      %6041 = vmatmul.f32.gmra.mxu0 %v5328
      %v6042 = vpop.f32.mrf.mxu0
      %v6043 = vadd.f32 %v5918, %v6042
      %6044 = vmatmul.f32.gmra.mxu0 %v5329
      %v6045 = vpop.f32.mrf.mxu0
      %v6046 = vadd.f32 %v5921, %v6045
      %6047 = vmatmul.f32.gmra.mxu0 %v5330
      %v6048 = vpop.f32.mrf.mxu0
      %v6049 = vadd.f32 %v5924, %v6048
      %6050 = vmatmul.f32.gmra.mxu0 %v5331
      %v6051 = vpop.f32.mrf.mxu0
      %v6052 = vadd.f32 %v5927, %v6051
      %6053 = vmatmul.f32.gmra.mxu0 %v5332
      %v6054 = vpop.f32.mrf.mxu0
      %v6055 = vadd.f32 %v5930, %v6054
      %6056 = vmatmul.f32.gmra.mxu0 %v5333
      %v6057 = vpop.f32.mrf.mxu0
      %v6058 = vadd.f32 %v5933, %v6057
      %6059 = vmatmul.f32.gmra.mxu0 %v5334
      %v6060 = vpop.f32.mrf.mxu0
      %v6061 = vadd.f32 %v5936, %v6060
      %6062 = vdwg.mxu0
      %6063 = vmatpush.msra.mxu0 0.0
      %6064 = vmatpush.msra.mxu0 0.0
      %6065 = vmatpush.msra.mxu0 0.0
      %6066 = vmatpush.msra.mxu0 0.0
      %6067 = vmatpush.msra.mxu0 0.0
      %6068 = vmatpush.msra.mxu0 0.0
      %6069 = vmatpush.msra.mxu0 %v5561
      %6070 = vmatpush.msra.mxu0 %v5444
      %6071 = vmatpush.msra.mxu0 %v5443
      %6072 = vmatpush.msra.mxu0 %v5442
      %6073 = vmatpush.msra.mxu0 %v5441
      %6074 = vmatpush.msra.mxu0 %v5440
      %6075 = vmatpush.msra.mxu0 %v5439
      %6076 = vmatpush.msra.mxu0 %v5438
      %6077 = vmatpush.msra.mxu0 %v5437
      %6078 = vmatpush.msra.mxu0 %v5436
      %6079 = vmatmul.f32.gmra.mxu0 %v5452
      %v6080 = vpop.f32.mrf.mxu0
      %v6081 = vadd.f32 %v5956, %v6080
      %6082 = vmatmul.f32.gmra.mxu0 %v5455
      %v6083 = vpop.f32.mrf.mxu0
      %v6084 = vadd.f32 %v5959, %v6083
      %6085 = vmatmul.f32.gmra.mxu0 %v5458
      %v6086 = vpop.f32.mrf.mxu0
      %v6087 = vadd.f32 %v5962, %v6086
      %6088 = vmatmul.f32.gmra.mxu0 %v5461
      %v6089 = vpop.f32.mrf.mxu0
      %v6090 = vadd.f32 %v5965, %v6089
      %6091 = vmatmul.f32.gmra.mxu0 %v5464
      %v6092 = vpop.f32.mrf.mxu0
      %v6093 = vadd.f32 %v5968, %v6092
      %6094 = vmatmul.f32.gmra.mxu0 %v5467
      %v6095 = vpop.f32.mrf.mxu0
      %v6096 = vadd.f32 %v5971, %v6095
      %6097 = vmatmul.f32.gmra.mxu0 %v5470
      %v6098 = vpop.f32.mrf.mxu0
      %v6099 = vadd.f32 %v5974, %v6098
      %6100 = vmatmul.f32.gmra.mxu0 %v5473
      %v6101 = vpop.f32.mrf.mxu0
      %v6102 = vadd.f32 %v5977, %v6101
      %6103 = vmatmul.f32.gmra.mxu0 %v5476
      %v6104 = vpop.f32.mrf.mxu0
      %v6105 = vadd.f32 %v5980, %v6104
      %6106 = vmatmul.f32.gmra.mxu0 %v5479
      %v6107 = vpop.f32.mrf.mxu0
      %v6108 = vadd.f32 %v5983, %v6107
      %6109 = vmatmul.f32.gmra.mxu0 %v5482
      %v6110 = vpop.f32.mrf.mxu0
      %v6111 = vadd.f32 %v5986, %v6110
      %6112 = vmatmul.f32.gmra.mxu0 %v5485
      %v6113 = vpop.f32.mrf.mxu0
      %v6114 = vadd.f32 %v5989, %v6113
      %6115 = vmatmul.f32.gmra.mxu0 %v5488
      %v6116 = vpop.f32.mrf.mxu0
      %v6117 = vadd.f32 %v5992, %v6116
      %6118 = vmatmul.f32.gmra.mxu0 %v5491
      %v6119 = vpop.f32.mrf.mxu0
      %v6120 = vadd.f32 %v5995, %v6119
      %6121 = vmatmul.f32.gmra.mxu0 %v5494
      %v6122 = vpop.f32.mrf.mxu0
      %v6123 = vadd.f32 %v5998, %v6122
      %6124 = vmatmul.f32.gmra.mxu0 %v5497
      %v6125 = vpop.f32.mrf.mxu0
      %v6126 = vadd.f32 %v6001, %v6125
      %6127 = vmatmul.f32.gmra.mxu0 %v5500
      %v6128 = vpop.f32.mrf.mxu0
      %v6129 = vadd.f32 %v6004, %v6128
      %6130 = vmatmul.f32.gmra.mxu0 %v5503
      %v6131 = vpop.f32.mrf.mxu0
      %v6132 = vadd.f32 %v6007, %v6131
      %6133 = vmatmul.f32.gmra.mxu0 %v5506
      %v6134 = vpop.f32.mrf.mxu0
      %v6135 = vadd.f32 %v6010, %v6134
      %6136 = vmatmul.f32.gmra.mxu0 %v5509
      %v6137 = vpop.f32.mrf.mxu0
      %v6138 = vadd.f32 %v6013, %v6137
      %6139 = vmatmul.f32.gmra.mxu0 %v5512
      %v6140 = vpop.f32.mrf.mxu0
      %v6141 = vadd.f32 %v6016, %v6140
      %6142 = vmatmul.f32.gmra.mxu0 %v5515
      %v6143 = vpop.f32.mrf.mxu0
      %v6144 = vadd.f32 %v6019, %v6143
      %6145 = vmatmul.f32.gmra.mxu0 %v5518
      %v6146 = vpop.f32.mrf.mxu0
      %v6147 = vadd.f32 %v6022, %v6146
      %6148 = vmatmul.f32.gmra.mxu0 %v5521
      %v6149 = vpop.f32.mrf.mxu0
      %v6150 = vadd.f32 %v6025, %v6149
      %6151 = vmatmul.f32.gmra.mxu0 %v5524
      %v6152 = vpop.f32.mrf.mxu0
      %v6153 = vadd.f32 %v6028, %v6152
      %6154 = vmatmul.f32.gmra.mxu0 %v5527
      %v6155 = vpop.f32.mrf.mxu0
      %v6156 = vadd.f32 %v6031, %v6155
      %6157 = vmatmul.f32.gmra.mxu0 %v5530
      %v6158 = vpop.f32.mrf.mxu0
      %v6159 = vadd.f32 %v6034, %v6158
      %6160 = vmatmul.f32.gmra.mxu0 %v5533
      %v6161 = vpop.f32.mrf.mxu0
      %v6162 = vadd.f32 %v6037, %v6161
      %6163 = vmatmul.f32.gmra.mxu0 %v5536
      %v6164 = vpop.f32.mrf.mxu0
      %v6165 = vadd.f32 %v6040, %v6164
      %6166 = vmatmul.f32.gmra.mxu0 %v5539
      %v6167 = vpop.f32.mrf.mxu0
      %v6168 = vadd.f32 %v6043, %v6167
      %6169 = vmatmul.f32.gmra.mxu0 %v5542
      %v6170 = vpop.f32.mrf.mxu0
      %v6171 = vadd.f32 %v6046, %v6170
      %6172 = vmatmul.f32.gmra.mxu0 %v5545
      %v6173 = vpop.f32.mrf.mxu0
      %v6174 = vadd.f32 %v6049, %v6173
      %6175 = vmatmul.f32.gmra.mxu0 %v5548
      %v6176 = vpop.f32.mrf.mxu0
      %v6177 = vadd.f32 %v6052, %v6176
      %6178 = vmatmul.f32.gmra.mxu0 %v5551
      %v6179 = vpop.f32.mrf.mxu0
      %v6180 = vadd.f32 %v6055, %v6179
      %6181 = vmatmul.f32.gmra.mxu0 %v5554
      %v6182 = vpop.f32.mrf.mxu0
      %v6183 = vadd.f32 %v6058, %v6182
      %6184 = vmatmul.f32.gmra.mxu0 %v5557
      %v6185 = vpop.f32.mrf.mxu0
      %v6186 = vadd.f32 %v6061, %v6185
      %6187 = vdwg.mxu0
      %v6188 = vmax.f32 %v6081, 0.0
      %v6189 = vmax.f32 %v6084, 0.0
      %v6190 = vmax.f32 %v6087, 0.0
      %v6191 = vmax.f32 %v6090, 0.0
      %v6192 = vmax.f32 %v6093, 0.0
      %v6193 = vmax.f32 %v6096, 0.0
      %v6194 = vmax.f32 %v6099, 0.0
      %v6195 = vmax.f32 %v6102, 0.0
      %v6196 = vmax.f32 %v6105, 0.0
      %v6197 = vmax.f32 %v6108, 0.0
      %v6198 = vmax.f32 %v6111, 0.0
      %v6199 = vmax.f32 %v6114, 0.0
      %v6200 = vmax.f32 %v6117, 0.0
      %v6201 = vmax.f32 %v6120, 0.0
      %v6202 = vmax.f32 %v6123, 0.0
      %v6203 = vmax.f32 %v6126, 0.0
      %v6204 = vmax.f32 %v6129, 0.0
      %v6205 = vmax.f32 %v6132, 0.0
      %v6206 = vmax.f32 %v6135, 0.0
      %v6207 = vmax.f32 %v6138, 0.0
      %v6208 = vmax.f32 %v6141, 0.0
      %v6209 = vmax.f32 %v6144, 0.0
      %v6210 = vmax.f32 %v6147, 0.0
      %v6211 = vmax.f32 %v6150, 0.0
      %v6212 = vmax.f32 %v6153, 0.0
      %v6213 = vmax.f32 %v6156, 0.0
      %v6214 = vmax.f32 %v6159, 0.0
      %v6215 = vmax.f32 %v6162, 0.0
      %v6216 = vmax.f32 %v6165, 0.0
      %v6217 = vmax.f32 %v6168, 0.0
      %v6218 = vmax.f32 %v6171, 0.0
      %v6219 = vmax.f32 %v6174, 0.0
      %v6220 = vmax.f32 %v6177, 0.0
      %v6221 = vmax.f32 %v6180, 0.0
      %v6222 = vmax.f32 %v6183, 0.0
      %v6223 = vmax.f32 %v6186, 0.0
      %6224 = vst.msk [vmem:[%s224] sm:$0xff] %vm3605, %v6188
      %6225 = vst.msk [vmem:[%s224 + $0x8] sm:$0xff] %vm3605, %v6189
      %6226 = vst.msk [vmem:[%s224 + $0x10] sm:$0xff] %vm3605, %v6190
      %6227 = vst.msk [vmem:[%s224 + $0x18] sm:$0xff] %vm3605, %v6191
      %6228 = vst.msk [vmem:[%s224 + $0x20] sm:$0xff] %vm3605, %v6192
      %6229 = vst.msk [vmem:[%s224 + $0x28] sm:$0xff] %vm3605, %v6193
      %6230 = vst.msk [vmem:[%s224 + $0x30] sm:$0xff] %vm3605, %v6194
      %6231 = vst.msk [vmem:[%s224 + $0x38] sm:$0xff] %vm3605, %v6195
      %6232 = vst.msk [vmem:[%s224 + $0x40] sm:$0xff] %vm3605, %v6196
      %6233 = vst.msk [vmem:[%s224 + $0x48] sm:$0xff] %vm3605, %v6197
      %6234 = vst.msk [vmem:[%s224 + $0x50] sm:$0xff] %vm3605, %v6198
      %6235 = vst.msk [vmem:[%s224 + $0x58] sm:$0xff] %vm3605, %v6199
      %6236 = vst.msk [vmem:[%s224 + $0x60] sm:$0xff] %vm3605, %v6200
      %6237 = vst.msk [vmem:[%s224 + $0x68] sm:$0xff] %vm3605, %v6201
      %6238 = vst.msk [vmem:[%s224 + $0x70] sm:$0xff] %vm3605, %v6202
      %6239 = vst.msk [vmem:[%s224 + $0x78] sm:$0xff] %vm3605, %v6203
      %6240 = vst.msk [vmem:[%s224 + $0x80] sm:$0xff] %vm3605, %v6204
      %6241 = vst.msk [vmem:[%s224 + $0x88] sm:$0xff] %vm3605, %v6205
      %6242 = vst.msk [vmem:[%s224 + $0x90] sm:$0xff] %vm3605, %v6206
      %6243 = vst.msk [vmem:[%s224 + $0x98] sm:$0xff] %vm3605, %v6207
      %6244 = vst.msk [vmem:[%s224 + $0xa0] sm:$0xff] %vm3605, %v6208
      %6245 = vst.msk [vmem:[%s224 + $0xa8] sm:$0xff] %vm3605, %v6209
      %6246 = vst.msk [vmem:[%s224 + $0xb0] sm:$0xff] %vm3605, %v6210
      %6247 = vst.msk [vmem:[%s224 + $0xb8] sm:$0xff] %vm3605, %v6211
      %6248 = vst.msk [vmem:[%s224 + $0xc0] sm:$0xff] %vm3605, %v6212
      %6249 = vst.msk [vmem:[%s224 + $0xc8] sm:$0xff] %vm3605, %v6213
      %6250 = vst.msk [vmem:[%s224 + $0xd0] sm:$0xff] %vm3605, %v6214
      %6251 = vst.msk [vmem:[%s224 + $0xd8] sm:$0xff] %vm3605, %v6215
      %6252 = vst.msk [vmem:[%s224 + $0xe0] sm:$0xff] %vm3605, %v6216
      %6253 = vst.msk [vmem:[%s224 + $0xe8] sm:$0xff] %vm3605, %v6217
      %6254 = vst.msk [vmem:[%s224 + $0xf0] sm:$0xff] %vm3605, %v6218
      %6255 = vst.msk [vmem:[%s224 + $0xf8] sm:$0xff] %vm3605, %v6219
      %6256 = vst.msk [vmem:[%s224 + $0x100] sm:$0xff] %vm3605, %v6220
      %6257 = vst.msk [vmem:[%s224 + $0x108] sm:$0xff] %vm3605, %v6221
      %6258 = vst.msk [vmem:[%s224 + $0x110] sm:$0xff] %vm3605, %v6222
      %6259 = vst.msk [vmem:[%s224 + $0x118] sm:$0xff] %vm3605, %v6223
      %p6260 = scmp.lt.s32.totalorder %s16, 1
      %s6261 = scalar_select %p6260, %s16, 1
      %s6262 = smul.addr %s6261, 36
      %s6263 = smul.addr %s6262, 8
      %s6264 = scalar_lea.vmem %s5, %s6263
      // Predicated region
      $region41: #{preparation_network.1} parent=39 // pred_check
        %p6265 = pneg %p144
      $region42: #{preparation_network.1} parent=39 // pred_check_branch
        %6267 = sbr.rel (%p6265) target = $region44
      $region43: #{preparation_network.1} parent=39 // pred_region
        _
      $region44: #{preparation_network.1} parent=39 // pred_fallthru
        _
    $region40: #{preparation_network.1} parent=5 // pred_fallthru
      _
    %p6268 = scmp.le.s32.totalorder 2, %s11
    // Predicated region
    $region45: #{preparation_network.1} parent=5 // pred_check
      %p6269 = pneg %p6268
    $region46: #{preparation_network.1} parent=5 // pred_check_branch
      %6271 = sbr.rel (%p6269) target = $region48
    $region47: #{preparation_network.1} parent=5 // pred_region
      %s6272 = ssub.s32 %s11, 2
      // Predicated region
      $region49: #{preparation_network.1} parent=47 // pred_check
        %p6273 = pneg %p150
      $region50: #{preparation_network.1} parent=47 // pred_check_branch
        %6275 = sbr.rel (%p6273) target = $region52
      $region51: #{preparation_network.1} parent=47 // pred_region
        %p6276 = scmp.lt.s32.totalorder %s17, 1
        %s6277 = scalar_select %p6276, %s17, 1
        %s6278 = smul.addr %s6277, 36
        %s6279 = smul.addr %s6278, 8
        %s6280 = scalar_lea.vmem %s5, %s6279
      $region52: #{preparation_network.1} parent=47 // pred_fallthru
        _
    $region48: #{preparation_network.1} parent=5 // pred_fallthru
      _
  $region6: #{preparation_network.1} parent=0 // loop_footer
    %s15 = sadd.s32 1, %s11
  $region7: #{preparation_network.1} parent=0 // loop_footer_branch
    %10 = sbr.rel target = $region3
  $region8: #{preparation_network.1} parent=0 // loop_exit
    _

</llo_original>
